<compile_context>
chip_gen: v7x
topology: tpu7x:2x2x1
jax: 0.10.0
libtpu: 0.0.40
codegen_flags: <defaults>
</compile_context>

<pallas_src>
import functools

import jax
import jax.numpy as jnp
import numpy as np
from jax.experimental import pallas as pl
from jax.experimental.pallas import tpu as pltpu  # noqa: F401  (kept for TPU-specific knobs)


# ---------------------------------------------------------------------------
# Config (synthetic, small)
# ---------------------------------------------------------------------------
BATCH = 2
SEQ_LEN = 16
EMBED_DIM = 32
HIDDEN_DIM = 32
N_LAYERS = 2
CLASS_NUM = 5
C_PAD = 128  # lane-dense padded logits width


def _round8(n):
    return -(-n // 8) * 8


def _slab_layout(n_layers, embed, hidden):
    """Row layout of the packed parameter slab (every section 8-row aligned)."""
    layout = {}
    r = 0

    def add(name, nrows):
        nonlocal r
        layout[name] = (r, nrows)
        r += _round8(nrows)

    add("w_ih0", embed)                       # (E, 4H)  layer-0 input weights
    add("b0", 1)                              # (1, 4H)  layer-0 bias (ih + hh)
    for lyr in range(n_layers - 1):           # (H, 8H)  [w_hh_l | w_ih_{l+1}]
        add(f"fused_{lyr}", hidden)
    for lyr in range(1, n_layers):            # (1, 4H)
        add(f"bias_{lyr}", 1)
    add("w_hh_last", hidden)                  # (H, 4H)
    add("fc_w", hidden)                       # (H, C) stored in C_PAD lanes
    add("fc_b", 1)                            # (1, C)
    return layout, _round8(r)


# ---------------------------------------------------------------------------
# Pallas kernel: multi-layer LSTM recurrence + last-step select + fc head
# ---------------------------------------------------------------------------
def _lstm_kernel(n_layers, seq_len, batch, hidden, layout,
                 x_ref, mask_ref, slab_ref, out_ref):
    H = hidden
    G = 4 * H

    def wpart(name, ncols):
        r0, nrows = layout[name]
        return slab_ref[r0:r0 + nrows, :][:, 0:ncols]

    w_ih0 = wpart("w_ih0", G)                                   # (E, 4H)
    b0 = wpart("b0", G)                                         # (1, 4H)
    fused = [wpart(f"fused_{l}", 2 * G) for l in range(n_layers - 1)]   # (H, 8H)
    bias = [wpart(f"bias_{l}", G) for l in range(1, n_layers)]          # (1, 4H)
    w_hh_last = wpart("w_hh_last", G)                            # (H, 4H)

    # All layer-0 input projections (+ bias) in one matmul, M = L*B.
    xg = jnp.dot(x_ref[...], w_ih0, preferred_element_type=jnp.float32) + b0

    mask = mask_ref[...]            # (B, L) one-hot of last valid timestep

    def act(gates):
        # sigmoid via EUP tanh (no VALU divide); activate the whole (B, 4H)
        # gate slab once, then take static lane slices (PyTorch order i,f,g,o).
        sig = 0.5 * (1.0 + jnp.tanh(0.5 * gates))
        tnh = jnp.tanh(gates)
        return (sig[:, 0:H], sig[:, H:2 * H],
                tnh[:, 2 * H:3 * H], sig[:, 3 * H:4 * H])

    zero_h = jnp.zeros((batch, H), jnp.float32)
    zero_g = jnp.zeros((batch, G), jnp.float32)
    hs = [zero_h] * n_layers
    cs = [zero_h] * n_layers
    rec = [zero_g] * n_layers       # h_l(t-1) @ w_hh_l, carried across steps
    h_sel = zero_h                  # top-layer h at the last valid step

    for t in range(seq_len):
        proj = xg[t * batch:(t + 1) * batch, :]   # layer-0 input gates (+bias)
        for l in range(n_layers):
            gates = proj + rec[l]
            if l > 0:
                gates = gates + bias[l - 1]
            i_g, f_g, g_g, o_g = act(gates)
            c_new = f_g * cs[l] + i_g * g_g
            h_new = o_g * jnp.tanh(c_new)
            hs[l], cs[l] = h_new, c_new
            if l < n_layers - 1:
                # One matmul yields this layer's next-step recurrent term AND
                # the next layer's input projection for the current step.
                both = jnp.dot(h_new, fused[l], preferred_element_type=jnp.float32)
                rec[l] = both[:, 0:G]
                proj = both[:, G:2 * G]
            elif t < seq_len - 1:
                rec[l] = jnp.dot(h_new, w_hh_last,
                                 preferred_element_type=jnp.float32)
        h_sel = h_sel + mask[:, t:t + 1] * hs[n_layers - 1]

    # dropout: identity in eval mode.  fc_one head, lane-dense padded store.
    fc_w = wpart("fc_w", C_PAD)
    fc_b = wpart("fc_b", C_PAD)
    out_ref[...] = jnp.dot(h_sel, fc_w, preferred_element_type=jnp.float32) + fc_b


def lstm_forward(x, params):
    """x: (B, L, E) float32 zero-padded embeddings → (B, class_num) f32 logits."""
    b, l, e = x.shape
    h = params["hidden_dim"]
    c = params["class_num"]
    n_layers = len(params["w_ih"])
    G = 4 * h
    width = max(2 * G, C_PAD)

    x = x.astype(jnp.float32)

    # Sequence lengths / last-valid-step one-hot mask in plain XLA (was an
    # in-kernel argmin over a lane-width-1 layout).  lens==0 wraps to L-1 to
    # mimic the reference's `seq_lengths - 1 = -1` indexing.
    lens = jnp.argmin(jnp.abs(x[:, :, 0]), axis=1)                       # (B,)
    last_t = jnp.where(lens > 0, lens - 1, l - 1)
    mask = (jnp.arange(l)[None, :] == last_t[:, None]).astype(jnp.float32)  # (B, L)

    # Time-major 2-D input: the per-step read is a static contiguous row block
    # and the layer-0 precompute needs no in-kernel reshape.
    x_tm = jnp.transpose(x, (1, 0, 2)).reshape(l * b, e)

    # Pack every parameter into one lane-dense f32 slab → a single input DMA.
    layout, total_rows = _slab_layout(n_layers, e, h)
    slab = jnp.zeros((total_rows, width), jnp.float32)

    def put(s, name, val):
        r0, _ = layout[name]
        return s.at[r0:r0 + val.shape[0], :val.shape[1]].set(val)

    slab = put(slab, "w_ih0", params["w_ih"][0])
    slab = put(slab, "b0", params["b"][0])
    for lyr in range(n_layers - 1):
        slab = put(slab, f"fused_{lyr}",
                   jnp.concatenate([params["w_hh"][lyr], params["w_ih"][lyr + 1]],
                                   axis=1))
    for lyr in range(1, n_layers):
        slab = put(slab, f"bias_{lyr}", params["b"][lyr])
    slab = put(slab, "w_hh_last", params["w_hh"][n_layers - 1])
    slab = put(slab, "fc_w", params["fc_w"])
    slab = put(slab, "fc_b", params["fc_b"])

    kernel = functools.partial(_lstm_kernel, n_layers, l, b, h, layout)

    out_pad = pl.pallas_call(
        kernel,
        out_shape=jax.ShapeDtypeStruct((b, C_PAD), jnp.float32),
        grid=(1,),
        in_specs=[
            pl.BlockSpec((l * b, e), lambda i: (0, 0)),
            pl.BlockSpec((b, l), lambda i: (0, 0)),
            pl.BlockSpec((total_rows, width), lambda i: (0, 0)),
        ],
        out_specs=pl.BlockSpec((b, C_PAD), lambda i: (0, 0)),
    )(x_tm, mask, slab)
    return out_pad[:, :c]


# ---------------------------------------------------------------------------
# Pure-JAX reference (mirrors the PyTorch forward exactly, eval mode)
# ---------------------------------------------------------------------------
def _sigmoid_ref(z):
    return 1.0 / (1.0 + jnp.exp(-z))


def lstm_reference(x, params):
    b, l, _ = x.shape
    h = params["hidden_dim"]
    n_layers = len(params["w_ih"])
    hp = functools.partial(jnp.dot, precision=jax.lax.Precision.HIGHEST)

    lens = jnp.argmin(jnp.abs(x[:, :, 0]), axis=1)               # (B,)
    inp = x
    for lyr in range(n_layers):
        w_ih, w_hh, bias = params["w_ih"][lyr], params["w_hh"][lyr], params["b"][lyr]
        h_t = jnp.zeros((b, h), jnp.float32)
        c_t = jnp.zeros((b, h), jnp.float32)
        outs = []
        for t in range(l):
            gates = hp(inp[:, t, :], w_ih) + hp(h_t, w_hh) + bias
            i_g = _sigmoid_ref(gates[:, 0 * h:1 * h])
            f_g = _sigmoid_ref(gates[:, 1 * h:2 * h])
            g_g = jnp.tanh(gates[:, 2 * h:3 * h])
            o_g = _sigmoid_ref(gates[:, 3 * h:4 * h])
            c_t = f_g * c_t + i_g * g_g
            h_t = o_g * jnp.tanh(c_t)
            outs.append(h_t)
        inp = jnp.stack(outs, axis=1)                            # (B, L, H)
    h_last = inp[jnp.arange(b), lens - 1, :]                     # (B, H)
    logits = hp(h_last, params["fc_w"]) + params["fc_b"]
    return logits.astype(jnp.float32)


# ---------------------------------------------------------------------------
# Deterministic parameter init (synthetic; PyTorch layouts pre-transposed)
# ---------------------------------------------------------------------------
def init_params(key):
    keys = jax.random.split(key, 4 * N_LAYERS + 2)
    w_ih, w_hh, b = [], [], []
    kidx = 0
    for lyr in range(N_LAYERS):
        in_dim = EMBED_DIM if lyr == 0 else HIDDEN_DIM
        # PyTorch: weight_ih (4H, in_dim), weight_hh (4H, H), b_ih/b_hh (4H,)
        w_ih_t = 0.1 * jax.random.normal(keys[kidx], (4 * HIDDEN_DIM, in_dim), jnp.float32); kidx += 1
        w_hh_t = 0.1 * jax.random.normal(keys[kidx], (4 * HIDDEN_DIM, HIDDEN_DIM), jnp.float32); kidx += 1
        b_ih = 0.1 * jax.random.normal(keys[kidx], (4 * HIDDEN_DIM,), jnp.float32); kidx += 1
        b_hh = 0.1 * jax.random.normal(keys[kidx], (4 * HIDDEN_DIM,), jnp.float32); kidx += 1
        w_ih.append(w_ih_t.T)                                    # (in_dim, 4H)
        w_hh.append(w_hh_t.T)                                    # (H, 4H)
        b.append((b_ih + b_hh).reshape(1, 4 * HIDDEN_DIM))
    fc_w_t = 0.1 * jax.random.normal(keys[kidx], (CLASS_NUM, HIDDEN_DIM), jnp.float32); kidx += 1
    fc_b = 0.1 * jax.random.normal(keys[kidx], (CLASS_NUM,), jnp.float32)
    return {
        "hidden_dim": HIDDEN_DIM,
        "class_num": CLASS_NUM,
        "w_ih": w_ih,
        "w_hh": w_hh,
        "b": b,
        "fc_w": fc_w_t.T,                                        # (H, C)
        "fc_b": fc_b.reshape(1, CLASS_NUM),
    }


if __name__ == "__main__":
    key = jax.random.PRNGKey(0)
    pkey, xkey = jax.random.split(key)
    params = init_params(pkey)

    # Zero-padded batch: per-row true lengths < SEQ_LEN so the module's
    # argmin-of-|x[:, :, 0]| length heuristic is well defined.
    x_raw = jax.random.normal(xkey, (BATCH, SEQ_LEN, EMBED_DIM), jnp.float32)
    true_lens = jnp.array([11, 14], dtype=jnp.int32)
    valid = (jnp.arange(SEQ_LEN)[None, :] < true_lens[:, None])[..., None]
    x = jnp.where(valid, x_raw, 0.0)

    logits = lstm_forward(x, params)
    jax.block_until_ready(logits)

    ref = lstm_reference(x, params)
    np.testing.assert_allclose(np.asarray(logits), np.asarray(ref), rtol=2e-3, atol=2e-3)
    assert logits.shape == (BATCH, CLASS_NUM) and logits.dtype == jnp.float32

    print("KERNEL_OK")
</pallas_src>

<mosaic_0001>
module attributes {stable_mosaic.version = 11 : i64} {
  func.func @_lstm_kernel(%arg0: i32, %arg1: memref<32x32xf32, #tpu.memory_space<vmem>>, %arg2: memref<2x16xf32, #tpu.memory_space<vmem>>, %arg3: memref<152x256xf32, #tpu.memory_space<vmem>>, %arg4: memref<2x128xf32, #tpu.memory_space<vmem>>) attributes {dimension_semantics = [#tpu.dimension_semantics<arbitrary>], iteration_bounds = array<i64: 1>, scalar_prefetch = 0 : i64, scratch_operands = 0 : i64, tpu.core_type = #tpu.core_type<tc>, window_params = [{pipeline_mode = #tpu.pipeline_mode<synchronous>, transform_indices = @transform_0, window_bounds = array<i64: 32, 32>}, {pipeline_mode = #tpu.pipeline_mode<synchronous>, transform_indices = @transform_1, window_bounds = array<i64: 2, 16>}, {pipeline_mode = #tpu.pipeline_mode<synchronous>, transform_indices = @transform_2, window_bounds = array<i64: 152, 256>}, {pipeline_mode = #tpu.pipeline_mode<synchronous>, transform_indices = @transform_3, window_bounds = array<i64: 2, 128>}]} {
    %c0 = arith.constant 0 : index
    %c0_0 = arith.constant 0 : index
    %0 = vector.load %arg3[%c0, %c0_0] : memref<152x256xf32, #tpu.memory_space<vmem>>, vector<32x256xf32>
    %1 = vector.extract_strided_slice %0 {offsets = [0, 0], sizes = [32, 128], strides = [1, 1]} : vector<32x256xf32> to vector<32x128xf32>
    %c32 = arith.constant 32 : index
    %c0_1 = arith.constant 0 : index
    %2 = vector.load %arg3[%c32, %c0_1] : memref<152x256xf32, #tpu.memory_space<vmem>>, vector<1x256xf32>
    %3 = vector.extract_strided_slice %2 {offsets = [0, 0], sizes = [1, 128], strides = [1, 1]} : vector<1x256xf32> to vector<1x128xf32>
    %c40 = arith.constant 40 : index
    %c0_2 = arith.constant 0 : index
    %4 = vector.load %arg3[%c40, %c0_2] : memref<152x256xf32, #tpu.memory_space<vmem>>, vector<32x256xf32>
    %c72 = arith.constant 72 : index
    %c0_3 = arith.constant 0 : index
    %5 = vector.load %arg3[%c72, %c0_3] : memref<152x256xf32, #tpu.memory_space<vmem>>, vector<1x256xf32>
    %6 = vector.extract_strided_slice %5 {offsets = [0, 0], sizes = [1, 128], strides = [1, 1]} : vector<1x256xf32> to vector<1x128xf32>
    %c80 = arith.constant 80 : index
    %c0_4 = arith.constant 0 : index
    %7 = vector.load %arg3[%c80, %c0_4] : memref<152x256xf32, #tpu.memory_space<vmem>>, vector<32x256xf32>
    %8 = vector.extract_strided_slice %7 {offsets = [0, 0], sizes = [32, 128], strides = [1, 1]} : vector<32x256xf32> to vector<32x128xf32>
    %c0_5 = arith.constant 0 : index
    %c0_6 = arith.constant 0 : index
    %9 = vector.load %arg1[%c0_5, %c0_6] : memref<32x32xf32, #tpu.memory_space<vmem>>, vector<32x32xf32>
    %cst = arith.constant dense<0.000000e+00> : vector<32x128xf32>
    %10 = tpu.matmul %9, %1, %cst {dimension_numbers = #tpu.dot_dimension_numbers<[1], [0], [0], [1], [0, 0, 1, 1], [], []>} : vector<32x32xf32>, vector<32x128xf32>, vector<32x128xf32> -> vector<32x128xf32>
    %11 = vector.broadcast %3 : vector<1x128xf32> to vector<32x128xf32>
    %12 = arith.addf %10, %11 : vector<32x128xf32>
    %c0_7 = arith.constant 0 : index
    %c0_8 = arith.constant 0 : index
    %13 = vector.load %arg2[%c0_7, %c0_8] : memref<2x16xf32, #tpu.memory_space<vmem>>, vector<2x16xf32>
    %cst_9 = arith.constant 0.000000e+00 : f32
    %14 = vector.broadcast %cst_9 : f32 to vector<2x32xf32>
    %cst_10 = arith.constant 0.000000e+00 : f32
    %15 = vector.broadcast %cst_10 : f32 to vector<2x128xf32>
    %16 = vector.extract_strided_slice %12 {offsets = [0, 0], sizes = [2, 128], strides = [1, 1]} : vector<32x128xf32> to vector<2x128xf32>
    %17 = arith.addf %16, %15 : vector<2x128xf32>
    %cst_11 = arith.constant 5.000000e-01 : f32
    %18 = vector.broadcast %cst_11 : f32 to vector<2x128xf32>
    %19 = arith.mulf %18, %17 : vector<2x128xf32>
    %20 = math.tanh %19 : vector<2x128xf32>
    %cst_12 = arith.constant 1.000000e+00 : f32
    %21 = vector.broadcast %cst_12 : f32 to vector<2x128xf32>
    %22 = arith.addf %21, %20 : vector<2x128xf32>
    %cst_13 = arith.constant 5.000000e-01 : f32
    %23 = vector.broadcast %cst_13 : f32 to vector<2x128xf32>
    %24 = arith.mulf %23, %22 : vector<2x128xf32>
    %25 = math.tanh %17 : vector<2x128xf32>
    %26 = vector.extract_strided_slice %24 {offsets = [0, 0], sizes = [2, 32], strides = [1, 1]} : vector<2x128xf32> to vector<2x32xf32>
    %27 = vector.extract_strided_slice %24 {offsets = [0, 32], sizes = [2, 32], strides = [1, 1]} : vector<2x128xf32> to vector<2x32xf32>
    %28 = vector.extract_strided_slice %25 {offsets = [0, 64], sizes = [2, 32], strides = [1, 1]} : vector<2x128xf32> to vector<2x32xf32>
    %29 = vector.extract_strided_slice %24 {offsets = [0, 96], sizes = [2, 32], strides = [1, 1]} : vector<2x128xf32> to vector<2x32xf32>
    %30 = arith.mulf %27, %14 : vector<2x32xf32>
    %31 = arith.mulf %26, %28 : vector<2x32xf32>
    %32 = arith.addf %30, %31 : vector<2x32xf32>
    %33 = math.tanh %32 : vector<2x32xf32>
    %34 = arith.mulf %29, %33 : vector<2x32xf32>
    %cst_14 = arith.constant dense<0.000000e+00> : vector<2x256xf32>
    %35 = tpu.matmul %34, %4, %cst_14 {dimension_numbers = #tpu.dot_dimension_numbers<[1], [0], [0], [1], [0, 0, 1, 1], [], []>} : vector<2x32xf32>, vector<32x256xf32>, vector<2x256xf32> -> vector<2x256xf32>
    %36 = vector.extract_strided_slice %35 {offsets = [0, 0], sizes = [2, 128], strides = [1, 1]} : vector<2x256xf32> to vector<2x128xf32>
    %37 = vector.extract_strided_slice %35 {offsets = [0, 128], sizes = [2, 128], strides = [1, 1]} : vector<2x256xf32> to vector<2x128xf32>
    %38 = arith.addf %37, %15 : vector<2x128xf32>
    %39 = vector.broadcast %6 : vector<1x128xf32> to vector<2x128xf32>
    %40 = arith.addf %38, %39 : vector<2x128xf32>
    %cst_15 = arith.constant 5.000000e-01 : f32
    %41 = vector.broadcast %cst_15 : f32 to vector<2x128xf32>
    %42 = arith.mulf %41, %40 : vector<2x128xf32>
    %43 = math.tanh %42 : vector<2x128xf32>
    %cst_16 = arith.constant 1.000000e+00 : f32
    %44 = vector.broadcast %cst_16 : f32 to vector<2x128xf32>
    %45 = arith.addf %44, %43 : vector<2x128xf32>
    %cst_17 = arith.constant 5.000000e-01 : f32
    %46 = vector.broadcast %cst_17 : f32 to vector<2x128xf32>
    %47 = arith.mulf %46, %45 : vector<2x128xf32>
    %48 = math.tanh %40 : vector<2x128xf32>
    %49 = vector.extract_strided_slice %47 {offsets = [0, 0], sizes = [2, 32], strides = [1, 1]} : vector<2x128xf32> to vector<2x32xf32>
    %50 = vector.extract_strided_slice %47 {offsets = [0, 32], sizes = [2, 32], strides = [1, 1]} : vector<2x128xf32> to vector<2x32xf32>
    %51 = vector.extract_strided_slice %48 {offsets = [0, 64], sizes = [2, 32], strides = [1, 1]} : vector<2x128xf32> to vector<2x32xf32>
    %52 = vector.extract_strided_slice %47 {offsets = [0, 96], sizes = [2, 32], strides = [1, 1]} : vector<2x128xf32> to vector<2x32xf32>
    %53 = arith.mulf %50, %14 : vector<2x32xf32>
    %54 = arith.mulf %49, %51 : vector<2x32xf32>
    %55 = arith.addf %53, %54 : vector<2x32xf32>
    %56 = math.tanh %55 : vector<2x32xf32>
    %57 = arith.mulf %52, %56 : vector<2x32xf32>
    %cst_18 = arith.constant dense<0.000000e+00> : vector<2x128xf32>
    %58 = tpu.matmul %57, %8, %cst_18 {dimension_numbers = #tpu.dot_dimension_numbers<[1], [0], [0], [1], [0, 0, 1, 1], [], []>} : vector<2x32xf32>, vector<32x128xf32>, vector<2x128xf32> -> vector<2x128xf32>
    %59 = vector.extract_strided_slice %13 {offsets = [0, 0], sizes = [2, 1], strides = [1, 1]} : vector<2x16xf32> to vector<2x1xf32>
    %60 = vector.broadcast %59 : vector<2x1xf32> to vector<2x32xf32>
    %61 = arith.mulf %60, %57 : vector<2x32xf32>
    %62 = arith.addf %14, %61 : vector<2x32xf32>
    %63 = vector.extract_strided_slice %12 {offsets = [2, 0], sizes = [2, 128], strides = [1, 1]} : vector<32x128xf32> to vector<2x128xf32>
    %64 = arith.addf %63, %36 : vector<2x128xf32>
    %cst_19 = arith.constant 5.000000e-01 : f32
    %65 = vector.broadcast %cst_19 : f32 to vector<2x128xf32>
    %66 = arith.mulf %65, %64 : vector<2x128xf32>
    %67 = math.tanh %66 : vector<2x128xf32>
    %cst_20 = arith.constant 1.000000e+00 : f32
    %68 = vector.broadcast %cst_20 : f32 to vector<2x128xf32>
    %69 = arith.addf %68, %67 : vector<2x128xf32>
    %cst_21 = arith.constant 5.000000e-01 : f32
    %70 = vector.broadcast %cst_21 : f32 to vector<2x128xf32>
    %71 = arith.mulf %70, %69 : vector<2x128xf32>
    %72 = math.tanh %64 : vector<2x128xf32>
    %73 = vector.extract_strided_slice %71 {offsets = [0, 0], sizes = [2, 32], strides = [1, 1]} : vector<2x128xf32> to vector<2x32xf32>
    %74 = vector.extract_strided_slice %71 {offsets = [0, 32], sizes = [2, 32], strides = [1, 1]} : vector<2x128xf32> to vector<2x32xf32>
    %75 = vector.extract_strided_slice %72 {offsets = [0, 64], sizes = [2, 32], strides = [1, 1]} : vector<2x128xf32> to vector<2x32xf32>
    %76 = vector.extract_strided_slice %71 {offsets = [0, 96], sizes = [2, 32], strides = [1, 1]} : vector<2x128xf32> to vector<2x32xf32>
    %77 = arith.mulf %74, %32 : vector<2x32xf32>
    %78 = arith.mulf %73, %75 : vector<2x32xf32>
    %79 = arith.addf %77, %78 : vector<2x32xf32>
    %80 = math.tanh %79 : vector<2x32xf32>
    %81 = arith.mulf %76, %80 : vector<2x32xf32>
    %cst_22 = arith.constant dense<0.000000e+00> : vector<2x256xf32>
    %82 = tpu.matmul %81, %4, %cst_22 {dimension_numbers = #tpu.dot_dimension_numbers<[1], [0], [0], [1], [0, 0, 1, 1], [], []>} : vector<2x32xf32>, vector<32x256xf32>, vector<2x256xf32> -> vector<2x256xf32>
    %83 = vector.extract_strided_slice %82 {offsets = [0, 0], sizes = [2, 128], strides = [1, 1]} : vector<2x256xf32> to vector<2x128xf32>
    %84 = vector.extract_strided_slice %82 {offsets = [0, 128], sizes = [2, 128], strides = [1, 1]} : vector<2x256xf32> to vector<2x128xf32>
    %85 = arith.addf %84, %58 : vector<2x128xf32>
    %86 = vector.broadcast %6 : vector<1x128xf32> to vector<2x128xf32>
    %87 = arith.addf %85, %86 : vector<2x128xf32>
    %cst_23 = arith.constant 5.000000e-01 : f32
    %88 = vector.broadcast %cst_23 : f32 to vector<2x128xf32>
    %89 = arith.mulf %88, %87 : vector<2x128xf32>
    %90 = math.tanh %89 : vector<2x128xf32>
    %cst_24 = arith.constant 1.000000e+00 : f32
    %91 = vector.broadcast %cst_24 : f32 to vector<2x128xf32>
    %92 = arith.addf %91, %90 : vector<2x128xf32>
    %cst_25 = arith.constant 5.000000e-01 : f32
    %93 = vector.broadcast %cst_25 : f32 to vector<2x128xf32>
    %94 = arith.mulf %93, %92 : vector<2x128xf32>
    %95 = math.tanh %87 : vector<2x128xf32>
    %96 = vector.extract_strided_slice %94 {offsets = [0, 0], sizes = [2, 32], strides = [1, 1]} : vector<2x128xf32> to vector<2x32xf32>
    %97 = vector.extract_strided_slice %94 {offsets = [0, 32], sizes = [2, 32], strides = [1, 1]} : vector<2x128xf32> to vector<2x32xf32>
    %98 = vector.extract_strided_slice %95 {offsets = [0, 64], sizes = [2, 32], strides = [1, 1]} : vector<2x128xf32> to vector<2x32xf32>
    %99 = vector.extract_strided_slice %94 {offsets = [0, 96], sizes = [2, 32], strides = [1, 1]} : vector<2x128xf32> to vector<2x32xf32>
    %100 = arith.mulf %97, %55 : vector<2x32xf32>
    %101 = arith.mulf %96, %98 : vector<2x32xf32>
    %102 = arith.addf %100, %101 : vector<2x32xf32>
    %103 = math.tanh %102 : vector<2x32xf32>
    %104 = arith.mulf %99, %103 : vector<2x32xf32>
    %cst_26 = arith.constant dense<0.000000e+00> : vector<2x128xf32>
    %105 = tpu.matmul %104, %8, %cst_26 {dimension_numbers = #tpu.dot_dimension_numbers<[1], [0], [0], [1], [0, 0, 1, 1], [], []>} : vector<2x32xf32>, vector<32x128xf32>, vector<2x128xf32> -> vector<2x128xf32>
    %106 = vector.extract_strided_slice %13 {offsets = [0, 1], sizes = [2, 1], strides = [1, 1]} : vector<2x16xf32> to vector<2x1xf32>
    %107 = vector.broadcast %106 : vector<2x1xf32> to vector<2x32xf32>
    %108 = arith.mulf %107, %104 : vector<2x32xf32>
    %109 = arith.addf %62, %108 : vector<2x32xf32>
    %110 = vector.extract_strided_slice %12 {offsets = [4, 0], sizes = [2, 128], strides = [1, 1]} : vector<32x128xf32> to vector<2x128xf32>
    %111 = arith.addf %110, %83 : vector<2x128xf32>
    %cst_27 = arith.constant 5.000000e-01 : f32
    %112 = vector.broadcast %cst_27 : f32 to vector<2x128xf32>
    %113 = arith.mulf %112, %111 : vector<2x128xf32>
    %114 = math.tanh %113 : vector<2x128xf32>
    %cst_28 = arith.constant 1.000000e+00 : f32
    %115 = vector.broadcast %cst_28 : f32 to vector<2x128xf32>
    %116 = arith.addf %115, %114 : vector<2x128xf32>
    %cst_29 = arith.constant 5.000000e-01 : f32
    %117 = vector.broadcast %cst_29 : f32 to vector<2x128xf32>
    %118 = arith.mulf %117, %116 : vector<2x128xf32>
    %119 = math.tanh %111 : vector<2x128xf32>
    %120 = vector.extract_strided_slice %118 {offsets = [0, 0], sizes = [2, 32], strides = [1, 1]} : vector<2x128xf32> to vector<2x32xf32>
    %121 = vector.extract_strided_slice %118 {offsets = [0, 32], sizes = [2, 32], strides = [1, 1]} : vector<2x128xf32> to vector<2x32xf32>
    %122 = vector.extract_strided_slice %119 {offsets = [0, 64], sizes = [2, 32], strides = [1, 1]} : vector<2x128xf32> to vector<2x32xf32>
    %123 = vector.extract_strided_slice %118 {offsets = [0, 96], sizes = [2, 32], strides = [1, 1]} : vector<2x128xf32> to vector<2x32xf32>
    %124 = arith.mulf %121, %79 : vector<2x32xf32>
    %125 = arith.mulf %120, %122 : vector<2x32xf32>
    %126 = arith.addf %124, %125 : vector<2x32xf32>
    %127 = math.tanh %126 : vector<2x32xf32>
    %128 = arith.mulf %123, %127 : vector<2x32xf32>
    %cst_30 = arith.constant dense<0.000000e+00> : vector<2x256xf32>
    %129 = tpu.matmul %128, %4, %cst_30 {dimension_numbers = #tpu.dot_dimension_numbers<[1], [0], [0], [1], [0, 0, 1, 1], [], []>} : vector<2x32xf32>, vector<32x256xf32>, vector<2x256xf32> -> vector<2x256xf32>
    %130 = vector.extract_strided_slice %129 {offsets = [0, 0], sizes = [2, 128], strides = [1, 1]} : vector<2x256xf32> to vector<2x128xf32>
    %131 = vector.extract_strided_slice %129 {offsets = [0, 128], sizes = [2, 128], strides = [1, 1]} : vector<2x256xf32> to vector<2x128xf32>
    %132 = arith.addf %131, %105 : vector<2x128xf32>
    %133 = vector.broadcast %6 : vector<1x128xf32> to vector<2x128xf32>
    %134 = arith.addf %132, %133 : vector<2x128xf32>
    %cst_31 = arith.constant 5.000000e-01 : f32
    %135 = vector.broadcast %cst_31 : f32 to vector<2x128xf32>
    %136 = arith.mulf %135, %134 : vector<2x128xf32>
    %137 = math.tanh %136 : vector<2x128xf32>
    %cst_32 = arith.constant 1.000000e+00 : f32
    %138 = vector.broadcast %cst_32 : f32 to vector<2x128xf32>
    %139 = arith.addf %138, %137 : vector<2x128xf32>
    %cst_33 = arith.constant 5.000000e-01 : f32
    %140 = vector.broadcast %cst_33 : f32 to vector<2x128xf32>
    %141 = arith.mulf %140, %139 : vector<2x128xf32>
    %142 = math.tanh %134 : vector<2x128xf32>
    %143 = vector.extract_strided_slice %141 {offsets = [0, 0], sizes = [2, 32], strides = [1, 1]} : vector<2x128xf32> to vector<2x32xf32>
    %144 = vector.extract_strided_slice %141 {offsets = [0, 32], sizes = [2, 32], strides = [1, 1]} : vector<2x128xf32> to vector<2x32xf32>
    %145 = vector.extract_strided_slice %142 {offsets = [0, 64], sizes = [2, 32], strides = [1, 1]} : vector<2x128xf32> to vector<2x32xf32>
    %146 = vector.extract_strided_slice %141 {offsets = [0, 96], sizes = [2, 32], strides = [1, 1]} : vector<2x128xf32> to vector<2x32xf32>
    %147 = arith.mulf %144, %102 : vector<2x32xf32>
    %148 = arith.mulf %143, %145 : vector<2x32xf32>
    %149 = arith.addf %147, %148 : vector<2x32xf32>
    %150 = math.tanh %149 : vector<2x32xf32>
    %151 = arith.mulf %146, %150 : vector<2x32xf32>
    %cst_34 = arith.constant dense<0.000000e+00> : vector<2x128xf32>
    %152 = tpu.matmul %151, %8, %cst_34 {dimension_numbers = #tpu.dot_dimension_numbers<[1], [0], [0], [1], [0, 0, 1, 1], [], []>} : vector<2x32xf32>, vector<32x128xf32>, vector<2x128xf32> -> vector<2x128xf32>
    %153 = vector.extract_strided_slice %13 {offsets = [0, 2], sizes = [2, 1], strides = [1, 1]} : vector<2x16xf32> to vector<2x1xf32>
    %154 = vector.broadcast %153 : vector<2x1xf32> to vector<2x32xf32>
    %155 = arith.mulf %154, %151 : vector<2x32xf32>
    %156 = arith.addf %109, %155 : vector<2x32xf32>
    %157 = vector.extract_strided_slice %12 {offsets = [6, 0], sizes = [2, 128], strides = [1, 1]} : vector<32x128xf32> to vector<2x128xf32>
    %158 = arith.addf %157, %130 : vector<2x128xf32>
    %cst_35 = arith.constant 5.000000e-01 : f32
    %159 = vector.broadcast %cst_35 : f32 to vector<2x128xf32>
    %160 = arith.mulf %159, %158 : vector<2x128xf32>
    %161 = math.tanh %160 : vector<2x128xf32>
    %cst_36 = arith.constant 1.000000e+00 : f32
    %162 = vector.broadcast %cst_36 : f32 to vector<2x128xf32>
    %163 = arith.addf %162, %161 : vector<2x128xf32>
    %cst_37 = arith.constant 5.000000e-01 : f32
    %164 = vector.broadcast %cst_37 : f32 to vector<2x128xf32>
    %165 = arith.mulf %164, %163 : vector<2x128xf32>
    %166 = math.tanh %158 : vector<2x128xf32>
    %167 = vector.extract_strided_slice %165 {offsets = [0, 0], sizes = [2, 32], strides = [1, 1]} : vector<2x128xf32> to vector<2x32xf32>
    %168 = vector.extract_strided_slice %165 {offsets = [0, 32], sizes = [2, 32], strides = [1, 1]} : vector<2x128xf32> to vector<2x32xf32>
    %169 = vector.extract_strided_slice %166 {offsets = [0, 64], sizes = [2, 32], strides = [1, 1]} : vector<2x128xf32> to vector<2x32xf32>
    %170 = vector.extract_strided_slice %165 {offsets = [0, 96], sizes = [2, 32], strides = [1, 1]} : vector<2x128xf32> to vector<2x32xf32>
    %171 = arith.mulf %168, %126 : vector<2x32xf32>
    %172 = arith.mulf %167, %169 : vector<2x32xf32>
    %173 = arith.addf %171, %172 : vector<2x32xf32>
    %174 = math.tanh %173 : vector<2x32xf32>
    %175 = arith.mulf %170, %174 : vector<2x32xf32>
    %cst_38 = arith.constant dense<0.000000e+00> : vector<2x256xf32>
    %176 = tpu.matmul %175, %4, %cst_38 {dimension_numbers = #tpu.dot_dimension_numbers<[1], [0], [0], [1], [0, 0, 1, 1], [], []>} : vector<2x32xf32>, vector<32x256xf32>, vector<2x256xf32> -> vector<2x256xf32>
    %177 = vector.extract_strided_slice %176 {offsets = [0, 0], sizes = [2, 128], strides = [1, 1]} : vector<2x256xf32> to vector<2x128xf32>
    %178 = vector.extract_strided_slice %176 {offsets = [0, 128], sizes = [2, 128], strides = [1, 1]} : vector<2x256xf32> to vector<2x128xf32>
    %179 = arith.addf %178, %152 : vector<2x128xf32>
    %180 = vector.broadcast %6 : vector<1x128xf32> to vector<2x128xf32>
    %181 = arith.addf %179, %180 : vector<2x128xf32>
    %cst_39 = arith.constant 5.000000e-01 : f32
    %182 = vector.broadcast %cst_39 : f32 to vector<2x128xf32>
    %183 = arith.mulf %182, %181 : vector<2x128xf32>
    %184 = math.tanh %183 : vector<2x128xf32>
    %cst_40 = arith.constant 1.000000e+00 : f32
    %185 = vector.broadcast %cst_40 : f32 to vector<2x128xf32>
    %186 = arith.addf %185, %184 : vector<2x128xf32>
    %cst_41 = arith.constant 5.000000e-01 : f32
    %187 = vector.broadcast %cst_41 : f32 to vector<2x128xf32>
    %188 = arith.mulf %187, %186 : vector<2x128xf32>
    %189 = math.tanh %181 : vector<2x128xf32>
    %190 = vector.extract_strided_slice %188 {offsets = [0, 0], sizes = [2, 32], strides = [1, 1]} : vector<2x128xf32> to vector<2x32xf32>
    %191 = vector.extract_strided_slice %188 {offsets = [0, 32], sizes = [2, 32], strides = [1, 1]} : vector<2x128xf32> to vector<2x32xf32>
    %192 = vector.extract_strided_slice %189 {offsets = [0, 64], sizes = [2, 32], strides = [1, 1]} : vector<2x128xf32> to vector<2x32xf32>
    %193 = vector.extract_strided_slice %188 {offsets = [0, 96], sizes = [2, 32], strides = [1, 1]} : vector<2x128xf32> to vector<2x32xf32>
    %194 = arith.mulf %191, %149 : vector<2x32xf32>
    %195 = arith.mulf %190, %192 : vector<2x32xf32>
    %196 = arith.addf %194, %195 : vector<2x32xf32>
    %197 = math.tanh %196 : vector<2x32xf32>
    %198 = arith.mulf %193, %197 : vector<2x32xf32>
    %cst_42 = arith.constant dense<0.000000e+00> : vector<2x128xf32>
    %199 = tpu.matmul %198, %8, %cst_42 {dimension_numbers = #tpu.dot_dimension_numbers<[1], [0], [0], [1], [0, 0, 1, 1], [], []>} : vector<2x32xf32>, vector<32x128xf32>, vector<2x128xf32> -> vector<2x128xf32>
    %200 = vector.extract_strided_slice %13 {offsets = [0, 3], sizes = [2, 1], strides = [1, 1]} : vector<2x16xf32> to vector<2x1xf32>
    %201 = vector.broadcast %200 : vector<2x1xf32> to vector<2x32xf32>
    %202 = arith.mulf %201, %198 : vector<2x32xf32>
    %203 = arith.addf %156, %202 : vector<2x32xf32>
    %204 = vector.extract_strided_slice %12 {offsets = [8, 0], sizes = [2, 128], strides = [1, 1]} : vector<32x128xf32> to vector<2x128xf32>
    %205 = arith.addf %204, %177 : vector<2x128xf32>
    %cst_43 = arith.constant 5.000000e-01 : f32
    %206 = vector.broadcast %cst_43 : f32 to vector<2x128xf32>
    %207 = arith.mulf %206, %205 : vector<2x128xf32>
    %208 = math.tanh %207 : vector<2x128xf32>
    %cst_44 = arith.constant 1.000000e+00 : f32
    %209 = vector.broadcast %cst_44 : f32 to vector<2x128xf32>
    %210 = arith.addf %209, %208 : vector<2x128xf32>
    %cst_45 = arith.constant 5.000000e-01 : f32
    %211 = vector.broadcast %cst_45 : f32 to vector<2x128xf32>
    %212 = arith.mulf %211, %210 : vector<2x128xf32>
    %213 = math.tanh %205 : vector<2x128xf32>
    %214 = vector.extract_strided_slice %212 {offsets = [0, 0], sizes = [2, 32], strides = [1, 1]} : vector<2x128xf32> to vector<2x32xf32>
    %215 = vector.extract_strided_slice %212 {offsets = [0, 32], sizes = [2, 32], strides = [1, 1]} : vector<2x128xf32> to vector<2x32xf32>
    %216 = vector.extract_strided_slice %213 {offsets = [0, 64], sizes = [2, 32], strides = [1, 1]} : vector<2x128xf32> to vector<2x32xf32>
    %217 = vector.extract_strided_slice %212 {offsets = [0, 96], sizes = [2, 32], strides = [1, 1]} : vector<2x128xf32> to vector<2x32xf32>
    %218 = arith.mulf %215, %173 : vector<2x32xf32>
    %219 = arith.mulf %214, %216 : vector<2x32xf32>
    %220 = arith.addf %218, %219 : vector<2x32xf32>
    %221 = math.tanh %220 : vector<2x32xf32>
    %222 = arith.mulf %217, %221 : vector<2x32xf32>
    %cst_46 = arith.constant dense<0.000000e+00> : vector<2x256xf32>
    %223 = tpu.matmul %222, %4, %cst_46 {dimension_numbers = #tpu.dot_dimension_numbers<[1], [0], [0], [1], [0, 0, 1, 1], [], []>} : vector<2x32xf32>, vector<32x256xf32>, vector<2x256xf32> -> vector<2x256xf32>
    %224 = vector.extract_strided_slice %223 {offsets = [0, 0], sizes = [2, 128], strides = [1, 1]} : vector<2x256xf32> to vector<2x128xf32>
    %225 = vector.extract_strided_slice %223 {offsets = [0, 128], sizes = [2, 128], strides = [1, 1]} : vector<2x256xf32> to vector<2x128xf32>
    %226 = arith.addf %225, %199 : vector<2x128xf32>
    %227 = vector.broadcast %6 : vector<1x128xf32> to vector<2x128xf32>
    %228 = arith.addf %226, %227 : vector<2x128xf32>
    %cst_47 = arith.constant 5.000000e-01 : f32
    %229 = vector.broadcast %cst_47 : f32 to vector<2x128xf32>
    %230 = arith.mulf %229, %228 : vector<2x128xf32>
    %231 = math.tanh %230 : vector<2x128xf32>
    %cst_48 = arith.constant 1.000000e+00 : f32
    %232 = vector.broadcast %cst_48 : f32 to vector<2x128xf32>
    %233 = arith.addf %232, %231 : vector<2x128xf32>
    %cst_49 = arith.constant 5.000000e-01 : f32
    %234 = vector.broadcast %cst_49 : f32 to vector<2x128xf32>
    %235 = arith.mulf %234, %233 : vector<2x128xf32>
    %236 = math.tanh %228 : vector<2x128xf32>
    %237 = vector.extract_strided_slice %235 {offsets = [0, 0], sizes = [2, 32], strides = [1, 1]} : vector<2x128xf32> to vector<2x32xf32>
    %238 = vector.extract_strided_slice %235 {offsets = [0, 32], sizes = [2, 32], strides = [1, 1]} : vector<2x128xf32> to vector<2x32xf32>
    %239 = vector.extract_strided_slice %236 {offsets = [0, 64], sizes = [2, 32], strides = [1, 1]} : vector<2x128xf32> to vector<2x32xf32>
    %240 = vector.extract_strided_slice %235 {offsets = [0, 96], sizes = [2, 32], strides = [1, 1]} : vector<2x128xf32> to vector<2x32xf32>
    %241 = arith.mulf %238, %196 : vector<2x32xf32>
    %242 = arith.mulf %237, %239 : vector<2x32xf32>
    %243 = arith.addf %241, %242 : vector<2x32xf32>
    %244 = math.tanh %243 : vector<2x32xf32>
    %245 = arith.mulf %240, %244 : vector<2x32xf32>
    %cst_50 = arith.constant dense<0.000000e+00> : vector<2x128xf32>
    %246 = tpu.matmul %245, %8, %cst_50 {dimension_numbers = #tpu.dot_dimension_numbers<[1], [0], [0], [1], [0, 0, 1, 1], [], []>} : vector<2x32xf32>, vector<32x128xf32>, vector<2x128xf32> -> vector<2x128xf32>
    %247 = vector.extract_strided_slice %13 {offsets = [0, 4], sizes = [2, 1], strides = [1, 1]} : vector<2x16xf32> to vector<2x1xf32>
    %248 = vector.broadcast %247 : vector<2x1xf32> to vector<2x32xf32>
    %249 = arith.mulf %248, %245 : vector<2x32xf32>
    %250 = arith.addf %203, %249 : vector<2x32xf32>
    %251 = vector.extract_strided_slice %12 {offsets = [10, 0], sizes = [2, 128], strides = [1, 1]} : vector<32x128xf32> to vector<2x128xf32>
    %252 = arith.addf %251, %224 : vector<2x128xf32>
    %cst_51 = arith.constant 5.000000e-01 : f32
    %253 = vector.broadcast %cst_51 : f32 to vector<2x128xf32>
    %254 = arith.mulf %253, %252 : vector<2x128xf32>
    %255 = math.tanh %254 : vector<2x128xf32>
    %cst_52 = arith.constant 1.000000e+00 : f32
    %256 = vector.broadcast %cst_52 : f32 to vector<2x128xf32>
    %257 = arith.addf %256, %255 : vector<2x128xf32>
    %cst_53 = arith.constant 5.000000e-01 : f32
    %258 = vector.broadcast %cst_53 : f32 to vector<2x128xf32>
    %259 = arith.mulf %258, %257 : vector<2x128xf32>
    %260 = math.tanh %252 : vector<2x128xf32>
    %261 = vector.extract_strided_slice %259 {offsets = [0, 0], sizes = [2, 32], strides = [1, 1]} : vector<2x128xf32> to vector<2x32xf32>
    %262 = vector.extract_strided_slice %259 {offsets = [0, 32], sizes = [2, 32], strides = [1, 1]} : vector<2x128xf32> to vector<2x32xf32>
    %263 = vector.extract_strided_slice %260 {offsets = [0, 64], sizes = [2, 32], strides = [1, 1]} : vector<2x128xf32> to vector<2x32xf32>
    %264 = vector.extract_strided_slice %259 {offsets = [0, 96], sizes = [2, 32], strides = [1, 1]} : vector<2x128xf32> to vector<2x32xf32>
    %265 = arith.mulf %262, %220 : vector<2x32xf32>
    %266 = arith.mulf %261, %263 : vector<2x32xf32>
    %267 = arith.addf %265, %266 : vector<2x32xf32>
    %268 = math.tanh %267 : vector<2x32xf32>
    %269 = arith.mulf %264, %268 : vector<2x32xf32>
    %cst_54 = arith.constant dense<0.000000e+00> : vector<2x256xf32>
    %270 = tpu.matmul %269, %4, %cst_54 {dimension_numbers = #tpu.dot_dimension_numbers<[1], [0], [0], [1], [0, 0, 1, 1], [], []>} : vector<2x32xf32>, vector<32x256xf32>, vector<2x256xf32> -> vector<2x256xf32>
    %271 = vector.extract_strided_slice %270 {offsets = [0, 0], sizes = [2, 128], strides = [1, 1]} : vector<2x256xf32> to vector<2x128xf32>
    %272 = vector.extract_strided_slice %270 {offsets = [0, 128], sizes = [2, 128], strides = [1, 1]} : vector<2x256xf32> to vector<2x128xf32>
    %273 = arith.addf %272, %246 : vector<2x128xf32>
    %274 = vector.broadcast %6 : vector<1x128xf32> to vector<2x128xf32>
    %275 = arith.addf %273, %274 : vector<2x128xf32>
    %cst_55 = arith.constant 5.000000e-01 : f32
    %276 = vector.broadcast %cst_55 : f32 to vector<2x128xf32>
    %277 = arith.mulf %276, %275 : vector<2x128xf32>
    %278 = math.tanh %277 : vector<2x128xf32>
    %cst_56 = arith.constant 1.000000e+00 : f32
    %279 = vector.broadcast %cst_56 : f32 to vector<2x128xf32>
    %280 = arith.addf %279, %278 : vector<2x128xf32>
    %cst_57 = arith.constant 5.000000e-01 : f32
    %281 = vector.broadcast %cst_57 : f32 to vector<2x128xf32>
    %282 = arith.mulf %281, %280 : vector<2x128xf32>
    %283 = math.tanh %275 : vector<2x128xf32>
    %284 = vector.extract_strided_slice %282 {offsets = [0, 0], sizes = [2, 32], strides = [1, 1]} : vector<2x128xf32> to vector<2x32xf32>
    %285 = vector.extract_strided_slice %282 {offsets = [0, 32], sizes = [2, 32], strides = [1, 1]} : vector<2x128xf32> to vector<2x32xf32>
    %286 = vector.extract_strided_slice %283 {offsets = [0, 64], sizes = [2, 32], strides = [1, 1]} : vector<2x128xf32> to vector<2x32xf32>
    %287 = vector.extract_strided_slice %282 {offsets = [0, 96], sizes = [2, 32], strides = [1, 1]} : vector<2x128xf32> to vector<2x32xf32>
    %288 = arith.mulf %285, %243 : vector<2x32xf32>
    %289 = arith.mulf %284, %286 : vector<2x32xf32>
    %290 = arith.addf %288, %289 : vector<2x32xf32>
    %291 = math.tanh %290 : vector<2x32xf32>
    %292 = arith.mulf %287, %291 : vector<2x32xf32>
    %cst_58 = arith.constant dense<0.000000e+00> : vector<2x128xf32>
    %293 = tpu.matmul %292, %8, %cst_58 {dimension_numbers = #tpu.dot_dimension_numbers<[1], [0], [0], [1], [0, 0, 1, 1], [], []>} : vector<2x32xf32>, vector<32x128xf32>, vector<2x128xf32> -> vector<2x128xf32>
    %294 = vector.extract_strided_slice %13 {offsets = [0, 5], sizes = [2, 1], strides = [1, 1]} : vector<2x16xf32> to vector<2x1xf32>
    %295 = vector.broadcast %294 : vector<2x1xf32> to vector<2x32xf32>
    %296 = arith.mulf %295, %292 : vector<2x32xf32>
    %297 = arith.addf %250, %296 : vector<2x32xf32>
    %298 = vector.extract_strided_slice %12 {offsets = [12, 0], sizes = [2, 128], strides = [1, 1]} : vector<32x128xf32> to vector<2x128xf32>
    %299 = arith.addf %298, %271 : vector<2x128xf32>
    %cst_59 = arith.constant 5.000000e-01 : f32
    %300 = vector.broadcast %cst_59 : f32 to vector<2x128xf32>
    %301 = arith.mulf %300, %299 : vector<2x128xf32>
    %302 = math.tanh %301 : vector<2x128xf32>
    %cst_60 = arith.constant 1.000000e+00 : f32
    %303 = vector.broadcast %cst_60 : f32 to vector<2x128xf32>
    %304 = arith.addf %303, %302 : vector<2x128xf32>
    %cst_61 = arith.constant 5.000000e-01 : f32
    %305 = vector.broadcast %cst_61 : f32 to vector<2x128xf32>
    %306 = arith.mulf %305, %304 : vector<2x128xf32>
    %307 = math.tanh %299 : vector<2x128xf32>
    %308 = vector.extract_strided_slice %306 {offsets = [0, 0], sizes = [2, 32], strides = [1, 1]} : vector<2x128xf32> to vector<2x32xf32>
    %309 = vector.extract_strided_slice %306 {offsets = [0, 32], sizes = [2, 32], strides = [1, 1]} : vector<2x128xf32> to vector<2x32xf32>
    %310 = vector.extract_strided_slice %307 {offsets = [0, 64], sizes = [2, 32], strides = [1, 1]} : vector<2x128xf32> to vector<2x32xf32>
    %311 = vector.extract_strided_slice %306 {offsets = [0, 96], sizes = [2, 32], strides = [1, 1]} : vector<2x128xf32> to vector<2x32xf32>
    %312 = arith.mulf %309, %267 : vector<2x32xf32>
    %313 = arith.mulf %308, %310 : vector<2x32xf32>
    %314 = arith.addf %312, %313 : vector<2x32xf32>
    %315 = math.tanh %314 : vector<2x32xf32>
    %316 = arith.mulf %311, %315 : vector<2x32xf32>
    %cst_62 = arith.constant dense<0.000000e+00> : vector<2x256xf32>
    %317 = tpu.matmul %316, %4, %cst_62 {dimension_numbers = #tpu.dot_dimension_numbers<[1], [0], [0], [1], [0, 0, 1, 1], [], []>} : vector<2x32xf32>, vector<32x256xf32>, vector<2x256xf32> -> vector<2x256xf32>
    %318 = vector.extract_strided_slice %317 {offsets = [0, 0], sizes = [2, 128], strides = [1, 1]} : vector<2x256xf32> to vector<2x128xf32>
    %319 = vector.extract_strided_slice %317 {offsets = [0, 128], sizes = [2, 128], strides = [1, 1]} : vector<2x256xf32> to vector<2x128xf32>
    %320 = arith.addf %319, %293 : vector<2x128xf32>
    %321 = vector.broadcast %6 : vector<1x128xf32> to vector<2x128xf32>
    %322 = arith.addf %320, %321 : vector<2x128xf32>
    %cst_63 = arith.constant 5.000000e-01 : f32
    %323 = vector.broadcast %cst_63 : f32 to vector<2x128xf32>
    %324 = arith.mulf %323, %322 : vector<2x128xf32>
    %325 = math.tanh %324 : vector<2x128xf32>
    %cst_64 = arith.constant 1.000000e+00 : f32
    %326 = vector.broadcast %cst_64 : f32 to vector<2x128xf32>
    %327 = arith.addf %326, %325 : vector<2x128xf32>
    %cst_65 = arith.constant 5.000000e-01 : f32
    %328 = vector.broadcast %cst_65 : f32 to vector<2x128xf32>
    %329 = arith.mulf %328, %327 : vector<2x128xf32>
    %330 = math.tanh %322 : vector<2x128xf32>
    %331 = vector.extract_strided_slice %329 {offsets = [0, 0], sizes = [2, 32], strides = [1, 1]} : vector<2x128xf32> to vector<2x32xf32>
    %332 = vector.extract_strided_slice %329 {offsets = [0, 32], sizes = [2, 32], strides = [1, 1]} : vector<2x128xf32> to vector<2x32xf32>
    %333 = vector.extract_strided_slice %330 {offsets = [0, 64], sizes = [2, 32], strides = [1, 1]} : vector<2x128xf32> to vector<2x32xf32>
    %334 = vector.extract_strided_slice %329 {offsets = [0, 96], sizes = [2, 32], strides = [1, 1]} : vector<2x128xf32> to vector<2x32xf32>
    %335 = arith.mulf %332, %290 : vector<2x32xf32>
    %336 = arith.mulf %331, %333 : vector<2x32xf32>
    %337 = arith.addf %335, %336 : vector<2x32xf32>
    %338 = math.tanh %337 : vector<2x32xf32>
    %339 = arith.mulf %334, %338 : vector<2x32xf32>
    %cst_66 = arith.constant dense<0.000000e+00> : vector<2x128xf32>
    %340 = tpu.matmul %339, %8, %cst_66 {dimension_numbers = #tpu.dot_dimension_numbers<[1], [0], [0], [1], [0, 0, 1, 1], [], []>} : vector<2x32xf32>, vector<32x128xf32>, vector<2x128xf32> -> vector<2x128xf32>
    %341 = vector.extract_strided_slice %13 {offsets = [0, 6], sizes = [2, 1], strides = [1, 1]} : vector<2x16xf32> to vector<2x1xf32>
    %342 = vector.broadcast %341 : vector<2x1xf32> to vector<2x32xf32>
    %343 = arith.mulf %342, %339 : vector<2x32xf32>
    %344 = arith.addf %297, %343 : vector<2x32xf32>
    %345 = vector.extract_strided_slice %12 {offsets = [14, 0], sizes = [2, 128], strides = [1, 1]} : vector<32x128xf32> to vector<2x128xf32>
    %346 = arith.addf %345, %318 : vector<2x128xf32>
    %cst_67 = arith.constant 5.000000e-01 : f32
    %347 = vector.broadcast %cst_67 : f32 to vector<2x128xf32>
    %348 = arith.mulf %347, %346 : vector<2x128xf32>
    %349 = math.tanh %348 : vector<2x128xf32>
    %cst_68 = arith.constant 1.000000e+00 : f32
    %350 = vector.broadcast %cst_68 : f32 to vector<2x128xf32>
    %351 = arith.addf %350, %349 : vector<2x128xf32>
    %cst_69 = arith.constant 5.000000e-01 : f32
    %352 = vector.broadcast %cst_69 : f32 to vector<2x128xf32>
    %353 = arith.mulf %352, %351 : vector<2x128xf32>
    %354 = math.tanh %346 : vector<2x128xf32>
    %355 = vector.extract_strided_slice %353 {offsets = [0, 0], sizes = [2, 32], strides = [1, 1]} : vector<2x128xf32> to vector<2x32xf32>
    %356 = vector.extract_strided_slice %353 {offsets = [0, 32], sizes = [2, 32], strides = [1, 1]} : vector<2x128xf32> to vector<2x32xf32>
    %357 = vector.extract_strided_slice %354 {offsets = [0, 64], sizes = [2, 32], strides = [1, 1]} : vector<2x128xf32> to vector<2x32xf32>
    %358 = vector.extract_strided_slice %353 {offsets = [0, 96], sizes = [2, 32], strides = [1, 1]} : vector<2x128xf32> to vector<2x32xf32>
    %359 = arith.mulf %356, %314 : vector<2x32xf32>
    %360 = arith.mulf %355, %357 : vector<2x32xf32>
    %361 = arith.addf %359, %360 : vector<2x32xf32>
    %362 = math.tanh %361 : vector<2x32xf32>
    %363 = arith.mulf %358, %362 : vector<2x32xf32>
    %cst_70 = arith.constant dense<0.000000e+00> : vector<2x256xf32>
    %364 = tpu.matmul %363, %4, %cst_70 {dimension_numbers = #tpu.dot_dimension_numbers<[1], [0], [0], [1], [0, 0, 1, 1], [], []>} : vector<2x32xf32>, vector<32x256xf32>, vector<2x256xf32> -> vector<2x256xf32>
    %365 = vector.extract_strided_slice %364 {offsets = [0, 0], sizes = [2, 128], strides = [1, 1]} : vector<2x256xf32> to vector<2x128xf32>
    %366 = vector.extract_strided_slice %364 {offsets = [0, 128], sizes = [2, 128], strides = [1, 1]} : vector<2x256xf32> to vector<2x128xf32>
    %367 = arith.addf %366, %340 : vector<2x128xf32>
    %368 = vector.broadcast %6 : vector<1x128xf32> to vector<2x128xf32>
    %369 = arith.addf %367, %368 : vector<2x128xf32>
    %cst_71 = arith.constant 5.000000e-01 : f32
    %370 = vector.broadcast %cst_71 : f32 to vector<2x128xf32>
    %371 = arith.mulf %370, %369 : vector<2x128xf32>
    %372 = math.tanh %371 : vector<2x128xf32>
    %cst_72 = arith.constant 1.000000e+00 : f32
    %373 = vector.broadcast %cst_72 : f32 to vector<2x128xf32>
    %374 = arith.addf %373, %372 : vector<2x128xf32>
    %cst_73 = arith.constant 5.000000e-01 : f32
    %375 = vector.broadcast %cst_73 : f32 to vector<2x128xf32>
    %376 = arith.mulf %375, %374 : vector<2x128xf32>
    %377 = math.tanh %369 : vector<2x128xf32>
    %378 = vector.extract_strided_slice %376 {offsets = [0, 0], sizes = [2, 32], strides = [1, 1]} : vector<2x128xf32> to vector<2x32xf32>
    %379 = vector.extract_strided_slice %376 {offsets = [0, 32], sizes = [2, 32], strides = [1, 1]} : vector<2x128xf32> to vector<2x32xf32>
    %380 = vector.extract_strided_slice %377 {offsets = [0, 64], sizes = [2, 32], strides = [1, 1]} : vector<2x128xf32> to vector<2x32xf32>
    %381 = vector.extract_strided_slice %376 {offsets = [0, 96], sizes = [2, 32], strides = [1, 1]} : vector<2x128xf32> to vector<2x32xf32>
    %382 = arith.mulf %379, %337 : vector<2x32xf32>
    %383 = arith.mulf %378, %380 : vector<2x32xf32>
    %384 = arith.addf %382, %383 : vector<2x32xf32>
    %385 = math.tanh %384 : vector<2x32xf32>
    %386 = arith.mulf %381, %385 : vector<2x32xf32>
    %cst_74 = arith.constant dense<0.000000e+00> : vector<2x128xf32>
    %387 = tpu.matmul %386, %8, %cst_74 {dimension_numbers = #tpu.dot_dimension_numbers<[1], [0], [0], [1], [0, 0, 1, 1], [], []>} : vector<2x32xf32>, vector<32x128xf32>, vector<2x128xf32> -> vector<2x128xf32>
    %388 = vector.extract_strided_slice %13 {offsets = [0, 7], sizes = [2, 1], strides = [1, 1]} : vector<2x16xf32> to vector<2x1xf32>
    %389 = vector.broadcast %388 : vector<2x1xf32> to vector<2x32xf32>
    %390 = arith.mulf %389, %386 : vector<2x32xf32>
    %391 = arith.addf %344, %390 : vector<2x32xf32>
    %392 = vector.extract_strided_slice %12 {offsets = [16, 0], sizes = [2, 128], strides = [1, 1]} : vector<32x128xf32> to vector<2x128xf32>
    %393 = arith.addf %392, %365 : vector<2x128xf32>
    %cst_75 = arith.constant 5.000000e-01 : f32
    %394 = vector.broadcast %cst_75 : f32 to vector<2x128xf32>
    %395 = arith.mulf %394, %393 : vector<2x128xf32>
    %396 = math.tanh %395 : vector<2x128xf32>
    %cst_76 = arith.constant 1.000000e+00 : f32
    %397 = vector.broadcast %cst_76 : f32 to vector<2x128xf32>
    %398 = arith.addf %397, %396 : vector<2x128xf32>
    %cst_77 = arith.constant 5.000000e-01 : f32
    %399 = vector.broadcast %cst_77 : f32 to vector<2x128xf32>
    %400 = arith.mulf %399, %398 : vector<2x128xf32>
    %401 = math.tanh %393 : vector<2x128xf32>
    %402 = vector.extract_strided_slice %400 {offsets = [0, 0], sizes = [2, 32], strides = [1, 1]} : vector<2x128xf32> to vector<2x32xf32>
    %403 = vector.extract_strided_slice %400 {offsets = [0, 32], sizes = [2, 32], strides = [1, 1]} : vector<2x128xf32> to vector<2x32xf32>
    %404 = vector.extract_strided_slice %401 {offsets = [0, 64], sizes = [2, 32], strides = [1, 1]} : vector<2x128xf32> to vector<2x32xf32>
    %405 = vector.extract_strided_slice %400 {offsets = [0, 96], sizes = [2, 32], strides = [1, 1]} : vector<2x128xf32> to vector<2x32xf32>
    %406 = arith.mulf %403, %361 : vector<2x32xf32>
    %407 = arith.mulf %402, %404 : vector<2x32xf32>
    %408 = arith.addf %406, %407 : vector<2x32xf32>
    %409 = math.tanh %408 : vector<2x32xf32>
    %410 = arith.mulf %405, %409 : vector<2x32xf32>
    %cst_78 = arith.constant dense<0.000000e+00> : vector<2x256xf32>
    %411 = tpu.matmul %410, %4, %cst_78 {dimension_numbers = #tpu.dot_dimension_numbers<[1], [0], [0], [1], [0, 0, 1, 1], [], []>} : vector<2x32xf32>, vector<32x256xf32>, vector<2x256xf32> -> vector<2x256xf32>
    %412 = vector.extract_strided_slice %411 {offsets = [0, 0], sizes = [2, 128], strides = [1, 1]} : vector<2x256xf32> to vector<2x128xf32>
    %413 = vector.extract_strided_slice %411 {offsets = [0, 128], sizes = [2, 128], strides = [1, 1]} : vector<2x256xf32> to vector<2x128xf32>
    %414 = arith.addf %413, %387 : vector<2x128xf32>
    %415 = vector.broadcast %6 : vector<1x128xf32> to vector<2x128xf32>
    %416 = arith.addf %414, %415 : vector<2x128xf32>
    %cst_79 = arith.constant 5.000000e-01 : f32
    %417 = vector.broadcast %cst_79 : f32 to vector<2x128xf32>
    %418 = arith.mulf %417, %416 : vector<2x128xf32>
    %419 = math.tanh %418 : vector<2x128xf32>
    %cst_80 = arith.constant 1.000000e+00 : f32
    %420 = vector.broadcast %cst_80 : f32 to vector<2x128xf32>
    %421 = arith.addf %420, %419 : vector<2x128xf32>
    %cst_81 = arith.constant 5.000000e-01 : f32
    %422 = vector.broadcast %cst_81 : f32 to vector<2x128xf32>
    %423 = arith.mulf %422, %421 : vector<2x128xf32>
    %424 = math.tanh %416 : vector<2x128xf32>
    %425 = vector.extract_strided_slice %423 {offsets = [0, 0], sizes = [2, 32], strides = [1, 1]} : vector<2x128xf32> to vector<2x32xf32>
    %426 = vector.extract_strided_slice %423 {offsets = [0, 32], sizes = [2, 32], strides = [1, 1]} : vector<2x128xf32> to vector<2x32xf32>
    %427 = vector.extract_strided_slice %424 {offsets = [0, 64], sizes = [2, 32], strides = [1, 1]} : vector<2x128xf32> to vector<2x32xf32>
    %428 = vector.extract_strided_slice %423 {offsets = [0, 96], sizes = [2, 32], strides = [1, 1]} : vector<2x128xf32> to vector<2x32xf32>
    %429 = arith.mulf %426, %384 : vector<2x32xf32>
    %430 = arith.mulf %425, %427 : vector<2x32xf32>
    %431 = arith.addf %429, %430 : vector<2x32xf32>
    %432 = math.tanh %431 : vector<2x32xf32>
    %433 = arith.mulf %428, %432 : vector<2x32xf32>
    %cst_82 = arith.constant dense<0.000000e+00> : vector<2x128xf32>
    %434 = tpu.matmul %433, %8, %cst_82 {dimension_numbers = #tpu.dot_dimension_numbers<[1], [0], [0], [1], [0, 0, 1, 1], [], []>} : vector<2x32xf32>, vector<32x128xf32>, vector<2x128xf32> -> vector<2x128xf32>
    %435 = vector.extract_strided_slice %13 {offsets = [0, 8], sizes = [2, 1], strides = [1, 1]} : vector<2x16xf32> to vector<2x1xf32>
    %436 = vector.broadcast %435 : vector<2x1xf32> to vector<2x32xf32>
    %437 = arith.mulf %436, %433 : vector<2x32xf32>
    %438 = arith.addf %391, %437 : vector<2x32xf32>
    %439 = vector.extract_strided_slice %12 {offsets = [18, 0], sizes = [2, 128], strides = [1, 1]} : vector<32x128xf32> to vector<2x128xf32>
    %440 = arith.addf %439, %412 : vector<2x128xf32>
    %cst_83 = arith.constant 5.000000e-01 : f32
    %441 = vector.broadcast %cst_83 : f32 to vector<2x128xf32>
    %442 = arith.mulf %441, %440 : vector<2x128xf32>
    %443 = math.tanh %442 : vector<2x128xf32>
    %cst_84 = arith.constant 1.000000e+00 : f32
    %444 = vector.broadcast %cst_84 : f32 to vector<2x128xf32>
    %445 = arith.addf %444, %443 : vector<2x128xf32>
    %cst_85 = arith.constant 5.000000e-01 : f32
    %446 = vector.broadcast %cst_85 : f32 to vector<2x128xf32>
    %447 = arith.mulf %446, %445 : vector<2x128xf32>
    %448 = math.tanh %440 : vector<2x128xf32>
    %449 = vector.extract_strided_slice %447 {offsets = [0, 0], sizes = [2, 32], strides = [1, 1]} : vector<2x128xf32> to vector<2x32xf32>
    %450 = vector.extract_strided_slice %447 {offsets = [0, 32], sizes = [2, 32], strides = [1, 1]} : vector<2x128xf32> to vector<2x32xf32>
    %451 = vector.extract_strided_slice %448 {offsets = [0, 64], sizes = [2, 32], strides = [1, 1]} : vector<2x128xf32> to vector<2x32xf32>
    %452 = vector.extract_strided_slice %447 {offsets = [0, 96], sizes = [2, 32], strides = [1, 1]} : vector<2x128xf32> to vector<2x32xf32>
    %453 = arith.mulf %450, %408 : vector<2x32xf32>
    %454 = arith.mulf %449, %451 : vector<2x32xf32>
    %455 = arith.addf %453, %454 : vector<2x32xf32>
    %456 = math.tanh %455 : vector<2x32xf32>
    %457 = arith.mulf %452, %456 : vector<2x32xf32>
    %cst_86 = arith.constant dense<0.000000e+00> : vector<2x256xf32>
    %458 = tpu.matmul %457, %4, %cst_86 {dimension_numbers = #tpu.dot_dimension_numbers<[1], [0], [0], [1], [0, 0, 1, 1], [], []>} : vector<2x32xf32>, vector<32x256xf32>, vector<2x256xf32> -> vector<2x256xf32>
    %459 = vector.extract_strided_slice %458 {offsets = [0, 0], sizes = [2, 128], strides = [1, 1]} : vector<2x256xf32> to vector<2x128xf32>
    %460 = vector.extract_strided_slice %458 {offsets = [0, 128], sizes = [2, 128], strides = [1, 1]} : vector<2x256xf32> to vector<2x128xf32>
    %461 = arith.addf %460, %434 : vector<2x128xf32>
    %462 = vector.broadcast %6 : vector<1x128xf32> to vector<2x128xf32>
    %463 = arith.addf %461, %462 : vector<2x128xf32>
    %cst_87 = arith.constant 5.000000e-01 : f32
    %464 = vector.broadcast %cst_87 : f32 to vector<2x128xf32>
    %465 = arith.mulf %464, %463 : vector<2x128xf32>
    %466 = math.tanh %465 : vector<2x128xf32>
    %cst_88 = arith.constant 1.000000e+00 : f32
    %467 = vector.broadcast %cst_88 : f32 to vector<2x128xf32>
    %468 = arith.addf %467, %466 : vector<2x128xf32>
    %cst_89 = arith.constant 5.000000e-01 : f32
    %469 = vector.broadcast %cst_89 : f32 to vector<2x128xf32>
    %470 = arith.mulf %469, %468 : vector<2x128xf32>
    %471 = math.tanh %463 : vector<2x128xf32>
    %472 = vector.extract_strided_slice %470 {offsets = [0, 0], sizes = [2, 32], strides = [1, 1]} : vector<2x128xf32> to vector<2x32xf32>
    %473 = vector.extract_strided_slice %470 {offsets = [0, 32], sizes = [2, 32], strides = [1, 1]} : vector<2x128xf32> to vector<2x32xf32>
    %474 = vector.extract_strided_slice %471 {offsets = [0, 64], sizes = [2, 32], strides = [1, 1]} : vector<2x128xf32> to vector<2x32xf32>
    %475 = vector.extract_strided_slice %470 {offsets = [0, 96], sizes = [2, 32], strides = [1, 1]} : vector<2x128xf32> to vector<2x32xf32>
    %476 = arith.mulf %473, %431 : vector<2x32xf32>
    %477 = arith.mulf %472, %474 : vector<2x32xf32>
    %478 = arith.addf %476, %477 : vector<2x32xf32>
    %479 = math.tanh %478 : vector<2x32xf32>
    %480 = arith.mulf %475, %479 : vector<2x32xf32>
    %cst_90 = arith.constant dense<0.000000e+00> : vector<2x128xf32>
    %481 = tpu.matmul %480, %8, %cst_90 {dimension_numbers = #tpu.dot_dimension_numbers<[1], [0], [0], [1], [0, 0, 1, 1], [], []>} : vector<2x32xf32>, vector<32x128xf32>, vector<2x128xf32> -> vector<2x128xf32>
    %482 = vector.extract_strided_slice %13 {offsets = [0, 9], sizes = [2, 1], strides = [1, 1]} : vector<2x16xf32> to vector<2x1xf32>
    %483 = vector.broadcast %482 : vector<2x1xf32> to vector<2x32xf32>
    %484 = arith.mulf %483, %480 : vector<2x32xf32>
    %485 = arith.addf %438, %484 : vector<2x32xf32>
    %486 = vector.extract_strided_slice %12 {offsets = [20, 0], sizes = [2, 128], strides = [1, 1]} : vector<32x128xf32> to vector<2x128xf32>
    %487 = arith.addf %486, %459 : vector<2x128xf32>
    %cst_91 = arith.constant 5.000000e-01 : f32
    %488 = vector.broadcast %cst_91 : f32 to vector<2x128xf32>
    %489 = arith.mulf %488, %487 : vector<2x128xf32>
    %490 = math.tanh %489 : vector<2x128xf32>
    %cst_92 = arith.constant 1.000000e+00 : f32
    %491 = vector.broadcast %cst_92 : f32 to vector<2x128xf32>
    %492 = arith.addf %491, %490 : vector<2x128xf32>
    %cst_93 = arith.constant 5.000000e-01 : f32
    %493 = vector.broadcast %cst_93 : f32 to vector<2x128xf32>
    %494 = arith.mulf %493, %492 : vector<2x128xf32>
    %495 = math.tanh %487 : vector<2x128xf32>
    %496 = vector.extract_strided_slice %494 {offsets = [0, 0], sizes = [2, 32], strides = [1, 1]} : vector<2x128xf32> to vector<2x32xf32>
    %497 = vector.extract_strided_slice %494 {offsets = [0, 32], sizes = [2, 32], strides = [1, 1]} : vector<2x128xf32> to vector<2x32xf32>
    %498 = vector.extract_strided_slice %495 {offsets = [0, 64], sizes = [2, 32], strides = [1, 1]} : vector<2x128xf32> to vector<2x32xf32>
    %499 = vector.extract_strided_slice %494 {offsets = [0, 96], sizes = [2, 32], strides = [1, 1]} : vector<2x128xf32> to vector<2x32xf32>
    %500 = arith.mulf %497, %455 : vector<2x32xf32>
    %501 = arith.mulf %496, %498 : vector<2x32xf32>
    %502 = arith.addf %500, %501 : vector<2x32xf32>
    %503 = math.tanh %502 : vector<2x32xf32>
    %504 = arith.mulf %499, %503 : vector<2x32xf32>
    %cst_94 = arith.constant dense<0.000000e+00> : vector<2x256xf32>
    %505 = tpu.matmul %504, %4, %cst_94 {dimension_numbers = #tpu.dot_dimension_numbers<[1], [0], [0], [1], [0, 0, 1, 1], [], []>} : vector<2x32xf32>, vector<32x256xf32>, vector<2x256xf32> -> vector<2x256xf32>
    %506 = vector.extract_strided_slice %505 {offsets = [0, 0], sizes = [2, 128], strides = [1, 1]} : vector<2x256xf32> to vector<2x128xf32>
    %507 = vector.extract_strided_slice %505 {offsets = [0, 128], sizes = [2, 128], strides = [1, 1]} : vector<2x256xf32> to vector<2x128xf32>
    %508 = arith.addf %507, %481 : vector<2x128xf32>
    %509 = vector.broadcast %6 : vector<1x128xf32> to vector<2x128xf32>
    %510 = arith.addf %508, %509 : vector<2x128xf32>
    %cst_95 = arith.constant 5.000000e-01 : f32
    %511 = vector.broadcast %cst_95 : f32 to vector<2x128xf32>
    %512 = arith.mulf %511, %510 : vector<2x128xf32>
    %513 = math.tanh %512 : vector<2x128xf32>
    %cst_96 = arith.constant 1.000000e+00 : f32
    %514 = vector.broadcast %cst_96 : f32 to vector<2x128xf32>
    %515 = arith.addf %514, %513 : vector<2x128xf32>
    %cst_97 = arith.constant 5.000000e-01 : f32
    %516 = vector.broadcast %cst_97 : f32 to vector<2x128xf32>
    %517 = arith.mulf %516, %515 : vector<2x128xf32>
    %518 = math.tanh %510 : vector<2x128xf32>
    %519 = vector.extract_strided_slice %517 {offsets = [0, 0], sizes = [2, 32], strides = [1, 1]} : vector<2x128xf32> to vector<2x32xf32>
    %520 = vector.extract_strided_slice %517 {offsets = [0, 32], sizes = [2, 32], strides = [1, 1]} : vector<2x128xf32> to vector<2x32xf32>
    %521 = vector.extract_strided_slice %518 {offsets = [0, 64], sizes = [2, 32], strides = [1, 1]} : vector<2x128xf32> to vector<2x32xf32>
    %522 = vector.extract_strided_slice %517 {offsets = [0, 96], sizes = [2, 32], strides = [1, 1]} : vector<2x128xf32> to vector<2x32xf32>
    %523 = arith.mulf %520, %478 : vector<2x32xf32>
    %524 = arith.mulf %519, %521 : vector<2x32xf32>
    %525 = arith.addf %523, %524 : vector<2x32xf32>
    %526 = math.tanh %525 : vector<2x32xf32>
    %527 = arith.mulf %522, %526 : vector<2x32xf32>
    %cst_98 = arith.constant dense<0.000000e+00> : vector<2x128xf32>
    %528 = tpu.matmul %527, %8, %cst_98 {dimension_numbers = #tpu.dot_dimension_numbers<[1], [0], [0], [1], [0, 0, 1, 1], [], []>} : vector<2x32xf32>, vector<32x128xf32>, vector<2x128xf32> -> vector<2x128xf32>
    %529 = vector.extract_strided_slice %13 {offsets = [0, 10], sizes = [2, 1], strides = [1, 1]} : vector<2x16xf32> to vector<2x1xf32>
    %530 = vector.broadcast %529 : vector<2x1xf32> to vector<2x32xf32>
    %531 = arith.mulf %530, %527 : vector<2x32xf32>
    %532 = arith.addf %485, %531 : vector<2x32xf32>
    %533 = vector.extract_strided_slice %12 {offsets = [22, 0], sizes = [2, 128], strides = [1, 1]} : vector<32x128xf32> to vector<2x128xf32>
    %534 = arith.addf %533, %506 : vector<2x128xf32>
    %cst_99 = arith.constant 5.000000e-01 : f32
    %535 = vector.broadcast %cst_99 : f32 to vector<2x128xf32>
    %536 = arith.mulf %535, %534 : vector<2x128xf32>
    %537 = math.tanh %536 : vector<2x128xf32>
    %cst_100 = arith.constant 1.000000e+00 : f32
    %538 = vector.broadcast %cst_100 : f32 to vector<2x128xf32>
    %539 = arith.addf %538, %537 : vector<2x128xf32>
    %cst_101 = arith.constant 5.000000e-01 : f32
    %540 = vector.broadcast %cst_101 : f32 to vector<2x128xf32>
    %541 = arith.mulf %540, %539 : vector<2x128xf32>
    %542 = math.tanh %534 : vector<2x128xf32>
    %543 = vector.extract_strided_slice %541 {offsets = [0, 0], sizes = [2, 32], strides = [1, 1]} : vector<2x128xf32> to vector<2x32xf32>
    %544 = vector.extract_strided_slice %541 {offsets = [0, 32], sizes = [2, 32], strides = [1, 1]} : vector<2x128xf32> to vector<2x32xf32>
    %545 = vector.extract_strided_slice %542 {offsets = [0, 64], sizes = [2, 32], strides = [1, 1]} : vector<2x128xf32> to vector<2x32xf32>
    %546 = vector.extract_strided_slice %541 {offsets = [0, 96], sizes = [2, 32], strides = [1, 1]} : vector<2x128xf32> to vector<2x32xf32>
    %547 = arith.mulf %544, %502 : vector<2x32xf32>
    %548 = arith.mulf %543, %545 : vector<2x32xf32>
    %549 = arith.addf %547, %548 : vector<2x32xf32>
    %550 = math.tanh %549 : vector<2x32xf32>
    %551 = arith.mulf %546, %550 : vector<2x32xf32>
    %cst_102 = arith.constant dense<0.000000e+00> : vector<2x256xf32>
    %552 = tpu.matmul %551, %4, %cst_102 {dimension_numbers = #tpu.dot_dimension_numbers<[1], [0], [0], [1], [0, 0, 1, 1], [], []>} : vector<2x32xf32>, vector<32x256xf32>, vector<2x256xf32> -> vector<2x256xf32>
    %553 = vector.extract_strided_slice %552 {offsets = [0, 0], sizes = [2, 128], strides = [1, 1]} : vector<2x256xf32> to vector<2x128xf32>
    %554 = vector.extract_strided_slice %552 {offsets = [0, 128], sizes = [2, 128], strides = [1, 1]} : vector<2x256xf32> to vector<2x128xf32>
    %555 = arith.addf %554, %528 : vector<2x128xf32>
    %556 = vector.broadcast %6 : vector<1x128xf32> to vector<2x128xf32>
    %557 = arith.addf %555, %556 : vector<2x128xf32>
    %cst_103 = arith.constant 5.000000e-01 : f32
    %558 = vector.broadcast %cst_103 : f32 to vector<2x128xf32>
    %559 = arith.mulf %558, %557 : vector<2x128xf32>
    %560 = math.tanh %559 : vector<2x128xf32>
    %cst_104 = arith.constant 1.000000e+00 : f32
    %561 = vector.broadcast %cst_104 : f32 to vector<2x128xf32>
    %562 = arith.addf %561, %560 : vector<2x128xf32>
    %cst_105 = arith.constant 5.000000e-01 : f32
    %563 = vector.broadcast %cst_105 : f32 to vector<2x128xf32>
    %564 = arith.mulf %563, %562 : vector<2x128xf32>
    %565 = math.tanh %557 : vector<2x128xf32>
    %566 = vector.extract_strided_slice %564 {offsets = [0, 0], sizes = [2, 32], strides = [1, 1]} : vector<2x128xf32> to vector<2x32xf32>
    %567 = vector.extract_strided_slice %564 {offsets = [0, 32], sizes = [2, 32], strides = [1, 1]} : vector<2x128xf32> to vector<2x32xf32>
    %568 = vector.extract_strided_slice %565 {offsets = [0, 64], sizes = [2, 32], strides = [1, 1]} : vector<2x128xf32> to vector<2x32xf32>
    %569 = vector.extract_strided_slice %564 {offsets = [0, 96], sizes = [2, 32], strides = [1, 1]} : vector<2x128xf32> to vector<2x32xf32>
    %570 = arith.mulf %567, %525 : vector<2x32xf32>
    %571 = arith.mulf %566, %568 : vector<2x32xf32>
    %572 = arith.addf %570, %571 : vector<2x32xf32>
    %573 = math.tanh %572 : vector<2x32xf32>
    %574 = arith.mulf %569, %573 : vector<2x32xf32>
    %cst_106 = arith.constant dense<0.000000e+00> : vector<2x128xf32>
    %575 = tpu.matmul %574, %8, %cst_106 {dimension_numbers = #tpu.dot_dimension_numbers<[1], [0], [0], [1], [0, 0, 1, 1], [], []>} : vector<2x32xf32>, vector<32x128xf32>, vector<2x128xf32> -> vector<2x128xf32>
    %576 = vector.extract_strided_slice %13 {offsets = [0, 11], sizes = [2, 1], strides = [1, 1]} : vector<2x16xf32> to vector<2x1xf32>
    %577 = vector.broadcast %576 : vector<2x1xf32> to vector<2x32xf32>
    %578 = arith.mulf %577, %574 : vector<2x32xf32>
    %579 = arith.addf %532, %578 : vector<2x32xf32>
    %580 = vector.extract_strided_slice %12 {offsets = [24, 0], sizes = [2, 128], strides = [1, 1]} : vector<32x128xf32> to vector<2x128xf32>
    %581 = arith.addf %580, %553 : vector<2x128xf32>
    %cst_107 = arith.constant 5.000000e-01 : f32
    %582 = vector.broadcast %cst_107 : f32 to vector<2x128xf32>
    %583 = arith.mulf %582, %581 : vector<2x128xf32>
    %584 = math.tanh %583 : vector<2x128xf32>
    %cst_108 = arith.constant 1.000000e+00 : f32
    %585 = vector.broadcast %cst_108 : f32 to vector<2x128xf32>
    %586 = arith.addf %585, %584 : vector<2x128xf32>
    %cst_109 = arith.constant 5.000000e-01 : f32
    %587 = vector.broadcast %cst_109 : f32 to vector<2x128xf32>
    %588 = arith.mulf %587, %586 : vector<2x128xf32>
    %589 = math.tanh %581 : vector<2x128xf32>
    %590 = vector.extract_strided_slice %588 {offsets = [0, 0], sizes = [2, 32], strides = [1, 1]} : vector<2x128xf32> to vector<2x32xf32>
    %591 = vector.extract_strided_slice %588 {offsets = [0, 32], sizes = [2, 32], strides = [1, 1]} : vector<2x128xf32> to vector<2x32xf32>
    %592 = vector.extract_strided_slice %589 {offsets = [0, 64], sizes = [2, 32], strides = [1, 1]} : vector<2x128xf32> to vector<2x32xf32>
    %593 = vector.extract_strided_slice %588 {offsets = [0, 96], sizes = [2, 32], strides = [1, 1]} : vector<2x128xf32> to vector<2x32xf32>
    %594 = arith.mulf %591, %549 : vector<2x32xf32>
    %595 = arith.mulf %590, %592 : vector<2x32xf32>
    %596 = arith.addf %594, %595 : vector<2x32xf32>
    %597 = math.tanh %596 : vector<2x32xf32>
    %598 = arith.mulf %593, %597 : vector<2x32xf32>
    %cst_110 = arith.constant dense<0.000000e+00> : vector<2x256xf32>
    %599 = tpu.matmul %598, %4, %cst_110 {dimension_numbers = #tpu.dot_dimension_numbers<[1], [0], [0], [1], [0, 0, 1, 1], [], []>} : vector<2x32xf32>, vector<32x256xf32>, vector<2x256xf32> -> vector<2x256xf32>
    %600 = vector.extract_strided_slice %599 {offsets = [0, 0], sizes = [2, 128], strides = [1, 1]} : vector<2x256xf32> to vector<2x128xf32>
    %601 = vector.extract_strided_slice %599 {offsets = [0, 128], sizes = [2, 128], strides = [1, 1]} : vector<2x256xf32> to vector<2x128xf32>
    %602 = arith.addf %601, %575 : vector<2x128xf32>
    %603 = vector.broadcast %6 : vector<1x128xf32> to vector<2x128xf32>
    %604 = arith.addf %602, %603 : vector<2x128xf32>
    %cst_111 = arith.constant 5.000000e-01 : f32
    %605 = vector.broadcast %cst_111 : f32 to vector<2x128xf32>
    %606 = arith.mulf %605, %604 : vector<2x128xf32>
    %607 = math.tanh %606 : vector<2x128xf32>
    %cst_112 = arith.constant 1.000000e+00 : f32
    %608 = vector.broadcast %cst_112 : f32 to vector<2x128xf32>
    %609 = arith.addf %608, %607 : vector<2x128xf32>
    %cst_113 = arith.constant 5.000000e-01 : f32
    %610 = vector.broadcast %cst_113 : f32 to vector<2x128xf32>
    %611 = arith.mulf %610, %609 : vector<2x128xf32>
    %612 = math.tanh %604 : vector<2x128xf32>
    %613 = vector.extract_strided_slice %611 {offsets = [0, 0], sizes = [2, 32], strides = [1, 1]} : vector<2x128xf32> to vector<2x32xf32>
    %614 = vector.extract_strided_slice %611 {offsets = [0, 32], sizes = [2, 32], strides = [1, 1]} : vector<2x128xf32> to vector<2x32xf32>
    %615 = vector.extract_strided_slice %612 {offsets = [0, 64], sizes = [2, 32], strides = [1, 1]} : vector<2x128xf32> to vector<2x32xf32>
    %616 = vector.extract_strided_slice %611 {offsets = [0, 96], sizes = [2, 32], strides = [1, 1]} : vector<2x128xf32> to vector<2x32xf32>
    %617 = arith.mulf %614, %572 : vector<2x32xf32>
    %618 = arith.mulf %613, %615 : vector<2x32xf32>
    %619 = arith.addf %617, %618 : vector<2x32xf32>
    %620 = math.tanh %619 : vector<2x32xf32>
    %621 = arith.mulf %616, %620 : vector<2x32xf32>
    %cst_114 = arith.constant dense<0.000000e+00> : vector<2x128xf32>
    %622 = tpu.matmul %621, %8, %cst_114 {dimension_numbers = #tpu.dot_dimension_numbers<[1], [0], [0], [1], [0, 0, 1, 1], [], []>} : vector<2x32xf32>, vector<32x128xf32>, vector<2x128xf32> -> vector<2x128xf32>
    %623 = vector.extract_strided_slice %13 {offsets = [0, 12], sizes = [2, 1], strides = [1, 1]} : vector<2x16xf32> to vector<2x1xf32>
    %624 = vector.broadcast %623 : vector<2x1xf32> to vector<2x32xf32>
    %625 = arith.mulf %624, %621 : vector<2x32xf32>
    %626 = arith.addf %579, %625 : vector<2x32xf32>
    %627 = vector.extract_strided_slice %12 {offsets = [26, 0], sizes = [2, 128], strides = [1, 1]} : vector<32x128xf32> to vector<2x128xf32>
    %628 = arith.addf %627, %600 : vector<2x128xf32>
    %cst_115 = arith.constant 5.000000e-01 : f32
    %629 = vector.broadcast %cst_115 : f32 to vector<2x128xf32>
    %630 = arith.mulf %629, %628 : vector<2x128xf32>
    %631 = math.tanh %630 : vector<2x128xf32>
    %cst_116 = arith.constant 1.000000e+00 : f32
    %632 = vector.broadcast %cst_116 : f32 to vector<2x128xf32>
    %633 = arith.addf %632, %631 : vector<2x128xf32>
    %cst_117 = arith.constant 5.000000e-01 : f32
    %634 = vector.broadcast %cst_117 : f32 to vector<2x128xf32>
    %635 = arith.mulf %634, %633 : vector<2x128xf32>
    %636 = math.tanh %628 : vector<2x128xf32>
    %637 = vector.extract_strided_slice %635 {offsets = [0, 0], sizes = [2, 32], strides = [1, 1]} : vector<2x128xf32> to vector<2x32xf32>
    %638 = vector.extract_strided_slice %635 {offsets = [0, 32], sizes = [2, 32], strides = [1, 1]} : vector<2x128xf32> to vector<2x32xf32>
    %639 = vector.extract_strided_slice %636 {offsets = [0, 64], sizes = [2, 32], strides = [1, 1]} : vector<2x128xf32> to vector<2x32xf32>
    %640 = vector.extract_strided_slice %635 {offsets = [0, 96], sizes = [2, 32], strides = [1, 1]} : vector<2x128xf32> to vector<2x32xf32>
    %641 = arith.mulf %638, %596 : vector<2x32xf32>
    %642 = arith.mulf %637, %639 : vector<2x32xf32>
    %643 = arith.addf %641, %642 : vector<2x32xf32>
    %644 = math.tanh %643 : vector<2x32xf32>
    %645 = arith.mulf %640, %644 : vector<2x32xf32>
    %cst_118 = arith.constant dense<0.000000e+00> : vector<2x256xf32>
    %646 = tpu.matmul %645, %4, %cst_118 {dimension_numbers = #tpu.dot_dimension_numbers<[1], [0], [0], [1], [0, 0, 1, 1], [], []>} : vector<2x32xf32>, vector<32x256xf32>, vector<2x256xf32> -> vector<2x256xf32>
    %647 = vector.extract_strided_slice %646 {offsets = [0, 0], sizes = [2, 128], strides = [1, 1]} : vector<2x256xf32> to vector<2x128xf32>
    %648 = vector.extract_strided_slice %646 {offsets = [0, 128], sizes = [2, 128], strides = [1, 1]} : vector<2x256xf32> to vector<2x128xf32>
    %649 = arith.addf %648, %622 : vector<2x128xf32>
    %650 = vector.broadcast %6 : vector<1x128xf32> to vector<2x128xf32>
    %651 = arith.addf %649, %650 : vector<2x128xf32>
    %cst_119 = arith.constant 5.000000e-01 : f32
    %652 = vector.broadcast %cst_119 : f32 to vector<2x128xf32>
    %653 = arith.mulf %652, %651 : vector<2x128xf32>
    %654 = math.tanh %653 : vector<2x128xf32>
    %cst_120 = arith.constant 1.000000e+00 : f32
    %655 = vector.broadcast %cst_120 : f32 to vector<2x128xf32>
    %656 = arith.addf %655, %654 : vector<2x128xf32>
    %cst_121 = arith.constant 5.000000e-01 : f32
    %657 = vector.broadcast %cst_121 : f32 to vector<2x128xf32>
    %658 = arith.mulf %657, %656 : vector<2x128xf32>
    %659 = math.tanh %651 : vector<2x128xf32>
    %660 = vector.extract_strided_slice %658 {offsets = [0, 0], sizes = [2, 32], strides = [1, 1]} : vector<2x128xf32> to vector<2x32xf32>
    %661 = vector.extract_strided_slice %658 {offsets = [0, 32], sizes = [2, 32], strides = [1, 1]} : vector<2x128xf32> to vector<2x32xf32>
    %662 = vector.extract_strided_slice %659 {offsets = [0, 64], sizes = [2, 32], strides = [1, 1]} : vector<2x128xf32> to vector<2x32xf32>
    %663 = vector.extract_strided_slice %658 {offsets = [0, 96], sizes = [2, 32], strides = [1, 1]} : vector<2x128xf32> to vector<2x32xf32>
    %664 = arith.mulf %661, %619 : vector<2x32xf32>
    %665 = arith.mulf %660, %662 : vector<2x32xf32>
    %666 = arith.addf %664, %665 : vector<2x32xf32>
    %667 = math.tanh %666 : vector<2x32xf32>
    %668 = arith.mulf %663, %667 : vector<2x32xf32>
    %cst_122 = arith.constant dense<0.000000e+00> : vector<2x128xf32>
    %669 = tpu.matmul %668, %8, %cst_122 {dimension_numbers = #tpu.dot_dimension_numbers<[1], [0], [0], [1], [0, 0, 1, 1], [], []>} : vector<2x32xf32>, vector<32x128xf32>, vector<2x128xf32> -> vector<2x128xf32>
    %670 = vector.extract_strided_slice %13 {offsets = [0, 13], sizes = [2, 1], strides = [1, 1]} : vector<2x16xf32> to vector<2x1xf32>
    %671 = vector.broadcast %670 : vector<2x1xf32> to vector<2x32xf32>
    %672 = arith.mulf %671, %668 : vector<2x32xf32>
    %673 = arith.addf %626, %672 : vector<2x32xf32>
    %674 = vector.extract_strided_slice %12 {offsets = [28, 0], sizes = [2, 128], strides = [1, 1]} : vector<32x128xf32> to vector<2x128xf32>
    %675 = arith.addf %674, %647 : vector<2x128xf32>
    %cst_123 = arith.constant 5.000000e-01 : f32
    %676 = vector.broadcast %cst_123 : f32 to vector<2x128xf32>
    %677 = arith.mulf %676, %675 : vector<2x128xf32>
    %678 = math.tanh %677 : vector<2x128xf32>
    %cst_124 = arith.constant 1.000000e+00 : f32
    %679 = vector.broadcast %cst_124 : f32 to vector<2x128xf32>
    %680 = arith.addf %679, %678 : vector<2x128xf32>
    %cst_125 = arith.constant 5.000000e-01 : f32
    %681 = vector.broadcast %cst_125 : f32 to vector<2x128xf32>
    %682 = arith.mulf %681, %680 : vector<2x128xf32>
    %683 = math.tanh %675 : vector<2x128xf32>
    %684 = vector.extract_strided_slice %682 {offsets = [0, 0], sizes = [2, 32], strides = [1, 1]} : vector<2x128xf32> to vector<2x32xf32>
    %685 = vector.extract_strided_slice %682 {offsets = [0, 32], sizes = [2, 32], strides = [1, 1]} : vector<2x128xf32> to vector<2x32xf32>
    %686 = vector.extract_strided_slice %683 {offsets = [0, 64], sizes = [2, 32], strides = [1, 1]} : vector<2x128xf32> to vector<2x32xf32>
    %687 = vector.extract_strided_slice %682 {offsets = [0, 96], sizes = [2, 32], strides = [1, 1]} : vector<2x128xf32> to vector<2x32xf32>
    %688 = arith.mulf %685, %643 : vector<2x32xf32>
    %689 = arith.mulf %684, %686 : vector<2x32xf32>
    %690 = arith.addf %688, %689 : vector<2x32xf32>
    %691 = math.tanh %690 : vector<2x32xf32>
    %692 = arith.mulf %687, %691 : vector<2x32xf32>
    %cst_126 = arith.constant dense<0.000000e+00> : vector<2x256xf32>
    %693 = tpu.matmul %692, %4, %cst_126 {dimension_numbers = #tpu.dot_dimension_numbers<[1], [0], [0], [1], [0, 0, 1, 1], [], []>} : vector<2x32xf32>, vector<32x256xf32>, vector<2x256xf32> -> vector<2x256xf32>
    %694 = vector.extract_strided_slice %693 {offsets = [0, 0], sizes = [2, 128], strides = [1, 1]} : vector<2x256xf32> to vector<2x128xf32>
    %695 = vector.extract_strided_slice %693 {offsets = [0, 128], sizes = [2, 128], strides = [1, 1]} : vector<2x256xf32> to vector<2x128xf32>
    %696 = arith.addf %695, %669 : vector<2x128xf32>
    %697 = vector.broadcast %6 : vector<1x128xf32> to vector<2x128xf32>
    %698 = arith.addf %696, %697 : vector<2x128xf32>
    %cst_127 = arith.constant 5.000000e-01 : f32
    %699 = vector.broadcast %cst_127 : f32 to vector<2x128xf32>
    %700 = arith.mulf %699, %698 : vector<2x128xf32>
    %701 = math.tanh %700 : vector<2x128xf32>
    %cst_128 = arith.constant 1.000000e+00 : f32
    %702 = vector.broadcast %cst_128 : f32 to vector<2x128xf32>
    %703 = arith.addf %702, %701 : vector<2x128xf32>
    %cst_129 = arith.constant 5.000000e-01 : f32
    %704 = vector.broadcast %cst_129 : f32 to vector<2x128xf32>
    %705 = arith.mulf %704, %703 : vector<2x128xf32>
    %706 = math.tanh %698 : vector<2x128xf32>
    %707 = vector.extract_strided_slice %705 {offsets = [0, 0], sizes = [2, 32], strides = [1, 1]} : vector<2x128xf32> to vector<2x32xf32>
    %708 = vector.extract_strided_slice %705 {offsets = [0, 32], sizes = [2, 32], strides = [1, 1]} : vector<2x128xf32> to vector<2x32xf32>
    %709 = vector.extract_strided_slice %706 {offsets = [0, 64], sizes = [2, 32], strides = [1, 1]} : vector<2x128xf32> to vector<2x32xf32>
    %710 = vector.extract_strided_slice %705 {offsets = [0, 96], sizes = [2, 32], strides = [1, 1]} : vector<2x128xf32> to vector<2x32xf32>
    %711 = arith.mulf %708, %666 : vector<2x32xf32>
    %712 = arith.mulf %707, %709 : vector<2x32xf32>
    %713 = arith.addf %711, %712 : vector<2x32xf32>
    %714 = math.tanh %713 : vector<2x32xf32>
    %715 = arith.mulf %710, %714 : vector<2x32xf32>
    %cst_130 = arith.constant dense<0.000000e+00> : vector<2x128xf32>
    %716 = tpu.matmul %715, %8, %cst_130 {dimension_numbers = #tpu.dot_dimension_numbers<[1], [0], [0], [1], [0, 0, 1, 1], [], []>} : vector<2x32xf32>, vector<32x128xf32>, vector<2x128xf32> -> vector<2x128xf32>
    %717 = vector.extract_strided_slice %13 {offsets = [0, 14], sizes = [2, 1], strides = [1, 1]} : vector<2x16xf32> to vector<2x1xf32>
    %718 = vector.broadcast %717 : vector<2x1xf32> to vector<2x32xf32>
    %719 = arith.mulf %718, %715 : vector<2x32xf32>
    %720 = arith.addf %673, %719 : vector<2x32xf32>
    %721 = vector.extract_strided_slice %12 {offsets = [30, 0], sizes = [2, 128], strides = [1, 1]} : vector<32x128xf32> to vector<2x128xf32>
    %722 = arith.addf %721, %694 : vector<2x128xf32>
    %cst_131 = arith.constant 5.000000e-01 : f32
    %723 = vector.broadcast %cst_131 : f32 to vector<2x128xf32>
    %724 = arith.mulf %723, %722 : vector<2x128xf32>
    %725 = math.tanh %724 : vector<2x128xf32>
    %cst_132 = arith.constant 1.000000e+00 : f32
    %726 = vector.broadcast %cst_132 : f32 to vector<2x128xf32>
    %727 = arith.addf %726, %725 : vector<2x128xf32>
    %cst_133 = arith.constant 5.000000e-01 : f32
    %728 = vector.broadcast %cst_133 : f32 to vector<2x128xf32>
    %729 = arith.mulf %728, %727 : vector<2x128xf32>
    %730 = math.tanh %722 : vector<2x128xf32>
    %731 = vector.extract_strided_slice %729 {offsets = [0, 0], sizes = [2, 32], strides = [1, 1]} : vector<2x128xf32> to vector<2x32xf32>
    %732 = vector.extract_strided_slice %729 {offsets = [0, 32], sizes = [2, 32], strides = [1, 1]} : vector<2x128xf32> to vector<2x32xf32>
    %733 = vector.extract_strided_slice %730 {offsets = [0, 64], sizes = [2, 32], strides = [1, 1]} : vector<2x128xf32> to vector<2x32xf32>
    %734 = vector.extract_strided_slice %729 {offsets = [0, 96], sizes = [2, 32], strides = [1, 1]} : vector<2x128xf32> to vector<2x32xf32>
    %735 = arith.mulf %732, %690 : vector<2x32xf32>
    %736 = arith.mulf %731, %733 : vector<2x32xf32>
    %737 = arith.addf %735, %736 : vector<2x32xf32>
    %738 = math.tanh %737 : vector<2x32xf32>
    %739 = arith.mulf %734, %738 : vector<2x32xf32>
    %cst_134 = arith.constant dense<0.000000e+00> : vector<2x256xf32>
    %740 = tpu.matmul %739, %4, %cst_134 {dimension_numbers = #tpu.dot_dimension_numbers<[1], [0], [0], [1], [0, 0, 1, 1], [], []>} : vector<2x32xf32>, vector<32x256xf32>, vector<2x256xf32> -> vector<2x256xf32>
    %741 = vector.extract_strided_slice %740 {offsets = [0, 128], sizes = [2, 128], strides = [1, 1]} : vector<2x256xf32> to vector<2x128xf32>
    %742 = arith.addf %741, %716 : vector<2x128xf32>
    %743 = vector.broadcast %6 : vector<1x128xf32> to vector<2x128xf32>
    %744 = arith.addf %742, %743 : vector<2x128xf32>
    %cst_135 = arith.constant 5.000000e-01 : f32
    %745 = vector.broadcast %cst_135 : f32 to vector<2x128xf32>
    %746 = arith.mulf %745, %744 : vector<2x128xf32>
    %747 = math.tanh %746 : vector<2x128xf32>
    %cst_136 = arith.constant 1.000000e+00 : f32
    %748 = vector.broadcast %cst_136 : f32 to vector<2x128xf32>
    %749 = arith.addf %748, %747 : vector<2x128xf32>
    %cst_137 = arith.constant 5.000000e-01 : f32
    %750 = vector.broadcast %cst_137 : f32 to vector<2x128xf32>
    %751 = arith.mulf %750, %749 : vector<2x128xf32>
    %752 = math.tanh %744 : vector<2x128xf32>
    %753 = vector.extract_strided_slice %751 {offsets = [0, 0], sizes = [2, 32], strides = [1, 1]} : vector<2x128xf32> to vector<2x32xf32>
    %754 = vector.extract_strided_slice %751 {offsets = [0, 32], sizes = [2, 32], strides = [1, 1]} : vector<2x128xf32> to vector<2x32xf32>
    %755 = vector.extract_strided_slice %752 {offsets = [0, 64], sizes = [2, 32], strides = [1, 1]} : vector<2x128xf32> to vector<2x32xf32>
    %756 = vector.extract_strided_slice %751 {offsets = [0, 96], sizes = [2, 32], strides = [1, 1]} : vector<2x128xf32> to vector<2x32xf32>
    %757 = arith.mulf %754, %713 : vector<2x32xf32>
    %758 = arith.mulf %753, %755 : vector<2x32xf32>
    %759 = arith.addf %757, %758 : vector<2x32xf32>
    %760 = math.tanh %759 : vector<2x32xf32>
    %761 = arith.mulf %756, %760 : vector<2x32xf32>
    %762 = vector.extract_strided_slice %13 {offsets = [0, 15], sizes = [2, 1], strides = [1, 1]} : vector<2x16xf32> to vector<2x1xf32>
    %763 = vector.broadcast %762 : vector<2x1xf32> to vector<2x32xf32>
    %764 = arith.mulf %763, %761 : vector<2x32xf32>
    %765 = arith.addf %720, %764 : vector<2x32xf32>
    %c112 = arith.constant 112 : index
    %c0_138 = arith.constant 0 : index
    %766 = vector.load %arg3[%c112, %c0_138] : memref<152x256xf32, #tpu.memory_space<vmem>>, vector<32x256xf32>
    %767 = vector.extract_strided_slice %766 {offsets = [0, 0], sizes = [32, 128], strides = [1, 1]} : vector<32x256xf32> to vector<32x128xf32>
    %c144 = arith.constant 144 : index
    %c0_139 = arith.constant 0 : index
    %768 = vector.load %arg3[%c144, %c0_139] : memref<152x256xf32, #tpu.memory_space<vmem>>, vector<1x256xf32>
    %769 = vector.extract_strided_slice %768 {offsets = [0, 0], sizes = [1, 128], strides = [1, 1]} : vector<1x256xf32> to vector<1x128xf32>
    %cst_140 = arith.constant dense<0.000000e+00> : vector<2x128xf32>
    %770 = tpu.matmul %765, %767, %cst_140 {dimension_numbers = #tpu.dot_dimension_numbers<[1], [0], [0], [1], [0, 0, 1, 1], [], []>} : vector<2x32xf32>, vector<32x128xf32>, vector<2x128xf32> -> vector<2x128xf32>
    %771 = vector.broadcast %769 : vector<1x128xf32> to vector<2x128xf32>
    %772 = arith.addf %770, %771 : vector<2x128xf32>
    %c0_141 = arith.constant 0 : index
    %c0_142 = arith.constant 0 : index
    %773 = vector.load %arg4[%c0_141, %c0_142] : memref<2x128xf32, #tpu.memory_space<vmem>>, vector<2x128xf32>
    tpu.vector_store %arg4[%c0_141, %c0_142], %772 {strides = array<i32>} : memref<2x128xf32, #tpu.memory_space<vmem>>, vector<2x128xf32>,
    return
  }
  func.func @transform_0(%arg0: i32) -> (i32, i32) {
    %c0_i32 = arith.constant 0 : i32
    %c0_i32_0 = arith.constant 0 : i32
    %c0_i32_1 = arith.constant 0 : i32
    return %c0_i32, %c0_i32_0 : i32, i32
  }
  func.func @transform_1(%arg0: i32) -> (i32, i32) {
    %c0_i32 = arith.constant 0 : i32
    %c0_i32_0 = arith.constant 0 : i32
    %c0_i32_1 = arith.constant 0 : i32
    return %c0_i32, %c0_i32_0 : i32, i32
  }
  func.func @transform_2(%arg0: i32) -> (i32, i32) {
    %c0_i32 = arith.constant 0 : i32
    %c0_i32_0 = arith.constant 0 : i32
    %c0_i32_1 = arith.constant 0 : i32
    return %c0_i32, %c0_i32_0 : i32, i32
  }
  func.func @transform_3(%arg0: i32) -> (i32, i32) {
    %c0_i32 = arith.constant 0 : i32
    %c0_i32_0 = arith.constant 0 : i32
    %c0_i32_1 = arith.constant 0 : i32
    return %c0_i32, %c0_i32_0 : i32, i32
  }
}

</mosaic_0001>

<llo_original>
// kernel: tpu_custom_call.1
$region0: #{tpu_custom_call.1}
  #allocation0 [shape = 'u32[]', space=smem, size = 0x4, offset = 0x4, fixed_abs, tag = 'smem constant byte address 0x4 - core index']
  #allocation1 [shape = 'u32[144,128]{1,0:T(1,128)}', space=vmem, size = 0x12000, scoped, tag = 'internal scratch']
  %s0 = inlined_call_operand.hbm [shape: f32[32,32], index: 0, kind: input, shape index: {}]
  %s1 = inlined_call_operand.vmem [shape: f32[2,16], index: 1, kind: input, shape index: {}]
  %s2 = inlined_call_operand.hbm [shape: f32[152,256], index: 2, kind: input, shape index: {}]
  %s3 = inlined_call_operand.hbm [shape: f32[2,128], index: 3, kind: output, shape index: {}]
  %s4 = sld [smem:[#allocation0]]
  $region30: #{tpu_custom_call.1} parent=0
    _
  %s6 = ssub.s32 1, %s4
  %s7 = scalar_select 0, %s6, %s4
  $region1: #{tpu_custom_call.1} parent=0
    #allocation2 [shape = 'u8[16384]{0}', space=vmem, size = 0x4000, scoped, tag = 'input window, operand 0, single buffered']
    #allocation3 [shape = 's32[1]{0}', space=sflag, size = 0x4, scoped, tag = 'scoped memory for tpu_custom_call.1']
    #allocation4 [shape = 's32[1]{0}', space=sflag, size = 0x4, scoped, tag = 'scoped memory for tpu_custom_call.1']
    #allocation5 [shape = 'u8[155648]{0}', space=vmem, size = 0x26000, scoped, tag = 'input window, operand 2, single buffered']
    #allocation6 [shape = 's32[1]{0}', space=sflag, size = 0x4, scoped, tag = 'scoped memory for tpu_custom_call.1']
    #allocation7 [shape = 'u8[1024]{0}', space=vmem, size = 0x400, scoped, tag = 'output window, operand 0, single buffered']
    %8 = vsyncpa [#allocation3], 0
    %9 = vsyncpa [#allocation6], 0
    %10 = vsyncpa [#allocation4], 0
    // Predicated region
    $region2: #{tpu_custom_call.1} parent=1 // pred_check
      _
    $region3: #{tpu_custom_call.1} parent=1 // pred_check_branch
      %12 = sbr.rel (0) target = $region5
    $region4: #{tpu_custom_call.1} parent=1 // pred_region
      %s14 = ssub.s32 512, 512
      %15 = vsyncadd [#allocation3], %s14
      %s16 = sshll.u32 [#allocation2], 4
      %s17 = int_to_ptr.vmem [resolvable:$true] %s16
      %22 = dma.hbm_to_vmem [thread:$0]  %s0, 512, %s17, [#allocation3], 128, 128, 8
    $region5: #{tpu_custom_call.1} parent=1 // pred_fallthru
      _
    // Predicated region
    $region6: #{tpu_custom_call.1} parent=1 // pred_check
      _
    $region7: #{tpu_custom_call.1} parent=1 // pred_check_branch
      %24 = sbr.rel (0) target = $region9
    $region8: #{tpu_custom_call.1} parent=1 // pred_region
      _
    $region9: #{tpu_custom_call.1} parent=1 // pred_fallthru
      _
    // Predicated region
    $region10: #{tpu_custom_call.1} parent=1 // pred_check
      _
    $region11: #{tpu_custom_call.1} parent=1 // pred_check_branch
      %26 = sbr.rel (0) target = $region13
    $region12: #{tpu_custom_call.1} parent=1 // pred_region
      %s28 = ssub.s32 4864, 4864
      %29 = vsyncadd [#allocation6], %s28
      %s30 = sshll.u32 [#allocation5], 4
      %s31 = int_to_ptr.vmem [resolvable:$true] %s30
      %36 = dma.hbm_to_vmem [thread:$0]  %s2, 4864, %s31, [#allocation6], 256, 256, 16
    $region13: #{tpu_custom_call.1} parent=1 // pred_fallthru
      _
    // Predicated region
    $region14: #{tpu_custom_call.1} parent=1 // pred_check
      _
    $region15: #{tpu_custom_call.1} parent=1 // pred_check_branch
      %38 = sbr.rel (0) target = $region17
    $region16: #{tpu_custom_call.1} parent=1 // pred_region
      %39 = dma.done [#allocation3], 512
    $region17: #{tpu_custom_call.1} parent=1 // pred_fallthru
      _
    // Predicated region
    $region18: #{tpu_custom_call.1} parent=1 // pred_check
      _
    $region19: #{tpu_custom_call.1} parent=1 // pred_check_branch
      %41 = sbr.rel (0) target = $region21
    $region20: #{tpu_custom_call.1} parent=1 // pred_region
      %42 = dma.done [#allocation6], 4864
    $region21: #{tpu_custom_call.1} parent=1 // pred_fallthru
      _
    %v43 = vld [vmem:[#allocation5] sm:$0xff]
    %v44 = vld [vmem:[#allocation5 + $0x10] sm:$0xff]
    %v45 = vld [vmem:[#allocation5 + $0x20] sm:$0xff]
    %v46 = vld [vmem:[#allocation5 + $0x30] sm:$0xff]
    %s47 = scalar_lea.vmem [#allocation5], 64
    %v48 = vld [vmem:[%s47] ss:$8 sm:$0x3]
    %v49 = vld [vmem:[#allocation5 + $0x50] sm:$0xff]
    %v50 = vld [vmem:[#allocation5 + $0x58] sm:$0xff]
    %v51 = vld [vmem:[#allocation5 + $0x60] sm:$0xff]
    %v52 = vld [vmem:[#allocation5 + $0x68] sm:$0xff]
    %v53 = vld [vmem:[#allocation5 + $0x70] sm:$0xff]
    %v54 = vld [vmem:[#allocation5 + $0x78] sm:$0xff]
    %v55 = vld [vmem:[#allocation5 + $0x80] sm:$0xff]
    %v56 = vld [vmem:[#allocation5 + $0x88] sm:$0xff]
    %s57 = scalar_lea.vmem [#allocation5], 144
    %v58 = vld [vmem:[%s57] ss:$8 sm:$0x3]
    %v59 = vld [vmem:[#allocation5 + $0xa0] sm:$0xff]
    %v60 = vld [vmem:[#allocation5 + $0xb0] sm:$0xff]
    %v61 = vld [vmem:[#allocation5 + $0xc0] sm:$0xff]
    %v62 = vld [vmem:[#allocation5 + $0xd0] sm:$0xff]
    %v63 = vld [vmem:[#allocation2] sm:$0xff]
    %v64 = vld [vmem:[#allocation2 + $0x8] sm:$0xff]
    %v65 = vld [vmem:[#allocation2 + $0x10] sm:$0xff]
    %v66 = vld [vmem:[#allocation2 + $0x18] sm:$0xff]
    %v68 = vlaneseq
    %v69 = vshrl.u32 %v68, 7
    %v70 = vsub.s32 0, %v69
    %v71 = vrot.slane %v48, %v70
    %vm73 = vcmask 261120
    %v75 = vsel %vm73, %v63, 0
    %v78 = vsel %vm73, %v64, 0
    %v81 = vsel %vm73, %v65, 0
    %v84 = vsel %vm73, %v66, 0
    %86 = vmatprep.subr.mxu0 0.0
    %87 = vmatpush1.msra.mxu0 %v43
    %88 = vmatprep.subr.mxu0 0.0
    %89 = vmatpush1.msra.mxu0 %v44
    %90 = vmatprep.subr.mxu0 0.0
    %91 = vmatpush1.msra.mxu0 %v45
    %92 = vmatprep.subr.mxu0 0.0
    %93 = vmatpush1.msra.mxu0 %v46
    %94 = vmatprep.subr.mxu0 0.0
    %95 = vmatpush1.msra.mxu0 0.0
    %96 = vmatprep.subr.mxu0 0.0
    %97 = vmatpush1.msra.mxu0 0.0
    %98 = vmatprep.subr.mxu0 0.0
    %99 = vmatpush1.msra.mxu0 0.0
    %100 = vmatprep.subr.mxu0 0.0
    %101 = vmatpush1.msra.mxu0 0.0
    %102 = vmatprep.subr.mxu0 0.0
    %103 = vmatpush1.msra.mxu0 0.0
    %104 = vmatprep.subr.mxu0 0.0
    %105 = vmatpush1.msra.mxu0 0.0
    %106 = vmatprep.subr.mxu0 0.0
    %107 = vmatpush1.msra.mxu0 0.0
    %108 = vmatprep.subr.mxu0 0.0
    %109 = vmatpush1.msra.mxu0 0.0
    %110 = vmatprep.subr.mxu0 0.0
    %111 = vmatpush1.msra.mxu0 0.0
    %112 = vmatprep.subr.mxu0 0.0
    %113 = vmatpush1.msra.mxu0 0.0
    %114 = vmatprep.subr.mxu0 0.0
    %115 = vmatpush1.msra.mxu0 0.0
    %116 = vmatprep.subr.mxu0 0.0
    %117 = vmatpush1.msra.mxu0 0.0
    %118 = vmatprep.subr.mxu0 0.0
    %119 = vmatpush1.msra.mxu0 0.0
    %120 = vmatprep.subr.mxu0 0.0
    %121 = vmatpush1.msra.mxu0 0.0
    %122 = vmatprep.subr.mxu0 0.0
    %123 = vmatpush1.msra.mxu0 0.0
    %124 = vmatprep.subr.mxu0 0.0
    %125 = vmatpush1.msra.mxu0 0.0
    %126 = vmatprep.subr.mxu0 0.0
    %127 = vmatpush1.msra.mxu0 0.0
    %128 = vmatprep.subr.mxu0 0.0
    %129 = vmatpush1.msra.mxu0 0.0
    %130 = vmatprep.subr.mxu0 0.0
    %131 = vmatpush1.msra.mxu0 0.0
    %132 = vmatprep.subr.mxu0 0.0
    %133 = vmatpush1.msra.mxu0 0.0
    %134 = vmatprep.subr.mxu0 0.0
    %135 = vmatpush1.msra.mxu0 0.0
    %136 = vmatprep.subr.mxu0 0.0
    %137 = vmatpush1.msra.mxu0 0.0
    %138 = vmatprep.subr.mxu0 0.0
    %139 = vmatpush1.msra.mxu0 0.0
    %140 = vmatprep.subr.mxu0 0.0
    %141 = vmatpush1.msra.mxu0 0.0
    %142 = vmatprep.subr.mxu0 0.0
    %143 = vmatpush1.msra.mxu0 0.0
    %144 = vmatprep.subr.mxu0 0.0
    %145 = vmatpush1.msra.mxu0 0.0
    %146 = vmatprep.subr.mxu0 0.0
    %147 = vmatpush1.msra.mxu0 0.0
    %148 = vmatprep.subr.mxu0 0.0
    %149 = vmatpush1.msra.mxu0 0.0
    %150 = vmatprep.mubr.f32.mxu0 0.0
    %151 = vmatmul.mubr.f32.gmra.mrb[0].mxu0 %v75
    %v152 = vpop.f32.mrb[0].mxu0
    %v153 = vadd.f32 %v71, %v152
    %v154 = vpop.f32.mrb[0].mxu0
    %155 = vmatprep.mubr.f32.mxu0 0.0
    %156 = vmatmul.mubr.f32.gmra.mrb[0].mxu0 %v78
    %v157 = vpop.f32.mrb[0].mxu0
    %v158 = vadd.f32 %v71, %v157
    %v159 = vpop.f32.mrb[0].mxu0
    %160 = vmatprep.mubr.f32.mxu0 0.0
    %161 = vmatmul.mubr.f32.gmra.mrb[0].mxu0 %v81
    %v162 = vpop.f32.mrb[0].mxu0
    %v163 = vadd.f32 %v71, %v162
    %v164 = vpop.f32.mrb[0].mxu0
    %165 = vmatprep.mubr.f32.mxu0 0.0
    %166 = vmatmul.mubr.f32.gmra.mrb[0].mxu0 %v84
    %v167 = vpop.f32.mrb[0].mxu0
    %v168 = vadd.f32 %v71, %v167
    %v169 = vpop.f32.mrb[0].mxu0
    %170 = vdwg.mxu0
    %v171 = vld [vmem:[%s1] sm:$0x3]
    %v172 = vadd.f32 %v153, 0.0
    %v173 = vmul.f32 %v172, 0.5
    %v174 = vtanh.pop %v173
    %v175 = vadd.f32 %v174, 1.0
    %v176 = vmul.f32 %v175, 0.5
    %v177 = vtanh.pop %v172
    %v178 = vmul.f32 %v176, 0.0
    %180 = vrot.lane.b32.xlu0 %v177, 64
    %v181 = vpop.permute.xlu0 %180
    %v183 = vmul.f32 %v176, %v181
    %185 = vrot.lane.b32.xlu0 %v183, 32
    %v186 = vpop.permute.xlu0 %185
    %v188 = vadd.f32 %v178, %v186
    %v189 = vtanh.pop %v188
    %191 = vrot.lane.b32.xlu0 %v189, 64
    %v192 = vpop.permute.xlu0 %191
    %v194 = vmul.f32 %v176, %v192
    %196 = vrot.lane.b32.xlu0 %v194, 32
    %v197 = vpop.permute.xlu0 %196
    %v198 = vsel %vm73, %v197, 0
    %200 = vmatprep.subr.mxu0 %v50
    %201 = vmatpush1.msra.mxu0 %v49
    %202 = vmatprep.subr.mxu0 %v52
    %203 = vmatpush1.msra.mxu0 %v51
    %204 = vmatprep.subr.mxu0 %v54
    %205 = vmatpush1.msra.mxu0 %v53
    %206 = vmatprep.subr.mxu0 %v56
    %207 = vmatpush1.msra.mxu0 %v55
    %208 = vmatprep.subr.mxu0 0.0
    %209 = vmatpush1.msra.mxu0 0.0
    %210 = vmatprep.subr.mxu0 0.0
    %211 = vmatpush1.msra.mxu0 0.0
    %212 = vmatprep.subr.mxu0 0.0
    %213 = vmatpush1.msra.mxu0 0.0
    %214 = vmatprep.subr.mxu0 0.0
    %215 = vmatpush1.msra.mxu0 0.0
    %216 = vmatprep.subr.mxu0 0.0
    %217 = vmatpush1.msra.mxu0 0.0
    %218 = vmatprep.subr.mxu0 0.0
    %219 = vmatpush1.msra.mxu0 0.0
    %220 = vmatprep.subr.mxu0 0.0
    %221 = vmatpush1.msra.mxu0 0.0
    %222 = vmatprep.subr.mxu0 0.0
    %223 = vmatpush1.msra.mxu0 0.0
    %224 = vmatprep.subr.mxu0 0.0
    %225 = vmatpush1.msra.mxu0 0.0
    %226 = vmatprep.subr.mxu0 0.0
    %227 = vmatpush1.msra.mxu0 0.0
    %228 = vmatprep.subr.mxu0 0.0
    %229 = vmatpush1.msra.mxu0 0.0
    %230 = vmatprep.subr.mxu0 0.0
    %231 = vmatpush1.msra.mxu0 0.0
    %232 = vmatprep.subr.mxu0 0.0
    %233 = vmatpush1.msra.mxu0 0.0
    %234 = vmatprep.subr.mxu0 0.0
    %235 = vmatpush1.msra.mxu0 0.0
    %236 = vmatprep.subr.mxu0 0.0
    %237 = vmatpush1.msra.mxu0 0.0
    %238 = vmatprep.subr.mxu0 0.0
    %239 = vmatpush1.msra.mxu0 0.0
    %240 = vmatprep.subr.mxu0 0.0
    %241 = vmatpush1.msra.mxu0 0.0
    %242 = vmatprep.subr.mxu0 0.0
    %243 = vmatpush1.msra.mxu0 0.0
    %244 = vmatprep.subr.mxu0 0.0
    %245 = vmatpush1.msra.mxu0 0.0
    %246 = vmatprep.subr.mxu0 0.0
    %247 = vmatpush1.msra.mxu0 0.0
    %248 = vmatprep.subr.mxu0 0.0
    %249 = vmatpush1.msra.mxu0 0.0
    %250 = vmatprep.subr.mxu0 0.0
    %251 = vmatpush1.msra.mxu0 0.0
    %252 = vmatprep.subr.mxu0 0.0
    %253 = vmatpush1.msra.mxu0 0.0
    %254 = vmatprep.subr.mxu0 0.0
    %255 = vmatpush1.msra.mxu0 0.0
    %256 = vmatprep.subr.mxu0 0.0
    %257 = vmatpush1.msra.mxu0 0.0
    %258 = vmatprep.subr.mxu0 0.0
    %259 = vmatpush1.msra.mxu0 0.0
    %260 = vmatprep.subr.mxu0 0.0
    %261 = vmatpush1.msra.mxu0 0.0
    %262 = vmatprep.subr.mxu0 0.0
    %263 = vmatpush1.msra.mxu0 0.0
    %264 = vmatprep.mubr.f32.mxu0 0.0
    %265 = vmatmul.mubr.f32.gmra.mrb[0].mxu0 %v198
    %v266 = vpop.f32.mrb[0].mxu0
    %v267 = vadd.f32 0.0, %v266
    %v268 = vpop.f32.mrb[0].mxu0
    %v269 = vadd.f32 0.0, %v268
    %270 = vdwg.mxu0
    %v271 = vadd.f32 %v269, 0.0
    %v273 = vlaneseq
    %v274 = vshrl.u32 %v273, 7
    %v275 = vsub.s32 0, %v274
    %v276 = vrot.slane %v58, %v275
    %v278 = vadd.f32 %v271, %v276
    %v279 = vmul.f32 %v278, 0.5
    %v280 = vtanh.pop %v279
    %v281 = vadd.f32 %v280, 1.0
    %v282 = vmul.f32 %v281, 0.5
    %v283 = vtanh.pop %v278
    %v284 = vmul.f32 %v282, 0.0
    %286 = vrot.lane.b32.xlu0 %v283, 64
    %v287 = vpop.permute.xlu0 %286
    %v289 = vmul.f32 %v282, %v287
    %291 = vrot.lane.b32.xlu0 %v289, 32
    %v292 = vpop.permute.xlu0 %291
    %v294 = vadd.f32 %v284, %v292
    %v295 = vtanh.pop %v294
    %297 = vrot.lane.b32.xlu0 %v295, 64
    %v298 = vpop.permute.xlu0 %297
    %v300 = vmul.f32 %v282, %v298
    %302 = vrot.lane.b32.xlu0 %v300, 32
    %v303 = vpop.permute.xlu0 %302
    %v304 = vsel %vm73, %v303, 0
    %306 = vmatprep.subr.mxu0 0.0
    %307 = vmatpush1.msra.mxu0 %v59
    %308 = vmatprep.subr.mxu0 0.0
    %309 = vmatpush1.msra.mxu0 %v60
    %310 = vmatprep.subr.mxu0 0.0
    %311 = vmatpush1.msra.mxu0 %v61
    %312 = vmatprep.subr.mxu0 0.0
    %313 = vmatpush1.msra.mxu0 %v62
    %314 = vmatprep.subr.mxu0 0.0
    %315 = vmatpush1.msra.mxu0 0.0
    %316 = vmatprep.subr.mxu0 0.0
    %317 = vmatpush1.msra.mxu0 0.0
    %318 = vmatprep.subr.mxu0 0.0
    %319 = vmatpush1.msra.mxu0 0.0
    %320 = vmatprep.subr.mxu0 0.0
    %321 = vmatpush1.msra.mxu0 0.0
    %322 = vmatprep.subr.mxu0 0.0
    %323 = vmatpush1.msra.mxu0 0.0
    %324 = vmatprep.subr.mxu0 0.0
    %325 = vmatpush1.msra.mxu0 0.0
    %326 = vmatprep.subr.mxu0 0.0
    %327 = vmatpush1.msra.mxu0 0.0
    %328 = vmatprep.subr.mxu0 0.0
    %329 = vmatpush1.msra.mxu0 0.0
    %330 = vmatprep.subr.mxu0 0.0
    %331 = vmatpush1.msra.mxu0 0.0
    %332 = vmatprep.subr.mxu0 0.0
    %333 = vmatpush1.msra.mxu0 0.0
    %334 = vmatprep.subr.mxu0 0.0
    %335 = vmatpush1.msra.mxu0 0.0
    %336 = vmatprep.subr.mxu0 0.0
    %337 = vmatpush1.msra.mxu0 0.0
    %338 = vmatprep.subr.mxu0 0.0
    %339 = vmatpush1.msra.mxu0 0.0
    %340 = vmatprep.subr.mxu0 0.0
    %341 = vmatpush1.msra.mxu0 0.0
    %342 = vmatprep.subr.mxu0 0.0
    %343 = vmatpush1.msra.mxu0 0.0
    %344 = vmatprep.subr.mxu0 0.0
    %345 = vmatpush1.msra.mxu0 0.0
    %346 = vmatprep.subr.mxu0 0.0
    %347 = vmatpush1.msra.mxu0 0.0
    %348 = vmatprep.subr.mxu0 0.0
    %349 = vmatpush1.msra.mxu0 0.0
    %350 = vmatprep.subr.mxu0 0.0
    %351 = vmatpush1.msra.mxu0 0.0
    %352 = vmatprep.subr.mxu0 0.0
    %353 = vmatpush1.msra.mxu0 0.0
    %354 = vmatprep.subr.mxu0 0.0
    %355 = vmatpush1.msra.mxu0 0.0
    %356 = vmatprep.subr.mxu0 0.0
    %357 = vmatpush1.msra.mxu0 0.0
    %358 = vmatprep.subr.mxu0 0.0
    %359 = vmatpush1.msra.mxu0 0.0
    %360 = vmatprep.subr.mxu0 0.0
    %361 = vmatpush1.msra.mxu0 0.0
    %362 = vmatprep.subr.mxu0 0.0
    %363 = vmatpush1.msra.mxu0 0.0
    %364 = vmatprep.subr.mxu0 0.0
    %365 = vmatpush1.msra.mxu0 0.0
    %366 = vmatprep.subr.mxu0 0.0
    %367 = vmatpush1.msra.mxu0 0.0
    %368 = vmatprep.subr.mxu0 0.0
    %369 = vmatpush1.msra.mxu0 0.0
    %370 = vmatprep.mubr.f32.mxu0 0.0
    %371 = vmatmul.mubr.f32.gmra.mrb[0].mxu0 %v304
    %v372 = vpop.f32.mrb[0].mxu0
    %v373 = vadd.f32 0.0, %v372
    %v374 = vpop.f32.mrb[0].mxu0
    %375 = vdwg.mxu0
    %377 = vset.pattern.permute.xlu0 0
    %378 = vperm.xlu0 %377, %v171
    %v379 = vpop.permute.xlu0 %378
    %v381 = vmul.f32 %v379, %v300
    %v382 = vadd.f32 %v381, 0.0
    %v384 = vrot.slane %v267, 6
    %v386 = vadd.f32 %v153, %v384
    %v387 = vmul.f32 %v386, 0.5
    %v388 = vtanh.pop %v387
    %v389 = vadd.f32 %v388, 1.0
    %v390 = vmul.f32 %v389, 0.5
    %v391 = vtanh.pop %v386
    %v393 = vrot.slane %v188, 6
    %v395 = vmul.f32 %v390, %v393
    %397 = vrot.lane.b32.xlu0 %v391, 64
    %v398 = vpop.permute.xlu0 %397
    %v400 = vmul.f32 %v390, %v398
    %402 = vrot.lane.b32.xlu0 %v400, 32
    %v403 = vpop.permute.xlu0 %402
    %v405 = vadd.f32 %v395, %v403
    %v406 = vtanh.pop %v405
    %408 = vrot.lane.b32.xlu0 %v406, 64
    %v409 = vpop.permute.xlu0 %408
    %v411 = vmul.f32 %v390, %v409
    %v413 = vrot.slane %v411, 2
    %414 = vrot.lane.b32.xlu0 %v413, 32
    %v415 = vpop.permute.xlu0 %414
    %v416 = vsel %vm73, %v415, 0
    %418 = vmatprep.subr.mxu0 %v50
    %419 = vmatpush1.msra.mxu0 %v49
    %420 = vmatprep.subr.mxu0 %v52
    %421 = vmatpush1.msra.mxu0 %v51
    %422 = vmatprep.subr.mxu0 %v54
    %423 = vmatpush1.msra.mxu0 %v53
    %424 = vmatprep.subr.mxu0 %v56
    %425 = vmatpush1.msra.mxu0 %v55
    %426 = vmatprep.subr.mxu0 0.0
    %427 = vmatpush1.msra.mxu0 0.0
    %428 = vmatprep.subr.mxu0 0.0
    %429 = vmatpush1.msra.mxu0 0.0
    %430 = vmatprep.subr.mxu0 0.0
    %431 = vmatpush1.msra.mxu0 0.0
    %432 = vmatprep.subr.mxu0 0.0
    %433 = vmatpush1.msra.mxu0 0.0
    %434 = vmatprep.subr.mxu0 0.0
    %435 = vmatpush1.msra.mxu0 0.0
    %436 = vmatprep.subr.mxu0 0.0
    %437 = vmatpush1.msra.mxu0 0.0
    %438 = vmatprep.subr.mxu0 0.0
    %439 = vmatpush1.msra.mxu0 0.0
    %440 = vmatprep.subr.mxu0 0.0
    %441 = vmatpush1.msra.mxu0 0.0
    %442 = vmatprep.subr.mxu0 0.0
    %443 = vmatpush1.msra.mxu0 0.0
    %444 = vmatprep.subr.mxu0 0.0
    %445 = vmatpush1.msra.mxu0 0.0
    %446 = vmatprep.subr.mxu0 0.0
    %447 = vmatpush1.msra.mxu0 0.0
    %448 = vmatprep.subr.mxu0 0.0
    %449 = vmatpush1.msra.mxu0 0.0
    %450 = vmatprep.subr.mxu0 0.0
    %451 = vmatpush1.msra.mxu0 0.0
    %452 = vmatprep.subr.mxu0 0.0
    %453 = vmatpush1.msra.mxu0 0.0
    %454 = vmatprep.subr.mxu0 0.0
    %455 = vmatpush1.msra.mxu0 0.0
    %456 = vmatprep.subr.mxu0 0.0
    %457 = vmatpush1.msra.mxu0 0.0
    %458 = vmatprep.subr.mxu0 0.0
    %459 = vmatpush1.msra.mxu0 0.0
    %460 = vmatprep.subr.mxu0 0.0
    %461 = vmatpush1.msra.mxu0 0.0
    %462 = vmatprep.subr.mxu0 0.0
    %463 = vmatpush1.msra.mxu0 0.0
    %464 = vmatprep.subr.mxu0 0.0
    %465 = vmatpush1.msra.mxu0 0.0
    %466 = vmatprep.subr.mxu0 0.0
    %467 = vmatpush1.msra.mxu0 0.0
    %468 = vmatprep.subr.mxu0 0.0
    %469 = vmatpush1.msra.mxu0 0.0
    %470 = vmatprep.subr.mxu0 0.0
    %471 = vmatpush1.msra.mxu0 0.0
    %472 = vmatprep.subr.mxu0 0.0
    %473 = vmatpush1.msra.mxu0 0.0
    %474 = vmatprep.subr.mxu0 0.0
    %475 = vmatpush1.msra.mxu0 0.0
    %476 = vmatprep.subr.mxu0 0.0
    %477 = vmatpush1.msra.mxu0 0.0
    %478 = vmatprep.subr.mxu0 0.0
    %479 = vmatpush1.msra.mxu0 0.0
    %480 = vmatprep.subr.mxu0 0.0
    %481 = vmatpush1.msra.mxu0 0.0
    %482 = vmatprep.mubr.f32.mxu0 0.0
    %483 = vmatmul.mubr.f32.gmra.mrb[0].mxu0 %v416
    %v484 = vpop.f32.mrb[0].mxu0
    %v485 = vadd.f32 0.0, %v484
    %v486 = vpop.f32.mrb[0].mxu0
    %v487 = vadd.f32 0.0, %v486
    %488 = vdwg.mxu0
    %v489 = vadd.f32 %v487, %v373
    %v490 = vadd.f32 %v489, %v276
    %v491 = vmul.f32 %v490, 0.5
    %v492 = vtanh.pop %v491
    %v493 = vadd.f32 %v492, 1.0
    %v494 = vmul.f32 %v493, 0.5
    %v495 = vtanh.pop %v490
    %v496 = vmul.f32 %v494, %v294
    %498 = vrot.lane.b32.xlu0 %v495, 64
    %v499 = vpop.permute.xlu0 %498
    %v501 = vmul.f32 %v494, %v499
    %503 = vrot.lane.b32.xlu0 %v501, 32
    %v504 = vpop.permute.xlu0 %503
    %v506 = vadd.f32 %v496, %v504
    %v507 = vtanh.pop %v506
    %509 = vrot.lane.b32.xlu0 %v507, 64
    %v510 = vpop.permute.xlu0 %509
    %v512 = vmul.f32 %v494, %v510
    %514 = vrot.lane.b32.xlu0 %v512, 32
    %v515 = vpop.permute.xlu0 %514
    %v516 = vsel %vm73, %v515, 0
    %518 = vmatprep.subr.mxu0 0.0
    %519 = vmatpush1.msra.mxu0 %v59
    %520 = vmatprep.subr.mxu0 0.0
    %521 = vmatpush1.msra.mxu0 %v60
    %522 = vmatprep.subr.mxu0 0.0
    %523 = vmatpush1.msra.mxu0 %v61
    %524 = vmatprep.subr.mxu0 0.0
    %525 = vmatpush1.msra.mxu0 %v62
    %526 = vmatprep.subr.mxu0 0.0
    %527 = vmatpush1.msra.mxu0 0.0
    %528 = vmatprep.subr.mxu0 0.0
    %529 = vmatpush1.msra.mxu0 0.0
    %530 = vmatprep.subr.mxu0 0.0
    %531 = vmatpush1.msra.mxu0 0.0
    %532 = vmatprep.subr.mxu0 0.0
    %533 = vmatpush1.msra.mxu0 0.0
    %534 = vmatprep.subr.mxu0 0.0
    %535 = vmatpush1.msra.mxu0 0.0
    %536 = vmatprep.subr.mxu0 0.0
    %537 = vmatpush1.msra.mxu0 0.0
    %538 = vmatprep.subr.mxu0 0.0
    %539 = vmatpush1.msra.mxu0 0.0
    %540 = vmatprep.subr.mxu0 0.0
    %541 = vmatpush1.msra.mxu0 0.0
    %542 = vmatprep.subr.mxu0 0.0
    %543 = vmatpush1.msra.mxu0 0.0
    %544 = vmatprep.subr.mxu0 0.0
    %545 = vmatpush1.msra.mxu0 0.0
    %546 = vmatprep.subr.mxu0 0.0
    %547 = vmatpush1.msra.mxu0 0.0
    %548 = vmatprep.subr.mxu0 0.0
    %549 = vmatpush1.msra.mxu0 0.0
    %550 = vmatprep.subr.mxu0 0.0
    %551 = vmatpush1.msra.mxu0 0.0
    %552 = vmatprep.subr.mxu0 0.0
    %553 = vmatpush1.msra.mxu0 0.0
    %554 = vmatprep.subr.mxu0 0.0
    %555 = vmatpush1.msra.mxu0 0.0
    %556 = vmatprep.subr.mxu0 0.0
    %557 = vmatpush1.msra.mxu0 0.0
    %558 = vmatprep.subr.mxu0 0.0
    %559 = vmatpush1.msra.mxu0 0.0
    %560 = vmatprep.subr.mxu0 0.0
    %561 = vmatpush1.msra.mxu0 0.0
    %562 = vmatprep.subr.mxu0 0.0
    %563 = vmatpush1.msra.mxu0 0.0
    %564 = vmatprep.subr.mxu0 0.0
    %565 = vmatpush1.msra.mxu0 0.0
    %566 = vmatprep.subr.mxu0 0.0
    %567 = vmatpush1.msra.mxu0 0.0
    %568 = vmatprep.subr.mxu0 0.0
    %569 = vmatpush1.msra.mxu0 0.0
    %570 = vmatprep.subr.mxu0 0.0
    %571 = vmatpush1.msra.mxu0 0.0
    %572 = vmatprep.subr.mxu0 0.0
    %573 = vmatpush1.msra.mxu0 0.0
    %574 = vmatprep.subr.mxu0 0.0
    %575 = vmatpush1.msra.mxu0 0.0
    %576 = vmatprep.subr.mxu0 0.0
    %577 = vmatpush1.msra.mxu0 0.0
    %578 = vmatprep.subr.mxu0 0.0
    %579 = vmatpush1.msra.mxu0 0.0
    %580 = vmatprep.subr.mxu0 0.0
    %581 = vmatpush1.msra.mxu0 0.0
    %582 = vmatprep.mubr.f32.mxu0 0.0
    %583 = vmatmul.mubr.f32.gmra.mrb[0].mxu0 %v516
    %v584 = vpop.f32.mrb[0].mxu0
    %v585 = vadd.f32 0.0, %v584
    %v586 = vpop.f32.mrb[0].mxu0
    %587 = vdwg.mxu0
    %588 = vset.pattern.permute.xlu0 1
    %589 = vperm.xlu0 %588, %v171
    %v590 = vpop.permute.xlu0 %589
    %v592 = vmul.f32 %v590, %v512
    %v593 = vadd.f32 %v382, %v592
    %v595 = vrot.slane %v485, 4
    %v597 = vadd.f32 %v153, %v595
    %v598 = vmul.f32 %v597, 0.5
    %v599 = vtanh.pop %v598
    %v600 = vadd.f32 %v599, 1.0
    %v601 = vmul.f32 %v600, 0.5
    %v602 = vtanh.pop %v597
    %v604 = vrot.slane %v405, 6
    %v606 = vmul.f32 %v601, %v604
    %608 = vrot.lane.b32.xlu0 %v602, 64
    %v609 = vpop.permute.xlu0 %608
    %v611 = vmul.f32 %v601, %v609
    %613 = vrot.lane.b32.xlu0 %v611, 32
    %v614 = vpop.permute.xlu0 %613
    %v616 = vadd.f32 %v606, %v614
    %v617 = vtanh.pop %v616
    %619 = vrot.lane.b32.xlu0 %v617, 64
    %v620 = vpop.permute.xlu0 %619
    %v622 = vmul.f32 %v601, %v620
    %v624 = vrot.slane %v622, 4
    %625 = vrot.lane.b32.xlu0 %v624, 32
    %v626 = vpop.permute.xlu0 %625
    %v627 = vsel %vm73, %v626, 0
    %629 = vmatprep.subr.mxu0 %v50
    %630 = vmatpush1.msra.mxu0 %v49
    %631 = vmatprep.subr.mxu0 %v52
    %632 = vmatpush1.msra.mxu0 %v51
    %633 = vmatprep.subr.mxu0 %v54
    %634 = vmatpush1.msra.mxu0 %v53
    %635 = vmatprep.subr.mxu0 %v56
    %636 = vmatpush1.msra.mxu0 %v55
    %637 = vmatprep.subr.mxu0 0.0
    %638 = vmatpush1.msra.mxu0 0.0
    %639 = vmatprep.subr.mxu0 0.0
    %640 = vmatpush1.msra.mxu0 0.0
    %641 = vmatprep.subr.mxu0 0.0
    %642 = vmatpush1.msra.mxu0 0.0
    %643 = vmatprep.subr.mxu0 0.0
    %644 = vmatpush1.msra.mxu0 0.0
    %645 = vmatprep.subr.mxu0 0.0
    %646 = vmatpush1.msra.mxu0 0.0
    %647 = vmatprep.subr.mxu0 0.0
    %648 = vmatpush1.msra.mxu0 0.0
    %649 = vmatprep.subr.mxu0 0.0
    %650 = vmatpush1.msra.mxu0 0.0
    %651 = vmatprep.subr.mxu0 0.0
    %652 = vmatpush1.msra.mxu0 0.0
    %653 = vmatprep.subr.mxu0 0.0
    %654 = vmatpush1.msra.mxu0 0.0
    %655 = vmatprep.subr.mxu0 0.0
    %656 = vmatpush1.msra.mxu0 0.0
    %657 = vmatprep.subr.mxu0 0.0
    %658 = vmatpush1.msra.mxu0 0.0
    %659 = vmatprep.subr.mxu0 0.0
    %660 = vmatpush1.msra.mxu0 0.0
    %661 = vmatprep.subr.mxu0 0.0
    %662 = vmatpush1.msra.mxu0 0.0
    %663 = vmatprep.subr.mxu0 0.0
    %664 = vmatpush1.msra.mxu0 0.0
    %665 = vmatprep.subr.mxu0 0.0
    %666 = vmatpush1.msra.mxu0 0.0
    %667 = vmatprep.subr.mxu0 0.0
    %668 = vmatpush1.msra.mxu0 0.0
    %669 = vmatprep.subr.mxu0 0.0
    %670 = vmatpush1.msra.mxu0 0.0
    %671 = vmatprep.subr.mxu0 0.0
    %672 = vmatpush1.msra.mxu0 0.0
    %673 = vmatprep.subr.mxu0 0.0
    %674 = vmatpush1.msra.mxu0 0.0
    %675 = vmatprep.subr.mxu0 0.0
    %676 = vmatpush1.msra.mxu0 0.0
    %677 = vmatprep.subr.mxu0 0.0
    %678 = vmatpush1.msra.mxu0 0.0
    %679 = vmatprep.subr.mxu0 0.0
    %680 = vmatpush1.msra.mxu0 0.0
    %681 = vmatprep.subr.mxu0 0.0
    %682 = vmatpush1.msra.mxu0 0.0
    %683 = vmatprep.subr.mxu0 0.0
    %684 = vmatpush1.msra.mxu0 0.0
    %685 = vmatprep.subr.mxu0 0.0
    %686 = vmatpush1.msra.mxu0 0.0
    %687 = vmatprep.subr.mxu0 0.0
    %688 = vmatpush1.msra.mxu0 0.0
    %689 = vmatprep.subr.mxu0 0.0
    %690 = vmatpush1.msra.mxu0 0.0
    %691 = vmatprep.subr.mxu0 0.0
    %692 = vmatpush1.msra.mxu0 0.0
    %693 = vmatprep.mubr.f32.mxu0 0.0
    %694 = vmatmul.mubr.f32.gmra.mrb[0].mxu0 %v627
    %v695 = vpop.f32.mrb[0].mxu0
    %v696 = vadd.f32 0.0, %v695
    %v697 = vpop.f32.mrb[0].mxu0
    %v698 = vadd.f32 0.0, %v697
    %699 = vdwg.mxu0
    %v700 = vadd.f32 %v698, %v585
    %v701 = vadd.f32 %v700, %v276
    %v702 = vmul.f32 %v701, 0.5
    %v703 = vtanh.pop %v702
    %v704 = vadd.f32 %v703, 1.0
    %v705 = vmul.f32 %v704, 0.5
    %v706 = vtanh.pop %v701
    %v707 = vmul.f32 %v705, %v506
    %709 = vrot.lane.b32.xlu0 %v706, 64
    %v710 = vpop.permute.xlu0 %709
    %v712 = vmul.f32 %v705, %v710
    %714 = vrot.lane.b32.xlu0 %v712, 32
    %v715 = vpop.permute.xlu0 %714
    %v717 = vadd.f32 %v707, %v715
    %v718 = vtanh.pop %v717
    %720 = vrot.lane.b32.xlu0 %v718, 64
    %v721 = vpop.permute.xlu0 %720
    %v723 = vmul.f32 %v705, %v721
    %725 = vrot.lane.b32.xlu0 %v723, 32
    %v726 = vpop.permute.xlu0 %725
    %v727 = vsel %vm73, %v726, 0
    %729 = vmatprep.subr.mxu0 0.0
    %730 = vmatpush1.msra.mxu0 %v59
    %731 = vmatprep.subr.mxu0 0.0
    %732 = vmatpush1.msra.mxu0 %v60
    %733 = vmatprep.subr.mxu0 0.0
    %734 = vmatpush1.msra.mxu0 %v61
    %735 = vmatprep.subr.mxu0 0.0
    %736 = vmatpush1.msra.mxu0 %v62
    %737 = vmatprep.subr.mxu0 0.0
    %738 = vmatpush1.msra.mxu0 0.0
    %739 = vmatprep.subr.mxu0 0.0
    %740 = vmatpush1.msra.mxu0 0.0
    %741 = vmatprep.subr.mxu0 0.0
    %742 = vmatpush1.msra.mxu0 0.0
    %743 = vmatprep.subr.mxu0 0.0
    %744 = vmatpush1.msra.mxu0 0.0
    %745 = vmatprep.subr.mxu0 0.0
    %746 = vmatpush1.msra.mxu0 0.0
    %747 = vmatprep.subr.mxu0 0.0
    %748 = vmatpush1.msra.mxu0 0.0
    %749 = vmatprep.subr.mxu0 0.0
    %750 = vmatpush1.msra.mxu0 0.0
    %751 = vmatprep.subr.mxu0 0.0
    %752 = vmatpush1.msra.mxu0 0.0
    %753 = vmatprep.subr.mxu0 0.0
    %754 = vmatpush1.msra.mxu0 0.0
    %755 = vmatprep.subr.mxu0 0.0
    %756 = vmatpush1.msra.mxu0 0.0
    %757 = vmatprep.subr.mxu0 0.0
    %758 = vmatpush1.msra.mxu0 0.0
    %759 = vmatprep.subr.mxu0 0.0
    %760 = vmatpush1.msra.mxu0 0.0
    %761 = vmatprep.subr.mxu0 0.0
    %762 = vmatpush1.msra.mxu0 0.0
    %763 = vmatprep.subr.mxu0 0.0
    %764 = vmatpush1.msra.mxu0 0.0
    %765 = vmatprep.subr.mxu0 0.0
    %766 = vmatpush1.msra.mxu0 0.0
    %767 = vmatprep.subr.mxu0 0.0
    %768 = vmatpush1.msra.mxu0 0.0
    %769 = vmatprep.subr.mxu0 0.0
    %770 = vmatpush1.msra.mxu0 0.0
    %771 = vmatprep.subr.mxu0 0.0
    %772 = vmatpush1.msra.mxu0 0.0
    %773 = vmatprep.subr.mxu0 0.0
    %774 = vmatpush1.msra.mxu0 0.0
    %775 = vmatprep.subr.mxu0 0.0
    %776 = vmatpush1.msra.mxu0 0.0
    %777 = vmatprep.subr.mxu0 0.0
    %778 = vmatpush1.msra.mxu0 0.0
    %779 = vmatprep.subr.mxu0 0.0
    %780 = vmatpush1.msra.mxu0 0.0
    %781 = vmatprep.subr.mxu0 0.0
    %782 = vmatpush1.msra.mxu0 0.0
    %783 = vmatprep.subr.mxu0 0.0
    %784 = vmatpush1.msra.mxu0 0.0
    %785 = vmatprep.subr.mxu0 0.0
    %786 = vmatpush1.msra.mxu0 0.0
    %787 = vmatprep.subr.mxu0 0.0
    %788 = vmatpush1.msra.mxu0 0.0
    %789 = vmatprep.subr.mxu0 0.0
    %790 = vmatpush1.msra.mxu0 0.0
    %791 = vmatprep.subr.mxu0 0.0
    %792 = vmatpush1.msra.mxu0 0.0
    %793 = vmatprep.mubr.f32.mxu0 0.0
    %794 = vmatmul.mubr.f32.gmra.mrb[0].mxu0 %v727
    %v795 = vpop.f32.mrb[0].mxu0
    %v796 = vadd.f32 0.0, %v795
    %v797 = vpop.f32.mrb[0].mxu0
    %798 = vdwg.mxu0
    %799 = vset.pattern.permute.xlu0 2
    %800 = vperm.xlu0 %799, %v171
    %v801 = vpop.permute.xlu0 %800
    %v803 = vmul.f32 %v801, %v723
    %v804 = vadd.f32 %v593, %v803
    %v806 = vrot.slane %v696, 2
    %v808 = vadd.f32 %v153, %v806
    %v809 = vmul.f32 %v808, 0.5
    %v810 = vtanh.pop %v809
    %v811 = vadd.f32 %v810, 1.0
    %v812 = vmul.f32 %v811, 0.5
    %v813 = vtanh.pop %v808
    %v815 = vrot.slane %v616, 6
    %v817 = vmul.f32 %v812, %v815
    %819 = vrot.lane.b32.xlu0 %v813, 64
    %v820 = vpop.permute.xlu0 %819
    %v822 = vmul.f32 %v812, %v820
    %824 = vrot.lane.b32.xlu0 %v822, 32
    %v825 = vpop.permute.xlu0 %824
    %v827 = vadd.f32 %v817, %v825
    %v828 = vtanh.pop %v827
    %830 = vrot.lane.b32.xlu0 %v828, 64
    %v831 = vpop.permute.xlu0 %830
    %v833 = vmul.f32 %v812, %v831
    %v835 = vrot.slane %v833, 6
    %836 = vrot.lane.b32.xlu0 %v835, 32
    %v837 = vpop.permute.xlu0 %836
    %v838 = vsel %vm73, %v837, 0
    %840 = vmatprep.subr.mxu0 %v50
    %841 = vmatpush1.msra.mxu0 %v49
    %842 = vmatprep.subr.mxu0 %v52
    %843 = vmatpush1.msra.mxu0 %v51
    %844 = vmatprep.subr.mxu0 %v54
    %845 = vmatpush1.msra.mxu0 %v53
    %846 = vmatprep.subr.mxu0 %v56
    %847 = vmatpush1.msra.mxu0 %v55
    %848 = vmatprep.subr.mxu0 0.0
    %849 = vmatpush1.msra.mxu0 0.0
    %850 = vmatprep.subr.mxu0 0.0
    %851 = vmatpush1.msra.mxu0 0.0
    %852 = vmatprep.subr.mxu0 0.0
    %853 = vmatpush1.msra.mxu0 0.0
    %854 = vmatprep.subr.mxu0 0.0
    %855 = vmatpush1.msra.mxu0 0.0
    %856 = vmatprep.subr.mxu0 0.0
    %857 = vmatpush1.msra.mxu0 0.0
    %858 = vmatprep.subr.mxu0 0.0
    %859 = vmatpush1.msra.mxu0 0.0
    %860 = vmatprep.subr.mxu0 0.0
    %861 = vmatpush1.msra.mxu0 0.0
    %862 = vmatprep.subr.mxu0 0.0
    %863 = vmatpush1.msra.mxu0 0.0
    %864 = vmatprep.subr.mxu0 0.0
    %865 = vmatpush1.msra.mxu0 0.0
    %866 = vmatprep.subr.mxu0 0.0
    %867 = vmatpush1.msra.mxu0 0.0
    %868 = vmatprep.subr.mxu0 0.0
    %869 = vmatpush1.msra.mxu0 0.0
    %870 = vmatprep.subr.mxu0 0.0
    %871 = vmatpush1.msra.mxu0 0.0
    %872 = vmatprep.subr.mxu0 0.0
    %873 = vmatpush1.msra.mxu0 0.0
    %874 = vmatprep.subr.mxu0 0.0
    %875 = vmatpush1.msra.mxu0 0.0
    %876 = vmatprep.subr.mxu0 0.0
    %877 = vmatpush1.msra.mxu0 0.0
    %878 = vmatprep.subr.mxu0 0.0
    %879 = vmatpush1.msra.mxu0 0.0
    %880 = vmatprep.subr.mxu0 0.0
    %881 = vmatpush1.msra.mxu0 0.0
    %882 = vmatprep.subr.mxu0 0.0
    %883 = vmatpush1.msra.mxu0 0.0
    %884 = vmatprep.subr.mxu0 0.0
    %885 = vmatpush1.msra.mxu0 0.0
    %886 = vmatprep.subr.mxu0 0.0
    %887 = vmatpush1.msra.mxu0 0.0
    %888 = vmatprep.subr.mxu0 0.0
    %889 = vmatpush1.msra.mxu0 0.0
    %890 = vmatprep.subr.mxu0 0.0
    %891 = vmatpush1.msra.mxu0 0.0
    %892 = vmatprep.subr.mxu0 0.0
    %893 = vmatpush1.msra.mxu0 0.0
    %894 = vmatprep.subr.mxu0 0.0
    %895 = vmatpush1.msra.mxu0 0.0
    %896 = vmatprep.subr.mxu0 0.0
    %897 = vmatpush1.msra.mxu0 0.0
    %898 = vmatprep.subr.mxu0 0.0
    %899 = vmatpush1.msra.mxu0 0.0
    %900 = vmatprep.subr.mxu0 0.0
    %901 = vmatpush1.msra.mxu0 0.0
    %902 = vmatprep.subr.mxu0 0.0
    %903 = vmatpush1.msra.mxu0 0.0
    %904 = vmatprep.mubr.f32.mxu0 0.0
    %905 = vmatmul.mubr.f32.gmra.mrb[0].mxu0 %v838
    %v906 = vpop.f32.mrb[0].mxu0
    %v907 = vadd.f32 0.0, %v906
    %v908 = vpop.f32.mrb[0].mxu0
    %v909 = vadd.f32 0.0, %v908
    %910 = vdwg.mxu0
    %v911 = vadd.f32 %v909, %v796
    %v912 = vadd.f32 %v911, %v276
    %v913 = vmul.f32 %v912, 0.5
    %v914 = vtanh.pop %v913
    %v915 = vadd.f32 %v914, 1.0
    %v916 = vmul.f32 %v915, 0.5
    %v917 = vtanh.pop %v912
    %v918 = vmul.f32 %v916, %v717
    %920 = vrot.lane.b32.xlu0 %v917, 64
    %v921 = vpop.permute.xlu0 %920
    %v923 = vmul.f32 %v916, %v921
    %925 = vrot.lane.b32.xlu0 %v923, 32
    %v926 = vpop.permute.xlu0 %925
    %v928 = vadd.f32 %v918, %v926
    %v929 = vtanh.pop %v928
    %931 = vrot.lane.b32.xlu0 %v929, 64
    %v932 = vpop.permute.xlu0 %931
    %v934 = vmul.f32 %v916, %v932
    %936 = vrot.lane.b32.xlu0 %v934, 32
    %v937 = vpop.permute.xlu0 %936
    %v938 = vsel %vm73, %v937, 0
    %940 = vmatprep.subr.mxu0 0.0
    %941 = vmatpush1.msra.mxu0 %v59
    %942 = vmatprep.subr.mxu0 0.0
    %943 = vmatpush1.msra.mxu0 %v60
    %944 = vmatprep.subr.mxu0 0.0
    %945 = vmatpush1.msra.mxu0 %v61
    %946 = vmatprep.subr.mxu0 0.0
    %947 = vmatpush1.msra.mxu0 %v62
    %948 = vmatprep.subr.mxu0 0.0
    %949 = vmatpush1.msra.mxu0 0.0
    %950 = vmatprep.subr.mxu0 0.0
    %951 = vmatpush1.msra.mxu0 0.0
    %952 = vmatprep.subr.mxu0 0.0
    %953 = vmatpush1.msra.mxu0 0.0
    %954 = vmatprep.subr.mxu0 0.0
    %955 = vmatpush1.msra.mxu0 0.0
    %956 = vmatprep.subr.mxu0 0.0
    %957 = vmatpush1.msra.mxu0 0.0
    %958 = vmatprep.subr.mxu0 0.0
    %959 = vmatpush1.msra.mxu0 0.0
    %960 = vmatprep.subr.mxu0 0.0
    %961 = vmatpush1.msra.mxu0 0.0
    %962 = vmatprep.subr.mxu0 0.0
    %963 = vmatpush1.msra.mxu0 0.0
    %964 = vmatprep.subr.mxu0 0.0
    %965 = vmatpush1.msra.mxu0 0.0
    %966 = vmatprep.subr.mxu0 0.0
    %967 = vmatpush1.msra.mxu0 0.0
    %968 = vmatprep.subr.mxu0 0.0
    %969 = vmatpush1.msra.mxu0 0.0
    %970 = vmatprep.subr.mxu0 0.0
    %971 = vmatpush1.msra.mxu0 0.0
    %972 = vmatprep.subr.mxu0 0.0
    %973 = vmatpush1.msra.mxu0 0.0
    %974 = vmatprep.subr.mxu0 0.0
    %975 = vmatpush1.msra.mxu0 0.0
    %976 = vmatprep.subr.mxu0 0.0
    %977 = vmatpush1.msra.mxu0 0.0
    %978 = vmatprep.subr.mxu0 0.0
    %979 = vmatpush1.msra.mxu0 0.0
    %980 = vmatprep.subr.mxu0 0.0
    %981 = vmatpush1.msra.mxu0 0.0
    %982 = vmatprep.subr.mxu0 0.0
    %983 = vmatpush1.msra.mxu0 0.0
    %984 = vmatprep.subr.mxu0 0.0
    %985 = vmatpush1.msra.mxu0 0.0
    %986 = vmatprep.subr.mxu0 0.0
    %987 = vmatpush1.msra.mxu0 0.0
    %988 = vmatprep.subr.mxu0 0.0
    %989 = vmatpush1.msra.mxu0 0.0
    %990 = vmatprep.subr.mxu0 0.0
    %991 = vmatpush1.msra.mxu0 0.0
    %992 = vmatprep.subr.mxu0 0.0
    %993 = vmatpush1.msra.mxu0 0.0
    %994 = vmatprep.subr.mxu0 0.0
    %995 = vmatpush1.msra.mxu0 0.0
    %996 = vmatprep.subr.mxu0 0.0
    %997 = vmatpush1.msra.mxu0 0.0
    %998 = vmatprep.subr.mxu0 0.0
    %999 = vmatpush1.msra.mxu0 0.0
    %1000 = vmatprep.subr.mxu0 0.0
    %1001 = vmatpush1.msra.mxu0 0.0
    %1002 = vmatprep.subr.mxu0 0.0
    %1003 = vmatpush1.msra.mxu0 0.0
    %1004 = vmatprep.mubr.f32.mxu0 0.0
    %1005 = vmatmul.mubr.f32.gmra.mrb[0].mxu0 %v938
    %v1006 = vpop.f32.mrb[0].mxu0
    %v1007 = vadd.f32 0.0, %v1006
    %v1008 = vpop.f32.mrb[0].mxu0
    %1009 = vdwg.mxu0
    %1010 = vset.pattern.permute.xlu0 3
    %1011 = vperm.xlu0 %1010, %v171
    %v1012 = vpop.permute.xlu0 %1011
    %v1014 = vmul.f32 %v1012, %v934
    %v1015 = vadd.f32 %v804, %v1014
    %v1016 = vadd.f32 %v158, %v907
    %v1017 = vmul.f32 %v1016, 0.5
    %v1018 = vtanh.pop %v1017
    %v1019 = vadd.f32 %v1018, 1.0
    %v1020 = vmul.f32 %v1019, 0.5
    %v1021 = vtanh.pop %v1016
    %v1023 = vrot.slane %v827, 6
    %v1025 = vmul.f32 %v1020, %v1023
    %1027 = vrot.lane.b32.xlu0 %v1021, 64
    %v1028 = vpop.permute.xlu0 %1027
    %v1030 = vmul.f32 %v1020, %v1028
    %1032 = vrot.lane.b32.xlu0 %v1030, 32
    %v1033 = vpop.permute.xlu0 %1032
    %v1035 = vadd.f32 %v1025, %v1033
    %v1036 = vtanh.pop %v1035
    %1038 = vrot.lane.b32.xlu0 %v1036, 64
    %v1039 = vpop.permute.xlu0 %1038
    %v1041 = vmul.f32 %v1020, %v1039
    %1043 = vrot.lane.b32.xlu0 %v1041, 32
    %v1044 = vpop.permute.xlu0 %1043
    %v1045 = vsel %vm73, %v1044, 0
    %1047 = vmatprep.subr.mxu0 %v50
    %1048 = vmatpush1.msra.mxu0 %v49
    %1049 = vmatprep.subr.mxu0 %v52
    %1050 = vmatpush1.msra.mxu0 %v51
    %1051 = vmatprep.subr.mxu0 %v54
    %1052 = vmatpush1.msra.mxu0 %v53
    %1053 = vmatprep.subr.mxu0 %v56
    %1054 = vmatpush1.msra.mxu0 %v55
    %1055 = vmatprep.subr.mxu0 0.0
    %1056 = vmatpush1.msra.mxu0 0.0
    %1057 = vmatprep.subr.mxu0 0.0
    %1058 = vmatpush1.msra.mxu0 0.0
    %1059 = vmatprep.subr.mxu0 0.0
    %1060 = vmatpush1.msra.mxu0 0.0
    %1061 = vmatprep.subr.mxu0 0.0
    %1062 = vmatpush1.msra.mxu0 0.0
    %1063 = vmatprep.subr.mxu0 0.0
    %1064 = vmatpush1.msra.mxu0 0.0
    %1065 = vmatprep.subr.mxu0 0.0
    %1066 = vmatpush1.msra.mxu0 0.0
    %1067 = vmatprep.subr.mxu0 0.0
    %1068 = vmatpush1.msra.mxu0 0.0
    %1069 = vmatprep.subr.mxu0 0.0
    %1070 = vmatpush1.msra.mxu0 0.0
    %1071 = vmatprep.subr.mxu0 0.0
    %1072 = vmatpush1.msra.mxu0 0.0
    %1073 = vmatprep.subr.mxu0 0.0
    %1074 = vmatpush1.msra.mxu0 0.0
    %1075 = vmatprep.subr.mxu0 0.0
    %1076 = vmatpush1.msra.mxu0 0.0
    %1077 = vmatprep.subr.mxu0 0.0
    %1078 = vmatpush1.msra.mxu0 0.0
    %1079 = vmatprep.subr.mxu0 0.0
    %1080 = vmatpush1.msra.mxu0 0.0
    %1081 = vmatprep.subr.mxu0 0.0
    %1082 = vmatpush1.msra.mxu0 0.0
    %1083 = vmatprep.subr.mxu0 0.0
    %1084 = vmatpush1.msra.mxu0 0.0
    %1085 = vmatprep.subr.mxu0 0.0
    %1086 = vmatpush1.msra.mxu0 0.0
    %1087 = vmatprep.subr.mxu0 0.0
    %1088 = vmatpush1.msra.mxu0 0.0
    %1089 = vmatprep.subr.mxu0 0.0
    %1090 = vmatpush1.msra.mxu0 0.0
    %1091 = vmatprep.subr.mxu0 0.0
    %1092 = vmatpush1.msra.mxu0 0.0
    %1093 = vmatprep.subr.mxu0 0.0
    %1094 = vmatpush1.msra.mxu0 0.0
    %1095 = vmatprep.subr.mxu0 0.0
    %1096 = vmatpush1.msra.mxu0 0.0
    %1097 = vmatprep.subr.mxu0 0.0
    %1098 = vmatpush1.msra.mxu0 0.0
    %1099 = vmatprep.subr.mxu0 0.0
    %1100 = vmatpush1.msra.mxu0 0.0
    %1101 = vmatprep.subr.mxu0 0.0
    %1102 = vmatpush1.msra.mxu0 0.0
    %1103 = vmatprep.subr.mxu0 0.0
    %1104 = vmatpush1.msra.mxu0 0.0
    %1105 = vmatprep.subr.mxu0 0.0
    %1106 = vmatpush1.msra.mxu0 0.0
    %1107 = vmatprep.subr.mxu0 0.0
    %1108 = vmatpush1.msra.mxu0 0.0
    %1109 = vmatprep.subr.mxu0 0.0
    %1110 = vmatpush1.msra.mxu0 0.0
    %1111 = vmatprep.mubr.f32.mxu0 0.0
    %1112 = vmatmul.mubr.f32.gmra.mrb[0].mxu0 %v1045
    %v1113 = vpop.f32.mrb[0].mxu0
    %v1114 = vadd.f32 0.0, %v1113
    %v1115 = vpop.f32.mrb[0].mxu0
    %v1116 = vadd.f32 0.0, %v1115
    %1117 = vdwg.mxu0
    %v1118 = vadd.f32 %v1116, %v1007
    %v1119 = vadd.f32 %v1118, %v276
    %v1120 = vmul.f32 %v1119, 0.5
    %v1121 = vtanh.pop %v1120
    %v1122 = vadd.f32 %v1121, 1.0
    %v1123 = vmul.f32 %v1122, 0.5
    %v1124 = vtanh.pop %v1119
    %v1125 = vmul.f32 %v1123, %v928
    %1127 = vrot.lane.b32.xlu0 %v1124, 64
    %v1128 = vpop.permute.xlu0 %1127
    %v1130 = vmul.f32 %v1123, %v1128
    %1132 = vrot.lane.b32.xlu0 %v1130, 32
    %v1133 = vpop.permute.xlu0 %1132
    %v1135 = vadd.f32 %v1125, %v1133
    %v1136 = vtanh.pop %v1135
    %1138 = vrot.lane.b32.xlu0 %v1136, 64
    %v1139 = vpop.permute.xlu0 %1138
    %v1141 = vmul.f32 %v1123, %v1139
    %1143 = vrot.lane.b32.xlu0 %v1141, 32
    %v1144 = vpop.permute.xlu0 %1143
    %v1145 = vsel %vm73, %v1144, 0
    %1147 = vmatprep.subr.mxu0 0.0
    %1148 = vmatpush1.msra.mxu0 %v59
    %1149 = vmatprep.subr.mxu0 0.0
    %1150 = vmatpush1.msra.mxu0 %v60
    %1151 = vmatprep.subr.mxu0 0.0
    %1152 = vmatpush1.msra.mxu0 %v61
    %1153 = vmatprep.subr.mxu0 0.0
    %1154 = vmatpush1.msra.mxu0 %v62
    %1155 = vmatprep.subr.mxu0 0.0
    %1156 = vmatpush1.msra.mxu0 0.0
    %1157 = vmatprep.subr.mxu0 0.0
    %1158 = vmatpush1.msra.mxu0 0.0
    %1159 = vmatprep.subr.mxu0 0.0
    %1160 = vmatpush1.msra.mxu0 0.0
    %1161 = vmatprep.subr.mxu0 0.0
    %1162 = vmatpush1.msra.mxu0 0.0
    %1163 = vmatprep.subr.mxu0 0.0
    %1164 = vmatpush1.msra.mxu0 0.0
    %1165 = vmatprep.subr.mxu0 0.0
    %1166 = vmatpush1.msra.mxu0 0.0
    %1167 = vmatprep.subr.mxu0 0.0
    %1168 = vmatpush1.msra.mxu0 0.0
    %1169 = vmatprep.subr.mxu0 0.0
    %1170 = vmatpush1.msra.mxu0 0.0
    %1171 = vmatprep.subr.mxu0 0.0
    %1172 = vmatpush1.msra.mxu0 0.0
    %1173 = vmatprep.subr.mxu0 0.0
    %1174 = vmatpush1.msra.mxu0 0.0
    %1175 = vmatprep.subr.mxu0 0.0
    %1176 = vmatpush1.msra.mxu0 0.0
    %1177 = vmatprep.subr.mxu0 0.0
    %1178 = vmatpush1.msra.mxu0 0.0
    %1179 = vmatprep.subr.mxu0 0.0
    %1180 = vmatpush1.msra.mxu0 0.0
    %1181 = vmatprep.subr.mxu0 0.0
    %1182 = vmatpush1.msra.mxu0 0.0
    %1183 = vmatprep.subr.mxu0 0.0
    %1184 = vmatpush1.msra.mxu0 0.0
    %1185 = vmatprep.subr.mxu0 0.0
    %1186 = vmatpush1.msra.mxu0 0.0
    %1187 = vmatprep.subr.mxu0 0.0
    %1188 = vmatpush1.msra.mxu0 0.0
    %1189 = vmatprep.subr.mxu0 0.0
    %1190 = vmatpush1.msra.mxu0 0.0
    %1191 = vmatprep.subr.mxu0 0.0
    %1192 = vmatpush1.msra.mxu0 0.0
    %1193 = vmatprep.subr.mxu0 0.0
    %1194 = vmatpush1.msra.mxu0 0.0
    %1195 = vmatprep.subr.mxu0 0.0
    %1196 = vmatpush1.msra.mxu0 0.0
    %1197 = vmatprep.subr.mxu0 0.0
    %1198 = vmatpush1.msra.mxu0 0.0
    %1199 = vmatprep.subr.mxu0 0.0
    %1200 = vmatpush1.msra.mxu0 0.0
    %1201 = vmatprep.subr.mxu0 0.0
    %1202 = vmatpush1.msra.mxu0 0.0
    %1203 = vmatprep.subr.mxu0 0.0
    %1204 = vmatpush1.msra.mxu0 0.0
    %1205 = vmatprep.subr.mxu0 0.0
    %1206 = vmatpush1.msra.mxu0 0.0
    %1207 = vmatprep.subr.mxu0 0.0
    %1208 = vmatpush1.msra.mxu0 0.0
    %1209 = vmatprep.subr.mxu0 0.0
    %1210 = vmatpush1.msra.mxu0 0.0
    %1211 = vmatprep.mubr.f32.mxu0 0.0
    %1212 = vmatmul.mubr.f32.gmra.mrb[0].mxu0 %v1145
    %v1213 = vpop.f32.mrb[0].mxu0
    %v1214 = vadd.f32 0.0, %v1213
    %v1215 = vpop.f32.mrb[0].mxu0
    %1216 = vdwg.mxu0
    %1217 = vset.pattern.permute.xlu0 4
    %1218 = vperm.xlu0 %1217, %v171
    %v1219 = vpop.permute.xlu0 %1218
    %v1221 = vmul.f32 %v1219, %v1141
    %v1222 = vadd.f32 %v1015, %v1221
    %v1224 = vrot.slane %v1114, 6
    %v1226 = vadd.f32 %v158, %v1224
    %v1227 = vmul.f32 %v1226, 0.5
    %v1228 = vtanh.pop %v1227
    %v1229 = vadd.f32 %v1228, 1.0
    %v1230 = vmul.f32 %v1229, 0.5
    %v1231 = vtanh.pop %v1226
    %v1233 = vrot.slane %v1035, 6
    %v1235 = vmul.f32 %v1230, %v1233
    %1237 = vrot.lane.b32.xlu0 %v1231, 64
    %v1238 = vpop.permute.xlu0 %1237
    %v1240 = vmul.f32 %v1230, %v1238
    %1242 = vrot.lane.b32.xlu0 %v1240, 32
    %v1243 = vpop.permute.xlu0 %1242
    %v1245 = vadd.f32 %v1235, %v1243
    %v1246 = vtanh.pop %v1245
    %1248 = vrot.lane.b32.xlu0 %v1246, 64
    %v1249 = vpop.permute.xlu0 %1248
    %v1251 = vmul.f32 %v1230, %v1249
    %v1253 = vrot.slane %v1251, 2
    %1254 = vrot.lane.b32.xlu0 %v1253, 32
    %v1255 = vpop.permute.xlu0 %1254
    %v1256 = vsel %vm73, %v1255, 0
    %1258 = vmatprep.subr.mxu0 %v50
    %1259 = vmatpush1.msra.mxu0 %v49
    %1260 = vmatprep.subr.mxu0 %v52
    %1261 = vmatpush1.msra.mxu0 %v51
    %1262 = vmatprep.subr.mxu0 %v54
    %1263 = vmatpush1.msra.mxu0 %v53
    %1264 = vmatprep.subr.mxu0 %v56
    %1265 = vmatpush1.msra.mxu0 %v55
    %1266 = vmatprep.subr.mxu0 0.0
    %1267 = vmatpush1.msra.mxu0 0.0
    %1268 = vmatprep.subr.mxu0 0.0
    %1269 = vmatpush1.msra.mxu0 0.0
    %1270 = vmatprep.subr.mxu0 0.0
    %1271 = vmatpush1.msra.mxu0 0.0
    %1272 = vmatprep.subr.mxu0 0.0
    %1273 = vmatpush1.msra.mxu0 0.0
    %1274 = vmatprep.subr.mxu0 0.0
    %1275 = vmatpush1.msra.mxu0 0.0
    %1276 = vmatprep.subr.mxu0 0.0
    %1277 = vmatpush1.msra.mxu0 0.0
    %1278 = vmatprep.subr.mxu0 0.0
    %1279 = vmatpush1.msra.mxu0 0.0
    %1280 = vmatprep.subr.mxu0 0.0
    %1281 = vmatpush1.msra.mxu0 0.0
    %1282 = vmatprep.subr.mxu0 0.0
    %1283 = vmatpush1.msra.mxu0 0.0
    %1284 = vmatprep.subr.mxu0 0.0
    %1285 = vmatpush1.msra.mxu0 0.0
    %1286 = vmatprep.subr.mxu0 0.0
    %1287 = vmatpush1.msra.mxu0 0.0
    %1288 = vmatprep.subr.mxu0 0.0
    %1289 = vmatpush1.msra.mxu0 0.0
    %1290 = vmatprep.subr.mxu0 0.0
    %1291 = vmatpush1.msra.mxu0 0.0
    %1292 = vmatprep.subr.mxu0 0.0
    %1293 = vmatpush1.msra.mxu0 0.0
    %1294 = vmatprep.subr.mxu0 0.0
    %1295 = vmatpush1.msra.mxu0 0.0
    %1296 = vmatprep.subr.mxu0 0.0
    %1297 = vmatpush1.msra.mxu0 0.0
    %1298 = vmatprep.subr.mxu0 0.0
    %1299 = vmatpush1.msra.mxu0 0.0
    %1300 = vmatprep.subr.mxu0 0.0
    %1301 = vmatpush1.msra.mxu0 0.0
    %1302 = vmatprep.subr.mxu0 0.0
    %1303 = vmatpush1.msra.mxu0 0.0
    %1304 = vmatprep.subr.mxu0 0.0
    %1305 = vmatpush1.msra.mxu0 0.0
    %1306 = vmatprep.subr.mxu0 0.0
    %1307 = vmatpush1.msra.mxu0 0.0
    %1308 = vmatprep.subr.mxu0 0.0
    %1309 = vmatpush1.msra.mxu0 0.0
    %1310 = vmatprep.subr.mxu0 0.0
    %1311 = vmatpush1.msra.mxu0 0.0
    %1312 = vmatprep.subr.mxu0 0.0
    %1313 = vmatpush1.msra.mxu0 0.0
    %1314 = vmatprep.subr.mxu0 0.0
    %1315 = vmatpush1.msra.mxu0 0.0
    %1316 = vmatprep.subr.mxu0 0.0
    %1317 = vmatpush1.msra.mxu0 0.0
    %1318 = vmatprep.subr.mxu0 0.0
    %1319 = vmatpush1.msra.mxu0 0.0
    %1320 = vmatprep.subr.mxu0 0.0
    %1321 = vmatpush1.msra.mxu0 0.0
    %1322 = vmatprep.mubr.f32.mxu0 0.0
    %1323 = vmatmul.mubr.f32.gmra.mrb[0].mxu0 %v1256
    %v1324 = vpop.f32.mrb[0].mxu0
    %v1325 = vadd.f32 0.0, %v1324
    %v1326 = vpop.f32.mrb[0].mxu0
    %v1327 = vadd.f32 0.0, %v1326
    %1328 = vdwg.mxu0
    %v1329 = vadd.f32 %v1327, %v1214
    %v1330 = vadd.f32 %v1329, %v276
    %v1331 = vmul.f32 %v1330, 0.5
    %v1332 = vtanh.pop %v1331
    %v1333 = vadd.f32 %v1332, 1.0
    %v1334 = vmul.f32 %v1333, 0.5
    %v1335 = vtanh.pop %v1330
    %v1336 = vmul.f32 %v1334, %v1135
    %1338 = vrot.lane.b32.xlu0 %v1335, 64
    %v1339 = vpop.permute.xlu0 %1338
    %v1341 = vmul.f32 %v1334, %v1339
    %1343 = vrot.lane.b32.xlu0 %v1341, 32
    %v1344 = vpop.permute.xlu0 %1343
    %v1346 = vadd.f32 %v1336, %v1344
    %v1347 = vtanh.pop %v1346
    %1349 = vrot.lane.b32.xlu0 %v1347, 64
    %v1350 = vpop.permute.xlu0 %1349
    %v1352 = vmul.f32 %v1334, %v1350
    %1354 = vrot.lane.b32.xlu0 %v1352, 32
    %v1355 = vpop.permute.xlu0 %1354
    %v1356 = vsel %vm73, %v1355, 0
    %1358 = vmatprep.subr.mxu0 0.0
    %1359 = vmatpush1.msra.mxu0 %v59
    %1360 = vmatprep.subr.mxu0 0.0
    %1361 = vmatpush1.msra.mxu0 %v60
    %1362 = vmatprep.subr.mxu0 0.0
    %1363 = vmatpush1.msra.mxu0 %v61
    %1364 = vmatprep.subr.mxu0 0.0
    %1365 = vmatpush1.msra.mxu0 %v62
    %1366 = vmatprep.subr.mxu0 0.0
    %1367 = vmatpush1.msra.mxu0 0.0
    %1368 = vmatprep.subr.mxu0 0.0
    %1369 = vmatpush1.msra.mxu0 0.0
    %1370 = vmatprep.subr.mxu0 0.0
    %1371 = vmatpush1.msra.mxu0 0.0
    %1372 = vmatprep.subr.mxu0 0.0
    %1373 = vmatpush1.msra.mxu0 0.0
    %1374 = vmatprep.subr.mxu0 0.0
    %1375 = vmatpush1.msra.mxu0 0.0
    %1376 = vmatprep.subr.mxu0 0.0
    %1377 = vmatpush1.msra.mxu0 0.0
    %1378 = vmatprep.subr.mxu0 0.0
    %1379 = vmatpush1.msra.mxu0 0.0
    %1380 = vmatprep.subr.mxu0 0.0
    %1381 = vmatpush1.msra.mxu0 0.0
    %1382 = vmatprep.subr.mxu0 0.0
    %1383 = vmatpush1.msra.mxu0 0.0
    %1384 = vmatprep.subr.mxu0 0.0
    %1385 = vmatpush1.msra.mxu0 0.0
    %1386 = vmatprep.subr.mxu0 0.0
    %1387 = vmatpush1.msra.mxu0 0.0
    %1388 = vmatprep.subr.mxu0 0.0
    %1389 = vmatpush1.msra.mxu0 0.0
    %1390 = vmatprep.subr.mxu0 0.0
    %1391 = vmatpush1.msra.mxu0 0.0
    %1392 = vmatprep.subr.mxu0 0.0
    %1393 = vmatpush1.msra.mxu0 0.0
    %1394 = vmatprep.subr.mxu0 0.0
    %1395 = vmatpush1.msra.mxu0 0.0
    %1396 = vmatprep.subr.mxu0 0.0
    %1397 = vmatpush1.msra.mxu0 0.0
    %1398 = vmatprep.subr.mxu0 0.0
    %1399 = vmatpush1.msra.mxu0 0.0
    %1400 = vmatprep.subr.mxu0 0.0
    %1401 = vmatpush1.msra.mxu0 0.0
    %1402 = vmatprep.subr.mxu0 0.0
    %1403 = vmatpush1.msra.mxu0 0.0
    %1404 = vmatprep.subr.mxu0 0.0
    %1405 = vmatpush1.msra.mxu0 0.0
    %1406 = vmatprep.subr.mxu0 0.0
    %1407 = vmatpush1.msra.mxu0 0.0
    %1408 = vmatprep.subr.mxu0 0.0
    %1409 = vmatpush1.msra.mxu0 0.0
    %1410 = vmatprep.subr.mxu0 0.0
    %1411 = vmatpush1.msra.mxu0 0.0
    %1412 = vmatprep.subr.mxu0 0.0
    %1413 = vmatpush1.msra.mxu0 0.0
    %1414 = vmatprep.subr.mxu0 0.0
    %1415 = vmatpush1.msra.mxu0 0.0
    %1416 = vmatprep.subr.mxu0 0.0
    %1417 = vmatpush1.msra.mxu0 0.0
    %1418 = vmatprep.subr.mxu0 0.0
    %1419 = vmatpush1.msra.mxu0 0.0
    %1420 = vmatprep.subr.mxu0 0.0
    %1421 = vmatpush1.msra.mxu0 0.0
    %1422 = vmatprep.mubr.f32.mxu0 0.0
    %1423 = vmatmul.mubr.f32.gmra.mrb[0].mxu0 %v1356
    %v1424 = vpop.f32.mrb[0].mxu0
    %v1425 = vadd.f32 0.0, %v1424
    %v1426 = vpop.f32.mrb[0].mxu0
    %1427 = vdwg.mxu0
    %1428 = vset.pattern.permute.xlu0 5
    %1429 = vperm.xlu0 %1428, %v171
    %v1430 = vpop.permute.xlu0 %1429
    %v1432 = vmul.f32 %v1430, %v1352
    %v1433 = vadd.f32 %v1222, %v1432
    %v1435 = vrot.slane %v1325, 4
    %v1437 = vadd.f32 %v158, %v1435
    %v1438 = vmul.f32 %v1437, 0.5
    %v1439 = vtanh.pop %v1438
    %v1440 = vadd.f32 %v1439, 1.0
    %v1441 = vmul.f32 %v1440, 0.5
    %v1442 = vtanh.pop %v1437
    %v1444 = vrot.slane %v1245, 6
    %v1446 = vmul.f32 %v1441, %v1444
    %1448 = vrot.lane.b32.xlu0 %v1442, 64
    %v1449 = vpop.permute.xlu0 %1448
    %v1451 = vmul.f32 %v1441, %v1449
    %1453 = vrot.lane.b32.xlu0 %v1451, 32
    %v1454 = vpop.permute.xlu0 %1453
    %v1456 = vadd.f32 %v1446, %v1454
    %v1457 = vtanh.pop %v1456
    %1459 = vrot.lane.b32.xlu0 %v1457, 64
    %v1460 = vpop.permute.xlu0 %1459
    %v1462 = vmul.f32 %v1441, %v1460
    %v1464 = vrot.slane %v1462, 4
    %1465 = vrot.lane.b32.xlu0 %v1464, 32
    %v1466 = vpop.permute.xlu0 %1465
    %v1467 = vsel %vm73, %v1466, 0
    %1469 = vmatprep.subr.mxu0 %v50
    %1470 = vmatpush1.msra.mxu0 %v49
    %1471 = vmatprep.subr.mxu0 %v52
    %1472 = vmatpush1.msra.mxu0 %v51
    %1473 = vmatprep.subr.mxu0 %v54
    %1474 = vmatpush1.msra.mxu0 %v53
    %1475 = vmatprep.subr.mxu0 %v56
    %1476 = vmatpush1.msra.mxu0 %v55
    %1477 = vmatprep.subr.mxu0 0.0
    %1478 = vmatpush1.msra.mxu0 0.0
    %1479 = vmatprep.subr.mxu0 0.0
    %1480 = vmatpush1.msra.mxu0 0.0
    %1481 = vmatprep.subr.mxu0 0.0
    %1482 = vmatpush1.msra.mxu0 0.0
    %1483 = vmatprep.subr.mxu0 0.0
    %1484 = vmatpush1.msra.mxu0 0.0
    %1485 = vmatprep.subr.mxu0 0.0
    %1486 = vmatpush1.msra.mxu0 0.0
    %1487 = vmatprep.subr.mxu0 0.0
    %1488 = vmatpush1.msra.mxu0 0.0
    %1489 = vmatprep.subr.mxu0 0.0
    %1490 = vmatpush1.msra.mxu0 0.0
    %1491 = vmatprep.subr.mxu0 0.0
    %1492 = vmatpush1.msra.mxu0 0.0
    %1493 = vmatprep.subr.mxu0 0.0
    %1494 = vmatpush1.msra.mxu0 0.0
    %1495 = vmatprep.subr.mxu0 0.0
    %1496 = vmatpush1.msra.mxu0 0.0
    %1497 = vmatprep.subr.mxu0 0.0
    %1498 = vmatpush1.msra.mxu0 0.0
    %1499 = vmatprep.subr.mxu0 0.0
    %1500 = vmatpush1.msra.mxu0 0.0
    %1501 = vmatprep.subr.mxu0 0.0
    %1502 = vmatpush1.msra.mxu0 0.0
    %1503 = vmatprep.subr.mxu0 0.0
    %1504 = vmatpush1.msra.mxu0 0.0
    %1505 = vmatprep.subr.mxu0 0.0
    %1506 = vmatpush1.msra.mxu0 0.0
    %1507 = vmatprep.subr.mxu0 0.0
    %1508 = vmatpush1.msra.mxu0 0.0
    %1509 = vmatprep.subr.mxu0 0.0
    %1510 = vmatpush1.msra.mxu0 0.0
    %1511 = vmatprep.subr.mxu0 0.0
    %1512 = vmatpush1.msra.mxu0 0.0
    %1513 = vmatprep.subr.mxu0 0.0
    %1514 = vmatpush1.msra.mxu0 0.0
    %1515 = vmatprep.subr.mxu0 0.0
    %1516 = vmatpush1.msra.mxu0 0.0
    %1517 = vmatprep.subr.mxu0 0.0
    %1518 = vmatpush1.msra.mxu0 0.0
    %1519 = vmatprep.subr.mxu0 0.0
    %1520 = vmatpush1.msra.mxu0 0.0
    %1521 = vmatprep.subr.mxu0 0.0
    %1522 = vmatpush1.msra.mxu0 0.0
    %1523 = vmatprep.subr.mxu0 0.0
    %1524 = vmatpush1.msra.mxu0 0.0
    %1525 = vmatprep.subr.mxu0 0.0
    %1526 = vmatpush1.msra.mxu0 0.0
    %1527 = vmatprep.subr.mxu0 0.0
    %1528 = vmatpush1.msra.mxu0 0.0
    %1529 = vmatprep.subr.mxu0 0.0
    %1530 = vmatpush1.msra.mxu0 0.0
    %1531 = vmatprep.subr.mxu0 0.0
    %1532 = vmatpush1.msra.mxu0 0.0
    %1533 = vmatprep.mubr.f32.mxu0 0.0
    %1534 = vmatmul.mubr.f32.gmra.mrb[0].mxu0 %v1467
    %v1535 = vpop.f32.mrb[0].mxu0
    %v1536 = vadd.f32 0.0, %v1535
    %v1537 = vpop.f32.mrb[0].mxu0
    %v1538 = vadd.f32 0.0, %v1537
    %1539 = vdwg.mxu0
    %v1540 = vadd.f32 %v1538, %v1425
    %v1541 = vadd.f32 %v1540, %v276
    %v1542 = vmul.f32 %v1541, 0.5
    %v1543 = vtanh.pop %v1542
    %v1544 = vadd.f32 %v1543, 1.0
    %v1545 = vmul.f32 %v1544, 0.5
    %v1546 = vtanh.pop %v1541
    %v1547 = vmul.f32 %v1545, %v1346
    %1549 = vrot.lane.b32.xlu0 %v1546, 64
    %v1550 = vpop.permute.xlu0 %1549
    %v1552 = vmul.f32 %v1545, %v1550
    %1554 = vrot.lane.b32.xlu0 %v1552, 32
    %v1555 = vpop.permute.xlu0 %1554
    %v1557 = vadd.f32 %v1547, %v1555
    %v1558 = vtanh.pop %v1557
    %1560 = vrot.lane.b32.xlu0 %v1558, 64
    %v1561 = vpop.permute.xlu0 %1560
    %v1563 = vmul.f32 %v1545, %v1561
    %1565 = vrot.lane.b32.xlu0 %v1563, 32
    %v1566 = vpop.permute.xlu0 %1565
    %v1567 = vsel %vm73, %v1566, 0
    %1569 = vmatprep.subr.mxu0 0.0
    %1570 = vmatpush1.msra.mxu0 %v59
    %1571 = vmatprep.subr.mxu0 0.0
    %1572 = vmatpush1.msra.mxu0 %v60
    %1573 = vmatprep.subr.mxu0 0.0
    %1574 = vmatpush1.msra.mxu0 %v61
    %1575 = vmatprep.subr.mxu0 0.0
    %1576 = vmatpush1.msra.mxu0 %v62
    %1577 = vmatprep.subr.mxu0 0.0
    %1578 = vmatpush1.msra.mxu0 0.0
    %1579 = vmatprep.subr.mxu0 0.0
    %1580 = vmatpush1.msra.mxu0 0.0
    %1581 = vmatprep.subr.mxu0 0.0
    %1582 = vmatpush1.msra.mxu0 0.0
    %1583 = vmatprep.subr.mxu0 0.0
    %1584 = vmatpush1.msra.mxu0 0.0
    %1585 = vmatprep.subr.mxu0 0.0
    %1586 = vmatpush1.msra.mxu0 0.0
    %1587 = vmatprep.subr.mxu0 0.0
    %1588 = vmatpush1.msra.mxu0 0.0
    %1589 = vmatprep.subr.mxu0 0.0
    %1590 = vmatpush1.msra.mxu0 0.0
    %1591 = vmatprep.subr.mxu0 0.0
    %1592 = vmatpush1.msra.mxu0 0.0
    %1593 = vmatprep.subr.mxu0 0.0
    %1594 = vmatpush1.msra.mxu0 0.0
    %1595 = vmatprep.subr.mxu0 0.0
    %1596 = vmatpush1.msra.mxu0 0.0
    %1597 = vmatprep.subr.mxu0 0.0
    %1598 = vmatpush1.msra.mxu0 0.0
    %1599 = vmatprep.subr.mxu0 0.0
    %1600 = vmatpush1.msra.mxu0 0.0
    %1601 = vmatprep.subr.mxu0 0.0
    %1602 = vmatpush1.msra.mxu0 0.0
    %1603 = vmatprep.subr.mxu0 0.0
    %1604 = vmatpush1.msra.mxu0 0.0
    %1605 = vmatprep.subr.mxu0 0.0
    %1606 = vmatpush1.msra.mxu0 0.0
    %1607 = vmatprep.subr.mxu0 0.0
    %1608 = vmatpush1.msra.mxu0 0.0
    %1609 = vmatprep.subr.mxu0 0.0
    %1610 = vmatpush1.msra.mxu0 0.0
    %1611 = vmatprep.subr.mxu0 0.0
    %1612 = vmatpush1.msra.mxu0 0.0
    %1613 = vmatprep.subr.mxu0 0.0
    %1614 = vmatpush1.msra.mxu0 0.0
    %1615 = vmatprep.subr.mxu0 0.0
    %1616 = vmatpush1.msra.mxu0 0.0
    %1617 = vmatprep.subr.mxu0 0.0
    %1618 = vmatpush1.msra.mxu0 0.0
    %1619 = vmatprep.subr.mxu0 0.0
    %1620 = vmatpush1.msra.mxu0 0.0
    %1621 = vmatprep.subr.mxu0 0.0
    %1622 = vmatpush1.msra.mxu0 0.0
    %1623 = vmatprep.subr.mxu0 0.0
    %1624 = vmatpush1.msra.mxu0 0.0
    %1625 = vmatprep.subr.mxu0 0.0
    %1626 = vmatpush1.msra.mxu0 0.0
    %1627 = vmatprep.subr.mxu0 0.0
    %1628 = vmatpush1.msra.mxu0 0.0
    %1629 = vmatprep.subr.mxu0 0.0
    %1630 = vmatpush1.msra.mxu0 0.0
    %1631 = vmatprep.subr.mxu0 0.0
    %1632 = vmatpush1.msra.mxu0 0.0
    %1633 = vmatprep.mubr.f32.mxu0 0.0
    %1634 = vmatmul.mubr.f32.gmra.mrb[0].mxu0 %v1567
    %v1635 = vpop.f32.mrb[0].mxu0
    %v1636 = vadd.f32 0.0, %v1635
    %v1637 = vpop.f32.mrb[0].mxu0
    %1638 = vdwg.mxu0
    %1639 = vset.pattern.permute.xlu0 6
    %1640 = vperm.xlu0 %1639, %v171
    %v1641 = vpop.permute.xlu0 %1640
    %v1643 = vmul.f32 %v1641, %v1563
    %v1644 = vadd.f32 %v1433, %v1643
    %v1646 = vrot.slane %v1536, 2
    %v1648 = vadd.f32 %v158, %v1646
    %v1649 = vmul.f32 %v1648, 0.5
    %v1650 = vtanh.pop %v1649
    %v1651 = vadd.f32 %v1650, 1.0
    %v1652 = vmul.f32 %v1651, 0.5
    %v1653 = vtanh.pop %v1648
    %v1655 = vrot.slane %v1456, 6
    %v1657 = vmul.f32 %v1652, %v1655
    %1659 = vrot.lane.b32.xlu0 %v1653, 64
    %v1660 = vpop.permute.xlu0 %1659
    %v1662 = vmul.f32 %v1652, %v1660
    %1664 = vrot.lane.b32.xlu0 %v1662, 32
    %v1665 = vpop.permute.xlu0 %1664
    %v1667 = vadd.f32 %v1657, %v1665
    %v1668 = vtanh.pop %v1667
    %1670 = vrot.lane.b32.xlu0 %v1668, 64
    %v1671 = vpop.permute.xlu0 %1670
    %v1673 = vmul.f32 %v1652, %v1671
    %v1675 = vrot.slane %v1673, 6
    %1676 = vrot.lane.b32.xlu0 %v1675, 32
    %v1677 = vpop.permute.xlu0 %1676
    %v1678 = vsel %vm73, %v1677, 0
    %1680 = vmatprep.subr.mxu0 %v50
    %1681 = vmatpush1.msra.mxu0 %v49
    %1682 = vmatprep.subr.mxu0 %v52
    %1683 = vmatpush1.msra.mxu0 %v51
    %1684 = vmatprep.subr.mxu0 %v54
    %1685 = vmatpush1.msra.mxu0 %v53
    %1686 = vmatprep.subr.mxu0 %v56
    %1687 = vmatpush1.msra.mxu0 %v55
    %1688 = vmatprep.subr.mxu0 0.0
    %1689 = vmatpush1.msra.mxu0 0.0
    %1690 = vmatprep.subr.mxu0 0.0
    %1691 = vmatpush1.msra.mxu0 0.0
    %1692 = vmatprep.subr.mxu0 0.0
    %1693 = vmatpush1.msra.mxu0 0.0
    %1694 = vmatprep.subr.mxu0 0.0
    %1695 = vmatpush1.msra.mxu0 0.0
    %1696 = vmatprep.subr.mxu0 0.0
    %1697 = vmatpush1.msra.mxu0 0.0
    %1698 = vmatprep.subr.mxu0 0.0
    %1699 = vmatpush1.msra.mxu0 0.0
    %1700 = vmatprep.subr.mxu0 0.0
    %1701 = vmatpush1.msra.mxu0 0.0
    %1702 = vmatprep.subr.mxu0 0.0
    %1703 = vmatpush1.msra.mxu0 0.0
    %1704 = vmatprep.subr.mxu0 0.0
    %1705 = vmatpush1.msra.mxu0 0.0
    %1706 = vmatprep.subr.mxu0 0.0
    %1707 = vmatpush1.msra.mxu0 0.0
    %1708 = vmatprep.subr.mxu0 0.0
    %1709 = vmatpush1.msra.mxu0 0.0
    %1710 = vmatprep.subr.mxu0 0.0
    %1711 = vmatpush1.msra.mxu0 0.0
    %1712 = vmatprep.subr.mxu0 0.0
    %1713 = vmatpush1.msra.mxu0 0.0
    %1714 = vmatprep.subr.mxu0 0.0
    %1715 = vmatpush1.msra.mxu0 0.0
    %1716 = vmatprep.subr.mxu0 0.0
    %1717 = vmatpush1.msra.mxu0 0.0
    %1718 = vmatprep.subr.mxu0 0.0
    %1719 = vmatpush1.msra.mxu0 0.0
    %1720 = vmatprep.subr.mxu0 0.0
    %1721 = vmatpush1.msra.mxu0 0.0
    %1722 = vmatprep.subr.mxu0 0.0
    %1723 = vmatpush1.msra.mxu0 0.0
    %1724 = vmatprep.subr.mxu0 0.0
    %1725 = vmatpush1.msra.mxu0 0.0
    %1726 = vmatprep.subr.mxu0 0.0
    %1727 = vmatpush1.msra.mxu0 0.0
    %1728 = vmatprep.subr.mxu0 0.0
    %1729 = vmatpush1.msra.mxu0 0.0
    %1730 = vmatprep.subr.mxu0 0.0
    %1731 = vmatpush1.msra.mxu0 0.0
    %1732 = vmatprep.subr.mxu0 0.0
    %1733 = vmatpush1.msra.mxu0 0.0
    %1734 = vmatprep.subr.mxu0 0.0
    %1735 = vmatpush1.msra.mxu0 0.0
    %1736 = vmatprep.subr.mxu0 0.0
    %1737 = vmatpush1.msra.mxu0 0.0
    %1738 = vmatprep.subr.mxu0 0.0
    %1739 = vmatpush1.msra.mxu0 0.0
    %1740 = vmatprep.subr.mxu0 0.0
    %1741 = vmatpush1.msra.mxu0 0.0
    %1742 = vmatprep.subr.mxu0 0.0
    %1743 = vmatpush1.msra.mxu0 0.0
    %1744 = vmatprep.mubr.f32.mxu0 0.0
    %1745 = vmatmul.mubr.f32.gmra.mrb[0].mxu0 %v1678
    %v1746 = vpop.f32.mrb[0].mxu0
    %v1747 = vadd.f32 0.0, %v1746
    %v1748 = vpop.f32.mrb[0].mxu0
    %v1749 = vadd.f32 0.0, %v1748
    %1750 = vdwg.mxu0
    %v1751 = vadd.f32 %v1749, %v1636
    %v1752 = vadd.f32 %v1751, %v276
    %v1753 = vmul.f32 %v1752, 0.5
    %v1754 = vtanh.pop %v1753
    %v1755 = vadd.f32 %v1754, 1.0
    %v1756 = vmul.f32 %v1755, 0.5
    %v1757 = vtanh.pop %v1752
    %v1758 = vmul.f32 %v1756, %v1557
    %1760 = vrot.lane.b32.xlu0 %v1757, 64
    %v1761 = vpop.permute.xlu0 %1760
    %v1763 = vmul.f32 %v1756, %v1761
    %1765 = vrot.lane.b32.xlu0 %v1763, 32
    %v1766 = vpop.permute.xlu0 %1765
    %v1768 = vadd.f32 %v1758, %v1766
    %v1769 = vtanh.pop %v1768
    %1771 = vrot.lane.b32.xlu0 %v1769, 64
    %v1772 = vpop.permute.xlu0 %1771
    %v1774 = vmul.f32 %v1756, %v1772
    %1776 = vrot.lane.b32.xlu0 %v1774, 32
    %v1777 = vpop.permute.xlu0 %1776
    %v1778 = vsel %vm73, %v1777, 0
    %1780 = vmatprep.subr.mxu0 0.0
    %1781 = vmatpush1.msra.mxu0 %v59
    %1782 = vmatprep.subr.mxu0 0.0
    %1783 = vmatpush1.msra.mxu0 %v60
    %1784 = vmatprep.subr.mxu0 0.0
    %1785 = vmatpush1.msra.mxu0 %v61
    %1786 = vmatprep.subr.mxu0 0.0
    %1787 = vmatpush1.msra.mxu0 %v62
    %1788 = vmatprep.subr.mxu0 0.0
    %1789 = vmatpush1.msra.mxu0 0.0
    %1790 = vmatprep.subr.mxu0 0.0
    %1791 = vmatpush1.msra.mxu0 0.0
    %1792 = vmatprep.subr.mxu0 0.0
    %1793 = vmatpush1.msra.mxu0 0.0
    %1794 = vmatprep.subr.mxu0 0.0
    %1795 = vmatpush1.msra.mxu0 0.0
    %1796 = vmatprep.subr.mxu0 0.0
    %1797 = vmatpush1.msra.mxu0 0.0
    %1798 = vmatprep.subr.mxu0 0.0
    %1799 = vmatpush1.msra.mxu0 0.0
    %1800 = vmatprep.subr.mxu0 0.0
    %1801 = vmatpush1.msra.mxu0 0.0
    %1802 = vmatprep.subr.mxu0 0.0
    %1803 = vmatpush1.msra.mxu0 0.0
    %1804 = vmatprep.subr.mxu0 0.0
    %1805 = vmatpush1.msra.mxu0 0.0
    %1806 = vmatprep.subr.mxu0 0.0
    %1807 = vmatpush1.msra.mxu0 0.0
    %1808 = vmatprep.subr.mxu0 0.0
    %1809 = vmatpush1.msra.mxu0 0.0
    %1810 = vmatprep.subr.mxu0 0.0
    %1811 = vmatpush1.msra.mxu0 0.0
    %1812 = vmatprep.subr.mxu0 0.0
    %1813 = vmatpush1.msra.mxu0 0.0
    %1814 = vmatprep.subr.mxu0 0.0
    %1815 = vmatpush1.msra.mxu0 0.0
    %1816 = vmatprep.subr.mxu0 0.0
    %1817 = vmatpush1.msra.mxu0 0.0
    %1818 = vmatprep.subr.mxu0 0.0
    %1819 = vmatpush1.msra.mxu0 0.0
    %1820 = vmatprep.subr.mxu0 0.0
    %1821 = vmatpush1.msra.mxu0 0.0
    %1822 = vmatprep.subr.mxu0 0.0
    %1823 = vmatpush1.msra.mxu0 0.0
    %1824 = vmatprep.subr.mxu0 0.0
    %1825 = vmatpush1.msra.mxu0 0.0
    %1826 = vmatprep.subr.mxu0 0.0
    %1827 = vmatpush1.msra.mxu0 0.0
    %1828 = vmatprep.subr.mxu0 0.0
    %1829 = vmatpush1.msra.mxu0 0.0
    %1830 = vmatprep.subr.mxu0 0.0
    %1831 = vmatpush1.msra.mxu0 0.0
    %1832 = vmatprep.subr.mxu0 0.0
    %1833 = vmatpush1.msra.mxu0 0.0
    %1834 = vmatprep.subr.mxu0 0.0
    %1835 = vmatpush1.msra.mxu0 0.0
    %1836 = vmatprep.subr.mxu0 0.0
    %1837 = vmatpush1.msra.mxu0 0.0
    %1838 = vmatprep.subr.mxu0 0.0
    %1839 = vmatpush1.msra.mxu0 0.0
    %1840 = vmatprep.subr.mxu0 0.0
    %1841 = vmatpush1.msra.mxu0 0.0
    %1842 = vmatprep.subr.mxu0 0.0
    %1843 = vmatpush1.msra.mxu0 0.0
    %1844 = vmatprep.mubr.f32.mxu0 0.0
    %1845 = vmatmul.mubr.f32.gmra.mrb[0].mxu0 %v1778
    %v1846 = vpop.f32.mrb[0].mxu0
    %v1847 = vadd.f32 0.0, %v1846
    %v1848 = vpop.f32.mrb[0].mxu0
    %1849 = vdwg.mxu0
    %1850 = vset.pattern.permute.xlu0 7
    %1851 = vperm.xlu0 %1850, %v171
    %v1852 = vpop.permute.xlu0 %1851
    %v1854 = vmul.f32 %v1852, %v1774
    %v1855 = vadd.f32 %v1644, %v1854
    %v1856 = vadd.f32 %v163, %v1747
    %v1857 = vmul.f32 %v1856, 0.5
    %v1858 = vtanh.pop %v1857
    %v1859 = vadd.f32 %v1858, 1.0
    %v1860 = vmul.f32 %v1859, 0.5
    %v1861 = vtanh.pop %v1856
    %v1863 = vrot.slane %v1667, 6
    %v1865 = vmul.f32 %v1860, %v1863
    %1867 = vrot.lane.b32.xlu0 %v1861, 64
    %v1868 = vpop.permute.xlu0 %1867
    %v1870 = vmul.f32 %v1860, %v1868
    %1872 = vrot.lane.b32.xlu0 %v1870, 32
    %v1873 = vpop.permute.xlu0 %1872
    %v1875 = vadd.f32 %v1865, %v1873
    %v1876 = vtanh.pop %v1875
    %1878 = vrot.lane.b32.xlu0 %v1876, 64
    %v1879 = vpop.permute.xlu0 %1878
    %v1881 = vmul.f32 %v1860, %v1879
    %1883 = vrot.lane.b32.xlu0 %v1881, 32
    %v1884 = vpop.permute.xlu0 %1883
    %v1885 = vsel %vm73, %v1884, 0
    %1887 = vmatprep.subr.mxu0 %v50
    %1888 = vmatpush1.msra.mxu0 %v49
    %1889 = vmatprep.subr.mxu0 %v52
    %1890 = vmatpush1.msra.mxu0 %v51
    %1891 = vmatprep.subr.mxu0 %v54
    %1892 = vmatpush1.msra.mxu0 %v53
    %1893 = vmatprep.subr.mxu0 %v56
    %1894 = vmatpush1.msra.mxu0 %v55
    %1895 = vmatprep.subr.mxu0 0.0
    %1896 = vmatpush1.msra.mxu0 0.0
    %1897 = vmatprep.subr.mxu0 0.0
    %1898 = vmatpush1.msra.mxu0 0.0
    %1899 = vmatprep.subr.mxu0 0.0
    %1900 = vmatpush1.msra.mxu0 0.0
    %1901 = vmatprep.subr.mxu0 0.0
    %1902 = vmatpush1.msra.mxu0 0.0
    %1903 = vmatprep.subr.mxu0 0.0
    %1904 = vmatpush1.msra.mxu0 0.0
    %1905 = vmatprep.subr.mxu0 0.0
    %1906 = vmatpush1.msra.mxu0 0.0
    %1907 = vmatprep.subr.mxu0 0.0
    %1908 = vmatpush1.msra.mxu0 0.0
    %1909 = vmatprep.subr.mxu0 0.0
    %1910 = vmatpush1.msra.mxu0 0.0
    %1911 = vmatprep.subr.mxu0 0.0
    %1912 = vmatpush1.msra.mxu0 0.0
    %1913 = vmatprep.subr.mxu0 0.0
    %1914 = vmatpush1.msra.mxu0 0.0
    %1915 = vmatprep.subr.mxu0 0.0
    %1916 = vmatpush1.msra.mxu0 0.0
    %1917 = vmatprep.subr.mxu0 0.0
    %1918 = vmatpush1.msra.mxu0 0.0
    %1919 = vmatprep.subr.mxu0 0.0
    %1920 = vmatpush1.msra.mxu0 0.0
    %1921 = vmatprep.subr.mxu0 0.0
    %1922 = vmatpush1.msra.mxu0 0.0
    %1923 = vmatprep.subr.mxu0 0.0
    %1924 = vmatpush1.msra.mxu0 0.0
    %1925 = vmatprep.subr.mxu0 0.0
    %1926 = vmatpush1.msra.mxu0 0.0
    %1927 = vmatprep.subr.mxu0 0.0
    %1928 = vmatpush1.msra.mxu0 0.0
    %1929 = vmatprep.subr.mxu0 0.0
    %1930 = vmatpush1.msra.mxu0 0.0
    %1931 = vmatprep.subr.mxu0 0.0
    %1932 = vmatpush1.msra.mxu0 0.0
    %1933 = vmatprep.subr.mxu0 0.0
    %1934 = vmatpush1.msra.mxu0 0.0
    %1935 = vmatprep.subr.mxu0 0.0
    %1936 = vmatpush1.msra.mxu0 0.0
    %1937 = vmatprep.subr.mxu0 0.0
    %1938 = vmatpush1.msra.mxu0 0.0
    %1939 = vmatprep.subr.mxu0 0.0
    %1940 = vmatpush1.msra.mxu0 0.0
    %1941 = vmatprep.subr.mxu0 0.0
    %1942 = vmatpush1.msra.mxu0 0.0
    %1943 = vmatprep.subr.mxu0 0.0
    %1944 = vmatpush1.msra.mxu0 0.0
    %1945 = vmatprep.subr.mxu0 0.0
    %1946 = vmatpush1.msra.mxu0 0.0
    %1947 = vmatprep.subr.mxu0 0.0
    %1948 = vmatpush1.msra.mxu0 0.0
    %1949 = vmatprep.subr.mxu0 0.0
    %1950 = vmatpush1.msra.mxu0 0.0
    %1951 = vmatprep.mubr.f32.mxu0 0.0
    %1952 = vmatmul.mubr.f32.gmra.mrb[0].mxu0 %v1885
    %v1953 = vpop.f32.mrb[0].mxu0
    %v1954 = vadd.f32 0.0, %v1953
    %v1955 = vpop.f32.mrb[0].mxu0
    %v1956 = vadd.f32 0.0, %v1955
    %1957 = vdwg.mxu0
    %v1958 = vadd.f32 %v1956, %v1847
    %v1959 = vadd.f32 %v1958, %v276
    %v1960 = vmul.f32 %v1959, 0.5
    %v1961 = vtanh.pop %v1960
    %v1962 = vadd.f32 %v1961, 1.0
    %v1963 = vmul.f32 %v1962, 0.5
    %v1964 = vtanh.pop %v1959
    %v1965 = vmul.f32 %v1963, %v1768
    %1967 = vrot.lane.b32.xlu0 %v1964, 64
    %v1968 = vpop.permute.xlu0 %1967
    %v1970 = vmul.f32 %v1963, %v1968
    %1972 = vrot.lane.b32.xlu0 %v1970, 32
    %v1973 = vpop.permute.xlu0 %1972
    %v1975 = vadd.f32 %v1965, %v1973
    %v1976 = vtanh.pop %v1975
    %1978 = vrot.lane.b32.xlu0 %v1976, 64
    %v1979 = vpop.permute.xlu0 %1978
    %v1981 = vmul.f32 %v1963, %v1979
    %1983 = vrot.lane.b32.xlu0 %v1981, 32
    %v1984 = vpop.permute.xlu0 %1983
    %v1985 = vsel %vm73, %v1984, 0
    %1987 = vmatprep.subr.mxu0 0.0
    %1988 = vmatpush1.msra.mxu0 %v59
    %1989 = vmatprep.subr.mxu0 0.0
    %1990 = vmatpush1.msra.mxu0 %v60
    %1991 = vmatprep.subr.mxu0 0.0
    %1992 = vmatpush1.msra.mxu0 %v61
    %1993 = vmatprep.subr.mxu0 0.0
    %1994 = vmatpush1.msra.mxu0 %v62
    %1995 = vmatprep.subr.mxu0 0.0
    %1996 = vmatpush1.msra.mxu0 0.0
    %1997 = vmatprep.subr.mxu0 0.0
    %1998 = vmatpush1.msra.mxu0 0.0
    %1999 = vmatprep.subr.mxu0 0.0
    %2000 = vmatpush1.msra.mxu0 0.0
    %2001 = vmatprep.subr.mxu0 0.0
    %2002 = vmatpush1.msra.mxu0 0.0
    %2003 = vmatprep.subr.mxu0 0.0
    %2004 = vmatpush1.msra.mxu0 0.0
    %2005 = vmatprep.subr.mxu0 0.0
    %2006 = vmatpush1.msra.mxu0 0.0
    %2007 = vmatprep.subr.mxu0 0.0
    %2008 = vmatpush1.msra.mxu0 0.0
    %2009 = vmatprep.subr.mxu0 0.0
    %2010 = vmatpush1.msra.mxu0 0.0
    %2011 = vmatprep.subr.mxu0 0.0
    %2012 = vmatpush1.msra.mxu0 0.0
    %2013 = vmatprep.subr.mxu0 0.0
    %2014 = vmatpush1.msra.mxu0 0.0
    %2015 = vmatprep.subr.mxu0 0.0
    %2016 = vmatpush1.msra.mxu0 0.0
    %2017 = vmatprep.subr.mxu0 0.0
    %2018 = vmatpush1.msra.mxu0 0.0
    %2019 = vmatprep.subr.mxu0 0.0
    %2020 = vmatpush1.msra.mxu0 0.0
    %2021 = vmatprep.subr.mxu0 0.0
    %2022 = vmatpush1.msra.mxu0 0.0
    %2023 = vmatprep.subr.mxu0 0.0
    %2024 = vmatpush1.msra.mxu0 0.0
    %2025 = vmatprep.subr.mxu0 0.0
    %2026 = vmatpush1.msra.mxu0 0.0
    %2027 = vmatprep.subr.mxu0 0.0
    %2028 = vmatpush1.msra.mxu0 0.0
    %2029 = vmatprep.subr.mxu0 0.0
    %2030 = vmatpush1.msra.mxu0 0.0
    %2031 = vmatprep.subr.mxu0 0.0
    %2032 = vmatpush1.msra.mxu0 0.0
    %2033 = vmatprep.subr.mxu0 0.0
    %2034 = vmatpush1.msra.mxu0 0.0
    %2035 = vmatprep.subr.mxu0 0.0
    %2036 = vmatpush1.msra.mxu0 0.0
    %2037 = vmatprep.subr.mxu0 0.0
    %2038 = vmatpush1.msra.mxu0 0.0
    %2039 = vmatprep.subr.mxu0 0.0
    %2040 = vmatpush1.msra.mxu0 0.0
    %2041 = vmatprep.subr.mxu0 0.0
    %2042 = vmatpush1.msra.mxu0 0.0
    %2043 = vmatprep.subr.mxu0 0.0
    %2044 = vmatpush1.msra.mxu0 0.0
    %2045 = vmatprep.subr.mxu0 0.0
    %2046 = vmatpush1.msra.mxu0 0.0
    %2047 = vmatprep.subr.mxu0 0.0
    %2048 = vmatpush1.msra.mxu0 0.0
    %2049 = vmatprep.subr.mxu0 0.0
    %2050 = vmatpush1.msra.mxu0 0.0
    %2051 = vmatprep.mubr.f32.mxu0 0.0
    %2052 = vmatmul.mubr.f32.gmra.mrb[0].mxu0 %v1985
    %v2053 = vpop.f32.mrb[0].mxu0
    %v2054 = vadd.f32 0.0, %v2053
    %v2055 = vpop.f32.mrb[0].mxu0
    %2056 = vdwg.mxu0
    %2057 = vset.pattern.permute.xlu0 8
    %2058 = vperm.xlu0 %2057, %v171
    %v2059 = vpop.permute.xlu0 %2058
    %v2061 = vmul.f32 %v2059, %v1981
    %v2062 = vadd.f32 %v1855, %v2061
    %v2064 = vrot.slane %v1954, 6
    %v2066 = vadd.f32 %v163, %v2064
    %v2067 = vmul.f32 %v2066, 0.5
    %v2068 = vtanh.pop %v2067
    %v2069 = vadd.f32 %v2068, 1.0
    %v2070 = vmul.f32 %v2069, 0.5
    %v2071 = vtanh.pop %v2066
    %v2073 = vrot.slane %v1875, 6
    %v2075 = vmul.f32 %v2070, %v2073
    %2077 = vrot.lane.b32.xlu0 %v2071, 64
    %v2078 = vpop.permute.xlu0 %2077
    %v2080 = vmul.f32 %v2070, %v2078
    %2082 = vrot.lane.b32.xlu0 %v2080, 32
    %v2083 = vpop.permute.xlu0 %2082
    %v2085 = vadd.f32 %v2075, %v2083
    %v2086 = vtanh.pop %v2085
    %2088 = vrot.lane.b32.xlu0 %v2086, 64
    %v2089 = vpop.permute.xlu0 %2088
    %v2091 = vmul.f32 %v2070, %v2089
    %v2093 = vrot.slane %v2091, 2
    %2094 = vrot.lane.b32.xlu0 %v2093, 32
    %v2095 = vpop.permute.xlu0 %2094
    %v2096 = vsel %vm73, %v2095, 0
    %2098 = vmatprep.subr.mxu0 %v50
    %2099 = vmatpush1.msra.mxu0 %v49
    %2100 = vmatprep.subr.mxu0 %v52
    %2101 = vmatpush1.msra.mxu0 %v51
    %2102 = vmatprep.subr.mxu0 %v54
    %2103 = vmatpush1.msra.mxu0 %v53
    %2104 = vmatprep.subr.mxu0 %v56
    %2105 = vmatpush1.msra.mxu0 %v55
    %2106 = vmatprep.subr.mxu0 0.0
    %2107 = vmatpush1.msra.mxu0 0.0
    %2108 = vmatprep.subr.mxu0 0.0
    %2109 = vmatpush1.msra.mxu0 0.0
    %2110 = vmatprep.subr.mxu0 0.0
    %2111 = vmatpush1.msra.mxu0 0.0
    %2112 = vmatprep.subr.mxu0 0.0
    %2113 = vmatpush1.msra.mxu0 0.0
    %2114 = vmatprep.subr.mxu0 0.0
    %2115 = vmatpush1.msra.mxu0 0.0
    %2116 = vmatprep.subr.mxu0 0.0
    %2117 = vmatpush1.msra.mxu0 0.0
    %2118 = vmatprep.subr.mxu0 0.0
    %2119 = vmatpush1.msra.mxu0 0.0
    %2120 = vmatprep.subr.mxu0 0.0
    %2121 = vmatpush1.msra.mxu0 0.0
    %2122 = vmatprep.subr.mxu0 0.0
    %2123 = vmatpush1.msra.mxu0 0.0
    %2124 = vmatprep.subr.mxu0 0.0
    %2125 = vmatpush1.msra.mxu0 0.0
    %2126 = vmatprep.subr.mxu0 0.0
    %2127 = vmatpush1.msra.mxu0 0.0
    %2128 = vmatprep.subr.mxu0 0.0
    %2129 = vmatpush1.msra.mxu0 0.0
    %2130 = vmatprep.subr.mxu0 0.0
    %2131 = vmatpush1.msra.mxu0 0.0
    %2132 = vmatprep.subr.mxu0 0.0
    %2133 = vmatpush1.msra.mxu0 0.0
    %2134 = vmatprep.subr.mxu0 0.0
    %2135 = vmatpush1.msra.mxu0 0.0
    %2136 = vmatprep.subr.mxu0 0.0
    %2137 = vmatpush1.msra.mxu0 0.0
    %2138 = vmatprep.subr.mxu0 0.0
    %2139 = vmatpush1.msra.mxu0 0.0
    %2140 = vmatprep.subr.mxu0 0.0
    %2141 = vmatpush1.msra.mxu0 0.0
    %2142 = vmatprep.subr.mxu0 0.0
    %2143 = vmatpush1.msra.mxu0 0.0
    %2144 = vmatprep.subr.mxu0 0.0
    %2145 = vmatpush1.msra.mxu0 0.0
    %2146 = vmatprep.subr.mxu0 0.0
    %2147 = vmatpush1.msra.mxu0 0.0
    %2148 = vmatprep.subr.mxu0 0.0
    %2149 = vmatpush1.msra.mxu0 0.0
    %2150 = vmatprep.subr.mxu0 0.0
    %2151 = vmatpush1.msra.mxu0 0.0
    %2152 = vmatprep.subr.mxu0 0.0
    %2153 = vmatpush1.msra.mxu0 0.0
    %2154 = vmatprep.subr.mxu0 0.0
    %2155 = vmatpush1.msra.mxu0 0.0
    %2156 = vmatprep.subr.mxu0 0.0
    %2157 = vmatpush1.msra.mxu0 0.0
    %2158 = vmatprep.subr.mxu0 0.0
    %2159 = vmatpush1.msra.mxu0 0.0
    %2160 = vmatprep.subr.mxu0 0.0
    %2161 = vmatpush1.msra.mxu0 0.0
    %2162 = vmatprep.mubr.f32.mxu0 0.0
    %2163 = vmatmul.mubr.f32.gmra.mrb[0].mxu0 %v2096
    %v2164 = vpop.f32.mrb[0].mxu0
    %v2165 = vadd.f32 0.0, %v2164
    %v2166 = vpop.f32.mrb[0].mxu0
    %v2167 = vadd.f32 0.0, %v2166
    %2168 = vdwg.mxu0
    %v2169 = vadd.f32 %v2167, %v2054
    %v2170 = vadd.f32 %v2169, %v276
    %v2171 = vmul.f32 %v2170, 0.5
    %v2172 = vtanh.pop %v2171
    %v2173 = vadd.f32 %v2172, 1.0
    %v2174 = vmul.f32 %v2173, 0.5
    %v2175 = vtanh.pop %v2170
    %v2176 = vmul.f32 %v2174, %v1975
    %2178 = vrot.lane.b32.xlu0 %v2175, 64
    %v2179 = vpop.permute.xlu0 %2178
    %v2181 = vmul.f32 %v2174, %v2179
    %2183 = vrot.lane.b32.xlu0 %v2181, 32
    %v2184 = vpop.permute.xlu0 %2183
    %v2186 = vadd.f32 %v2176, %v2184
    %v2187 = vtanh.pop %v2186
    %2189 = vrot.lane.b32.xlu0 %v2187, 64
    %v2190 = vpop.permute.xlu0 %2189
    %v2192 = vmul.f32 %v2174, %v2190
    %2194 = vrot.lane.b32.xlu0 %v2192, 32
    %v2195 = vpop.permute.xlu0 %2194
    %v2196 = vsel %vm73, %v2195, 0
    %2198 = vmatprep.subr.mxu0 0.0
    %2199 = vmatpush1.msra.mxu0 %v59
    %2200 = vmatprep.subr.mxu0 0.0
    %2201 = vmatpush1.msra.mxu0 %v60
    %2202 = vmatprep.subr.mxu0 0.0
    %2203 = vmatpush1.msra.mxu0 %v61
    %2204 = vmatprep.subr.mxu0 0.0
    %2205 = vmatpush1.msra.mxu0 %v62
    %2206 = vmatprep.subr.mxu0 0.0
    %2207 = vmatpush1.msra.mxu0 0.0
    %2208 = vmatprep.subr.mxu0 0.0
    %2209 = vmatpush1.msra.mxu0 0.0
    %2210 = vmatprep.subr.mxu0 0.0
    %2211 = vmatpush1.msra.mxu0 0.0
    %2212 = vmatprep.subr.mxu0 0.0
    %2213 = vmatpush1.msra.mxu0 0.0
    %2214 = vmatprep.subr.mxu0 0.0
    %2215 = vmatpush1.msra.mxu0 0.0
    %2216 = vmatprep.subr.mxu0 0.0
    %2217 = vmatpush1.msra.mxu0 0.0
    %2218 = vmatprep.subr.mxu0 0.0
    %2219 = vmatpush1.msra.mxu0 0.0
    %2220 = vmatprep.subr.mxu0 0.0
    %2221 = vmatpush1.msra.mxu0 0.0
    %2222 = vmatprep.subr.mxu0 0.0
    %2223 = vmatpush1.msra.mxu0 0.0
    %2224 = vmatprep.subr.mxu0 0.0
    %2225 = vmatpush1.msra.mxu0 0.0
    %2226 = vmatprep.subr.mxu0 0.0
    %2227 = vmatpush1.msra.mxu0 0.0
    %2228 = vmatprep.subr.mxu0 0.0
    %2229 = vmatpush1.msra.mxu0 0.0
    %2230 = vmatprep.subr.mxu0 0.0
    %2231 = vmatpush1.msra.mxu0 0.0
    %2232 = vmatprep.subr.mxu0 0.0
    %2233 = vmatpush1.msra.mxu0 0.0
    %2234 = vmatprep.subr.mxu0 0.0
    %2235 = vmatpush1.msra.mxu0 0.0
    %2236 = vmatprep.subr.mxu0 0.0
    %2237 = vmatpush1.msra.mxu0 0.0
    %2238 = vmatprep.subr.mxu0 0.0
    %2239 = vmatpush1.msra.mxu0 0.0
    %2240 = vmatprep.subr.mxu0 0.0
    %2241 = vmatpush1.msra.mxu0 0.0
    %2242 = vmatprep.subr.mxu0 0.0
    %2243 = vmatpush1.msra.mxu0 0.0
    %2244 = vmatprep.subr.mxu0 0.0
    %2245 = vmatpush1.msra.mxu0 0.0
    %2246 = vmatprep.subr.mxu0 0.0
    %2247 = vmatpush1.msra.mxu0 0.0
    %2248 = vmatprep.subr.mxu0 0.0
    %2249 = vmatpush1.msra.mxu0 0.0
    %2250 = vmatprep.subr.mxu0 0.0
    %2251 = vmatpush1.msra.mxu0 0.0
    %2252 = vmatprep.subr.mxu0 0.0
    %2253 = vmatpush1.msra.mxu0 0.0
    %2254 = vmatprep.subr.mxu0 0.0
    %2255 = vmatpush1.msra.mxu0 0.0
    %2256 = vmatprep.subr.mxu0 0.0
    %2257 = vmatpush1.msra.mxu0 0.0
    %2258 = vmatprep.subr.mxu0 0.0
    %2259 = vmatpush1.msra.mxu0 0.0
    %2260 = vmatprep.subr.mxu0 0.0
    %2261 = vmatpush1.msra.mxu0 0.0
    %2262 = vmatprep.mubr.f32.mxu0 0.0
    %2263 = vmatmul.mubr.f32.gmra.mrb[0].mxu0 %v2196
    %v2264 = vpop.f32.mrb[0].mxu0
    %v2265 = vadd.f32 0.0, %v2264
    %v2266 = vpop.f32.mrb[0].mxu0
    %2267 = vdwg.mxu0
    %2268 = vset.pattern.permute.xlu0 9
    %2269 = vperm.xlu0 %2268, %v171
    %v2270 = vpop.permute.xlu0 %2269
    %v2272 = vmul.f32 %v2270, %v2192
    %v2273 = vadd.f32 %v2062, %v2272
    %v2275 = vrot.slane %v2165, 4
    %v2277 = vadd.f32 %v163, %v2275
    %v2278 = vmul.f32 %v2277, 0.5
    %v2279 = vtanh.pop %v2278
    %v2280 = vadd.f32 %v2279, 1.0
    %v2281 = vmul.f32 %v2280, 0.5
    %v2282 = vtanh.pop %v2277
    %v2284 = vrot.slane %v2085, 6
    %v2286 = vmul.f32 %v2281, %v2284
    %2288 = vrot.lane.b32.xlu0 %v2282, 64
    %v2289 = vpop.permute.xlu0 %2288
    %v2291 = vmul.f32 %v2281, %v2289
    %2293 = vrot.lane.b32.xlu0 %v2291, 32
    %v2294 = vpop.permute.xlu0 %2293
    %v2296 = vadd.f32 %v2286, %v2294
    %v2297 = vtanh.pop %v2296
    %2299 = vrot.lane.b32.xlu0 %v2297, 64
    %v2300 = vpop.permute.xlu0 %2299
    %v2302 = vmul.f32 %v2281, %v2300
    %v2304 = vrot.slane %v2302, 4
    %2305 = vrot.lane.b32.xlu0 %v2304, 32
    %v2306 = vpop.permute.xlu0 %2305
    %v2307 = vsel %vm73, %v2306, 0
    %2309 = vmatprep.subr.mxu0 %v50
    %2310 = vmatpush1.msra.mxu0 %v49
    %2311 = vmatprep.subr.mxu0 %v52
    %2312 = vmatpush1.msra.mxu0 %v51
    %2313 = vmatprep.subr.mxu0 %v54
    %2314 = vmatpush1.msra.mxu0 %v53
    %2315 = vmatprep.subr.mxu0 %v56
    %2316 = vmatpush1.msra.mxu0 %v55
    %2317 = vmatprep.subr.mxu0 0.0
    %2318 = vmatpush1.msra.mxu0 0.0
    %2319 = vmatprep.subr.mxu0 0.0
    %2320 = vmatpush1.msra.mxu0 0.0
    %2321 = vmatprep.subr.mxu0 0.0
    %2322 = vmatpush1.msra.mxu0 0.0
    %2323 = vmatprep.subr.mxu0 0.0
    %2324 = vmatpush1.msra.mxu0 0.0
    %2325 = vmatprep.subr.mxu0 0.0
    %2326 = vmatpush1.msra.mxu0 0.0
    %2327 = vmatprep.subr.mxu0 0.0
    %2328 = vmatpush1.msra.mxu0 0.0
    %2329 = vmatprep.subr.mxu0 0.0
    %2330 = vmatpush1.msra.mxu0 0.0
    %2331 = vmatprep.subr.mxu0 0.0
    %2332 = vmatpush1.msra.mxu0 0.0
    %2333 = vmatprep.subr.mxu0 0.0
    %2334 = vmatpush1.msra.mxu0 0.0
    %2335 = vmatprep.subr.mxu0 0.0
    %2336 = vmatpush1.msra.mxu0 0.0
    %2337 = vmatprep.subr.mxu0 0.0
    %2338 = vmatpush1.msra.mxu0 0.0
    %2339 = vmatprep.subr.mxu0 0.0
    %2340 = vmatpush1.msra.mxu0 0.0
    %2341 = vmatprep.subr.mxu0 0.0
    %2342 = vmatpush1.msra.mxu0 0.0
    %2343 = vmatprep.subr.mxu0 0.0
    %2344 = vmatpush1.msra.mxu0 0.0
    %2345 = vmatprep.subr.mxu0 0.0
    %2346 = vmatpush1.msra.mxu0 0.0
    %2347 = vmatprep.subr.mxu0 0.0
    %2348 = vmatpush1.msra.mxu0 0.0
    %2349 = vmatprep.subr.mxu0 0.0
    %2350 = vmatpush1.msra.mxu0 0.0
    %2351 = vmatprep.subr.mxu0 0.0
    %2352 = vmatpush1.msra.mxu0 0.0
    %2353 = vmatprep.subr.mxu0 0.0
    %2354 = vmatpush1.msra.mxu0 0.0
    %2355 = vmatprep.subr.mxu0 0.0
    %2356 = vmatpush1.msra.mxu0 0.0
    %2357 = vmatprep.subr.mxu0 0.0
    %2358 = vmatpush1.msra.mxu0 0.0
    %2359 = vmatprep.subr.mxu0 0.0
    %2360 = vmatpush1.msra.mxu0 0.0
    %2361 = vmatprep.subr.mxu0 0.0
    %2362 = vmatpush1.msra.mxu0 0.0
    %2363 = vmatprep.subr.mxu0 0.0
    %2364 = vmatpush1.msra.mxu0 0.0
    %2365 = vmatprep.subr.mxu0 0.0
    %2366 = vmatpush1.msra.mxu0 0.0
    %2367 = vmatprep.subr.mxu0 0.0
    %2368 = vmatpush1.msra.mxu0 0.0
    %2369 = vmatprep.subr.mxu0 0.0
    %2370 = vmatpush1.msra.mxu0 0.0
    %2371 = vmatprep.subr.mxu0 0.0
    %2372 = vmatpush1.msra.mxu0 0.0
    %2373 = vmatprep.mubr.f32.mxu0 0.0
    %2374 = vmatmul.mubr.f32.gmra.mrb[0].mxu0 %v2307
    %v2375 = vpop.f32.mrb[0].mxu0
    %v2376 = vadd.f32 0.0, %v2375
    %v2377 = vpop.f32.mrb[0].mxu0
    %v2378 = vadd.f32 0.0, %v2377
    %2379 = vdwg.mxu0
    %v2380 = vadd.f32 %v2378, %v2265
    %v2381 = vadd.f32 %v2380, %v276
    %v2382 = vmul.f32 %v2381, 0.5
    %v2383 = vtanh.pop %v2382
    %v2384 = vadd.f32 %v2383, 1.0
    %v2385 = vmul.f32 %v2384, 0.5
    %v2386 = vtanh.pop %v2381
    %v2387 = vmul.f32 %v2385, %v2186
    %2389 = vrot.lane.b32.xlu0 %v2386, 64
    %v2390 = vpop.permute.xlu0 %2389
    %v2392 = vmul.f32 %v2385, %v2390
    %2394 = vrot.lane.b32.xlu0 %v2392, 32
    %v2395 = vpop.permute.xlu0 %2394
    %v2397 = vadd.f32 %v2387, %v2395
    %v2398 = vtanh.pop %v2397
    %2400 = vrot.lane.b32.xlu0 %v2398, 64
    %v2401 = vpop.permute.xlu0 %2400
    %v2403 = vmul.f32 %v2385, %v2401
    %2405 = vrot.lane.b32.xlu0 %v2403, 32
    %v2406 = vpop.permute.xlu0 %2405
    %v2407 = vsel %vm73, %v2406, 0
    %2409 = vmatprep.subr.mxu0 0.0
    %2410 = vmatpush1.msra.mxu0 %v59
    %2411 = vmatprep.subr.mxu0 0.0
    %2412 = vmatpush1.msra.mxu0 %v60
    %2413 = vmatprep.subr.mxu0 0.0
    %2414 = vmatpush1.msra.mxu0 %v61
    %2415 = vmatprep.subr.mxu0 0.0
    %2416 = vmatpush1.msra.mxu0 %v62
    %2417 = vmatprep.subr.mxu0 0.0
    %2418 = vmatpush1.msra.mxu0 0.0
    %2419 = vmatprep.subr.mxu0 0.0
    %2420 = vmatpush1.msra.mxu0 0.0
    %2421 = vmatprep.subr.mxu0 0.0
    %2422 = vmatpush1.msra.mxu0 0.0
    %2423 = vmatprep.subr.mxu0 0.0
    %2424 = vmatpush1.msra.mxu0 0.0
    %2425 = vmatprep.subr.mxu0 0.0
    %2426 = vmatpush1.msra.mxu0 0.0
    %2427 = vmatprep.subr.mxu0 0.0
    %2428 = vmatpush1.msra.mxu0 0.0
    %2429 = vmatprep.subr.mxu0 0.0
    %2430 = vmatpush1.msra.mxu0 0.0
    %2431 = vmatprep.subr.mxu0 0.0
    %2432 = vmatpush1.msra.mxu0 0.0
    %2433 = vmatprep.subr.mxu0 0.0
    %2434 = vmatpush1.msra.mxu0 0.0
    %2435 = vmatprep.subr.mxu0 0.0
    %2436 = vmatpush1.msra.mxu0 0.0
    %2437 = vmatprep.subr.mxu0 0.0
    %2438 = vmatpush1.msra.mxu0 0.0
    %2439 = vmatprep.subr.mxu0 0.0
    %2440 = vmatpush1.msra.mxu0 0.0
    %2441 = vmatprep.subr.mxu0 0.0
    %2442 = vmatpush1.msra.mxu0 0.0
    %2443 = vmatprep.subr.mxu0 0.0
    %2444 = vmatpush1.msra.mxu0 0.0
    %2445 = vmatprep.subr.mxu0 0.0
    %2446 = vmatpush1.msra.mxu0 0.0
    %2447 = vmatprep.subr.mxu0 0.0
    %2448 = vmatpush1.msra.mxu0 0.0
    %2449 = vmatprep.subr.mxu0 0.0
    %2450 = vmatpush1.msra.mxu0 0.0
    %2451 = vmatprep.subr.mxu0 0.0
    %2452 = vmatpush1.msra.mxu0 0.0
    %2453 = vmatprep.subr.mxu0 0.0
    %2454 = vmatpush1.msra.mxu0 0.0
    %2455 = vmatprep.subr.mxu0 0.0
    %2456 = vmatpush1.msra.mxu0 0.0
    %2457 = vmatprep.subr.mxu0 0.0
    %2458 = vmatpush1.msra.mxu0 0.0
    %2459 = vmatprep.subr.mxu0 0.0
    %2460 = vmatpush1.msra.mxu0 0.0
    %2461 = vmatprep.subr.mxu0 0.0
    %2462 = vmatpush1.msra.mxu0 0.0
    %2463 = vmatprep.subr.mxu0 0.0
    %2464 = vmatpush1.msra.mxu0 0.0
    %2465 = vmatprep.subr.mxu0 0.0
    %2466 = vmatpush1.msra.mxu0 0.0
    %2467 = vmatprep.subr.mxu0 0.0
    %2468 = vmatpush1.msra.mxu0 0.0
    %2469 = vmatprep.subr.mxu0 0.0
    %2470 = vmatpush1.msra.mxu0 0.0
    %2471 = vmatprep.subr.mxu0 0.0
    %2472 = vmatpush1.msra.mxu0 0.0
    %2473 = vmatprep.mubr.f32.mxu0 0.0
    %2474 = vmatmul.mubr.f32.gmra.mrb[0].mxu0 %v2407
    %v2475 = vpop.f32.mrb[0].mxu0
    %v2476 = vadd.f32 0.0, %v2475
    %v2477 = vpop.f32.mrb[0].mxu0
    %2478 = vdwg.mxu0
    %2479 = vset.pattern.permute.xlu0 10
    %2480 = vperm.xlu0 %2479, %v171
    %v2481 = vpop.permute.xlu0 %2480
    %v2483 = vmul.f32 %v2481, %v2403
    %v2484 = vadd.f32 %v2273, %v2483
    %v2486 = vrot.slane %v2376, 2
    %v2488 = vadd.f32 %v163, %v2486
    %v2489 = vmul.f32 %v2488, 0.5
    %v2490 = vtanh.pop %v2489
    %v2491 = vadd.f32 %v2490, 1.0
    %v2492 = vmul.f32 %v2491, 0.5
    %v2493 = vtanh.pop %v2488
    %v2495 = vrot.slane %v2296, 6
    %v2497 = vmul.f32 %v2492, %v2495
    %2499 = vrot.lane.b32.xlu0 %v2493, 64
    %v2500 = vpop.permute.xlu0 %2499
    %v2502 = vmul.f32 %v2492, %v2500
    %2504 = vrot.lane.b32.xlu0 %v2502, 32
    %v2505 = vpop.permute.xlu0 %2504
    %v2507 = vadd.f32 %v2497, %v2505
    %v2508 = vtanh.pop %v2507
    %2510 = vrot.lane.b32.xlu0 %v2508, 64
    %v2511 = vpop.permute.xlu0 %2510
    %v2513 = vmul.f32 %v2492, %v2511
    %v2515 = vrot.slane %v2513, 6
    %2516 = vrot.lane.b32.xlu0 %v2515, 32
    %v2517 = vpop.permute.xlu0 %2516
    %v2518 = vsel %vm73, %v2517, 0
    %2520 = vmatprep.subr.mxu0 %v50
    %2521 = vmatpush1.msra.mxu0 %v49
    %2522 = vmatprep.subr.mxu0 %v52
    %2523 = vmatpush1.msra.mxu0 %v51
    %2524 = vmatprep.subr.mxu0 %v54
    %2525 = vmatpush1.msra.mxu0 %v53
    %2526 = vmatprep.subr.mxu0 %v56
    %2527 = vmatpush1.msra.mxu0 %v55
    %2528 = vmatprep.subr.mxu0 0.0
    %2529 = vmatpush1.msra.mxu0 0.0
    %2530 = vmatprep.subr.mxu0 0.0
    %2531 = vmatpush1.msra.mxu0 0.0
    %2532 = vmatprep.subr.mxu0 0.0
    %2533 = vmatpush1.msra.mxu0 0.0
    %2534 = vmatprep.subr.mxu0 0.0
    %2535 = vmatpush1.msra.mxu0 0.0
    %2536 = vmatprep.subr.mxu0 0.0
    %2537 = vmatpush1.msra.mxu0 0.0
    %2538 = vmatprep.subr.mxu0 0.0
    %2539 = vmatpush1.msra.mxu0 0.0
    %2540 = vmatprep.subr.mxu0 0.0
    %2541 = vmatpush1.msra.mxu0 0.0
    %2542 = vmatprep.subr.mxu0 0.0
    %2543 = vmatpush1.msra.mxu0 0.0
    %2544 = vmatprep.subr.mxu0 0.0
    %2545 = vmatpush1.msra.mxu0 0.0
    %2546 = vmatprep.subr.mxu0 0.0
    %2547 = vmatpush1.msra.mxu0 0.0
    %2548 = vmatprep.subr.mxu0 0.0
    %2549 = vmatpush1.msra.mxu0 0.0
    %2550 = vmatprep.subr.mxu0 0.0
    %2551 = vmatpush1.msra.mxu0 0.0
    %2552 = vmatprep.subr.mxu0 0.0
    %2553 = vmatpush1.msra.mxu0 0.0
    %2554 = vmatprep.subr.mxu0 0.0
    %2555 = vmatpush1.msra.mxu0 0.0
    %2556 = vmatprep.subr.mxu0 0.0
    %2557 = vmatpush1.msra.mxu0 0.0
    %2558 = vmatprep.subr.mxu0 0.0
    %2559 = vmatpush1.msra.mxu0 0.0
    %2560 = vmatprep.subr.mxu0 0.0
    %2561 = vmatpush1.msra.mxu0 0.0
    %2562 = vmatprep.subr.mxu0 0.0
    %2563 = vmatpush1.msra.mxu0 0.0
    %2564 = vmatprep.subr.mxu0 0.0
    %2565 = vmatpush1.msra.mxu0 0.0
    %2566 = vmatprep.subr.mxu0 0.0
    %2567 = vmatpush1.msra.mxu0 0.0
    %2568 = vmatprep.subr.mxu0 0.0
    %2569 = vmatpush1.msra.mxu0 0.0
    %2570 = vmatprep.subr.mxu0 0.0
    %2571 = vmatpush1.msra.mxu0 0.0
    %2572 = vmatprep.subr.mxu0 0.0
    %2573 = vmatpush1.msra.mxu0 0.0
    %2574 = vmatprep.subr.mxu0 0.0
    %2575 = vmatpush1.msra.mxu0 0.0
    %2576 = vmatprep.subr.mxu0 0.0
    %2577 = vmatpush1.msra.mxu0 0.0
    %2578 = vmatprep.subr.mxu0 0.0
    %2579 = vmatpush1.msra.mxu0 0.0
    %2580 = vmatprep.subr.mxu0 0.0
    %2581 = vmatpush1.msra.mxu0 0.0
    %2582 = vmatprep.subr.mxu0 0.0
    %2583 = vmatpush1.msra.mxu0 0.0
    %2584 = vmatprep.mubr.f32.mxu0 0.0
    %2585 = vmatmul.mubr.f32.gmra.mrb[0].mxu0 %v2518
    %v2586 = vpop.f32.mrb[0].mxu0
    %v2587 = vadd.f32 0.0, %v2586
    %v2588 = vpop.f32.mrb[0].mxu0
    %v2589 = vadd.f32 0.0, %v2588
    %2590 = vdwg.mxu0
    %v2591 = vadd.f32 %v2589, %v2476
    %v2592 = vadd.f32 %v2591, %v276
    %v2593 = vmul.f32 %v2592, 0.5
    %v2594 = vtanh.pop %v2593
    %v2595 = vadd.f32 %v2594, 1.0
    %v2596 = vmul.f32 %v2595, 0.5
    %v2597 = vtanh.pop %v2592
    %v2598 = vmul.f32 %v2596, %v2397
    %2600 = vrot.lane.b32.xlu0 %v2597, 64
    %v2601 = vpop.permute.xlu0 %2600
    %v2603 = vmul.f32 %v2596, %v2601
    %2605 = vrot.lane.b32.xlu0 %v2603, 32
    %v2606 = vpop.permute.xlu0 %2605
    %v2608 = vadd.f32 %v2598, %v2606
    %v2609 = vtanh.pop %v2608
    %2611 = vrot.lane.b32.xlu0 %v2609, 64
    %v2612 = vpop.permute.xlu0 %2611
    %v2614 = vmul.f32 %v2596, %v2612
    %2616 = vrot.lane.b32.xlu0 %v2614, 32
    %v2617 = vpop.permute.xlu0 %2616
    %v2618 = vsel %vm73, %v2617, 0
    %2620 = vmatprep.subr.mxu0 0.0
    %2621 = vmatpush1.msra.mxu0 %v59
    %2622 = vmatprep.subr.mxu0 0.0
    %2623 = vmatpush1.msra.mxu0 %v60
    %2624 = vmatprep.subr.mxu0 0.0
    %2625 = vmatpush1.msra.mxu0 %v61
    %2626 = vmatprep.subr.mxu0 0.0
    %2627 = vmatpush1.msra.mxu0 %v62
    %2628 = vmatprep.subr.mxu0 0.0
    %2629 = vmatpush1.msra.mxu0 0.0
    %2630 = vmatprep.subr.mxu0 0.0
    %2631 = vmatpush1.msra.mxu0 0.0
    %2632 = vmatprep.subr.mxu0 0.0
    %2633 = vmatpush1.msra.mxu0 0.0
    %2634 = vmatprep.subr.mxu0 0.0
    %2635 = vmatpush1.msra.mxu0 0.0
    %2636 = vmatprep.subr.mxu0 0.0
    %2637 = vmatpush1.msra.mxu0 0.0
    %2638 = vmatprep.subr.mxu0 0.0
    %2639 = vmatpush1.msra.mxu0 0.0
    %2640 = vmatprep.subr.mxu0 0.0
    %2641 = vmatpush1.msra.mxu0 0.0
    %2642 = vmatprep.subr.mxu0 0.0
    %2643 = vmatpush1.msra.mxu0 0.0
    %2644 = vmatprep.subr.mxu0 0.0
    %2645 = vmatpush1.msra.mxu0 0.0
    %2646 = vmatprep.subr.mxu0 0.0
    %2647 = vmatpush1.msra.mxu0 0.0
    %2648 = vmatprep.subr.mxu0 0.0
    %2649 = vmatpush1.msra.mxu0 0.0
    %2650 = vmatprep.subr.mxu0 0.0
    %2651 = vmatpush1.msra.mxu0 0.0
    %2652 = vmatprep.subr.mxu0 0.0
    %2653 = vmatpush1.msra.mxu0 0.0
    %2654 = vmatprep.subr.mxu0 0.0
    %2655 = vmatpush1.msra.mxu0 0.0
    %2656 = vmatprep.subr.mxu0 0.0
    %2657 = vmatpush1.msra.mxu0 0.0
    %2658 = vmatprep.subr.mxu0 0.0
    %2659 = vmatpush1.msra.mxu0 0.0
    %2660 = vmatprep.subr.mxu0 0.0
    %2661 = vmatpush1.msra.mxu0 0.0
    %2662 = vmatprep.subr.mxu0 0.0
    %2663 = vmatpush1.msra.mxu0 0.0
    %2664 = vmatprep.subr.mxu0 0.0
    %2665 = vmatpush1.msra.mxu0 0.0
    %2666 = vmatprep.subr.mxu0 0.0
    %2667 = vmatpush1.msra.mxu0 0.0
    %2668 = vmatprep.subr.mxu0 0.0
    %2669 = vmatpush1.msra.mxu0 0.0
    %2670 = vmatprep.subr.mxu0 0.0
    %2671 = vmatpush1.msra.mxu0 0.0
    %2672 = vmatprep.subr.mxu0 0.0
    %2673 = vmatpush1.msra.mxu0 0.0
    %2674 = vmatprep.subr.mxu0 0.0
    %2675 = vmatpush1.msra.mxu0 0.0
    %2676 = vmatprep.subr.mxu0 0.0
    %2677 = vmatpush1.msra.mxu0 0.0
    %2678 = vmatprep.subr.mxu0 0.0
    %2679 = vmatpush1.msra.mxu0 0.0
    %2680 = vmatprep.subr.mxu0 0.0
    %2681 = vmatpush1.msra.mxu0 0.0
    %2682 = vmatprep.subr.mxu0 0.0
    %2683 = vmatpush1.msra.mxu0 0.0
    %2684 = vmatprep.mubr.f32.mxu0 0.0
    %2685 = vmatmul.mubr.f32.gmra.mrb[0].mxu0 %v2618
    %v2686 = vpop.f32.mrb[0].mxu0
    %v2687 = vadd.f32 0.0, %v2686
    %v2688 = vpop.f32.mrb[0].mxu0
    %2689 = vdwg.mxu0
    %2690 = vset.pattern.permute.xlu0 11
    %2691 = vperm.xlu0 %2690, %v171
    %v2692 = vpop.permute.xlu0 %2691
    %v2694 = vmul.f32 %v2692, %v2614
    %v2695 = vadd.f32 %v2484, %v2694
    %v2696 = vadd.f32 %v168, %v2587
    %v2697 = vmul.f32 %v2696, 0.5
    %v2698 = vtanh.pop %v2697
    %v2699 = vadd.f32 %v2698, 1.0
    %v2700 = vmul.f32 %v2699, 0.5
    %v2701 = vtanh.pop %v2696
    %v2703 = vrot.slane %v2507, 6
    %v2705 = vmul.f32 %v2700, %v2703
    %2707 = vrot.lane.b32.xlu0 %v2701, 64
    %v2708 = vpop.permute.xlu0 %2707
    %v2710 = vmul.f32 %v2700, %v2708
    %2712 = vrot.lane.b32.xlu0 %v2710, 32
    %v2713 = vpop.permute.xlu0 %2712
    %v2715 = vadd.f32 %v2705, %v2713
    %v2716 = vtanh.pop %v2715
    %2718 = vrot.lane.b32.xlu0 %v2716, 64
    %v2719 = vpop.permute.xlu0 %2718
    %v2721 = vmul.f32 %v2700, %v2719
    %2723 = vrot.lane.b32.xlu0 %v2721, 32
    %v2724 = vpop.permute.xlu0 %2723
    %v2725 = vsel %vm73, %v2724, 0
    %2727 = vmatprep.subr.mxu0 %v50
    %2728 = vmatpush1.msra.mxu0 %v49
    %2729 = vmatprep.subr.mxu0 %v52
    %2730 = vmatpush1.msra.mxu0 %v51
    %2731 = vmatprep.subr.mxu0 %v54
    %2732 = vmatpush1.msra.mxu0 %v53
    %2733 = vmatprep.subr.mxu0 %v56
    %2734 = vmatpush1.msra.mxu0 %v55
    %2735 = vmatprep.subr.mxu0 0.0
    %2736 = vmatpush1.msra.mxu0 0.0
    %2737 = vmatprep.subr.mxu0 0.0
    %2738 = vmatpush1.msra.mxu0 0.0
    %2739 = vmatprep.subr.mxu0 0.0
    %2740 = vmatpush1.msra.mxu0 0.0
    %2741 = vmatprep.subr.mxu0 0.0
    %2742 = vmatpush1.msra.mxu0 0.0
    %2743 = vmatprep.subr.mxu0 0.0
    %2744 = vmatpush1.msra.mxu0 0.0
    %2745 = vmatprep.subr.mxu0 0.0
    %2746 = vmatpush1.msra.mxu0 0.0
    %2747 = vmatprep.subr.mxu0 0.0
    %2748 = vmatpush1.msra.mxu0 0.0
    %2749 = vmatprep.subr.mxu0 0.0
    %2750 = vmatpush1.msra.mxu0 0.0
    %2751 = vmatprep.subr.mxu0 0.0
    %2752 = vmatpush1.msra.mxu0 0.0
    %2753 = vmatprep.subr.mxu0 0.0
    %2754 = vmatpush1.msra.mxu0 0.0
    %2755 = vmatprep.subr.mxu0 0.0
    %2756 = vmatpush1.msra.mxu0 0.0
    %2757 = vmatprep.subr.mxu0 0.0
    %2758 = vmatpush1.msra.mxu0 0.0
    %2759 = vmatprep.subr.mxu0 0.0
    %2760 = vmatpush1.msra.mxu0 0.0
    %2761 = vmatprep.subr.mxu0 0.0
    %2762 = vmatpush1.msra.mxu0 0.0
    %2763 = vmatprep.subr.mxu0 0.0
    %2764 = vmatpush1.msra.mxu0 0.0
    %2765 = vmatprep.subr.mxu0 0.0
    %2766 = vmatpush1.msra.mxu0 0.0
    %2767 = vmatprep.subr.mxu0 0.0
    %2768 = vmatpush1.msra.mxu0 0.0
    %2769 = vmatprep.subr.mxu0 0.0
    %2770 = vmatpush1.msra.mxu0 0.0
    %2771 = vmatprep.subr.mxu0 0.0
    %2772 = vmatpush1.msra.mxu0 0.0
    %2773 = vmatprep.subr.mxu0 0.0
    %2774 = vmatpush1.msra.mxu0 0.0
    %2775 = vmatprep.subr.mxu0 0.0
    %2776 = vmatpush1.msra.mxu0 0.0
    %2777 = vmatprep.subr.mxu0 0.0
    %2778 = vmatpush1.msra.mxu0 0.0
    %2779 = vmatprep.subr.mxu0 0.0
    %2780 = vmatpush1.msra.mxu0 0.0
    %2781 = vmatprep.subr.mxu0 0.0
    %2782 = vmatpush1.msra.mxu0 0.0
    %2783 = vmatprep.subr.mxu0 0.0
    %2784 = vmatpush1.msra.mxu0 0.0
    %2785 = vmatprep.subr.mxu0 0.0
    %2786 = vmatpush1.msra.mxu0 0.0
    %2787 = vmatprep.subr.mxu0 0.0
    %2788 = vmatpush1.msra.mxu0 0.0
    %2789 = vmatprep.subr.mxu0 0.0
    %2790 = vmatpush1.msra.mxu0 0.0
    %2791 = vmatprep.mubr.f32.mxu0 0.0
    %2792 = vmatmul.mubr.f32.gmra.mrb[0].mxu0 %v2725
    %v2793 = vpop.f32.mrb[0].mxu0
    %v2794 = vadd.f32 0.0, %v2793
    %v2795 = vpop.f32.mrb[0].mxu0
    %v2796 = vadd.f32 0.0, %v2795
    %2797 = vdwg.mxu0
    %v2798 = vadd.f32 %v2796, %v2687
    %v2799 = vadd.f32 %v2798, %v276
    %v2800 = vmul.f32 %v2799, 0.5
    %v2801 = vtanh.pop %v2800
    %v2802 = vadd.f32 %v2801, 1.0
    %v2803 = vmul.f32 %v2802, 0.5
    %v2804 = vtanh.pop %v2799
    %v2805 = vmul.f32 %v2803, %v2608
    %2807 = vrot.lane.b32.xlu0 %v2804, 64
    %v2808 = vpop.permute.xlu0 %2807
    %v2810 = vmul.f32 %v2803, %v2808
    %2812 = vrot.lane.b32.xlu0 %v2810, 32
    %v2813 = vpop.permute.xlu0 %2812
    %v2815 = vadd.f32 %v2805, %v2813
    %v2816 = vtanh.pop %v2815
    %2818 = vrot.lane.b32.xlu0 %v2816, 64
    %v2819 = vpop.permute.xlu0 %2818
    %v2821 = vmul.f32 %v2803, %v2819
    %2823 = vrot.lane.b32.xlu0 %v2821, 32
    %v2824 = vpop.permute.xlu0 %2823
    %v2825 = vsel %vm73, %v2824, 0
    %2827 = vmatprep.subr.mxu0 0.0
    %2828 = vmatpush1.msra.mxu0 %v59
    %2829 = vmatprep.subr.mxu0 0.0
    %2830 = vmatpush1.msra.mxu0 %v60
    %2831 = vmatprep.subr.mxu0 0.0
    %2832 = vmatpush1.msra.mxu0 %v61
    %2833 = vmatprep.subr.mxu0 0.0
    %2834 = vmatpush1.msra.mxu0 %v62
    %2835 = vmatprep.subr.mxu0 0.0
    %2836 = vmatpush1.msra.mxu0 0.0
    %2837 = vmatprep.subr.mxu0 0.0
    %2838 = vmatpush1.msra.mxu0 0.0
    %2839 = vmatprep.subr.mxu0 0.0
    %2840 = vmatpush1.msra.mxu0 0.0
    %2841 = vmatprep.subr.mxu0 0.0
    %2842 = vmatpush1.msra.mxu0 0.0
    %2843 = vmatprep.subr.mxu0 0.0
    %2844 = vmatpush1.msra.mxu0 0.0
    %2845 = vmatprep.subr.mxu0 0.0
    %2846 = vmatpush1.msra.mxu0 0.0
    %2847 = vmatprep.subr.mxu0 0.0
    %2848 = vmatpush1.msra.mxu0 0.0
    %2849 = vmatprep.subr.mxu0 0.0
    %2850 = vmatpush1.msra.mxu0 0.0
    %2851 = vmatprep.subr.mxu0 0.0
    %2852 = vmatpush1.msra.mxu0 0.0
    %2853 = vmatprep.subr.mxu0 0.0
    %2854 = vmatpush1.msra.mxu0 0.0
    %2855 = vmatprep.subr.mxu0 0.0
    %2856 = vmatpush1.msra.mxu0 0.0
    %2857 = vmatprep.subr.mxu0 0.0
    %2858 = vmatpush1.msra.mxu0 0.0
    %2859 = vmatprep.subr.mxu0 0.0
    %2860 = vmatpush1.msra.mxu0 0.0
    %2861 = vmatprep.subr.mxu0 0.0
    %2862 = vmatpush1.msra.mxu0 0.0
    %2863 = vmatprep.subr.mxu0 0.0
    %2864 = vmatpush1.msra.mxu0 0.0
    %2865 = vmatprep.subr.mxu0 0.0
    %2866 = vmatpush1.msra.mxu0 0.0
    %2867 = vmatprep.subr.mxu0 0.0
    %2868 = vmatpush1.msra.mxu0 0.0
    %2869 = vmatprep.subr.mxu0 0.0
    %2870 = vmatpush1.msra.mxu0 0.0
    %2871 = vmatprep.subr.mxu0 0.0
    %2872 = vmatpush1.msra.mxu0 0.0
    %2873 = vmatprep.subr.mxu0 0.0
    %2874 = vmatpush1.msra.mxu0 0.0
    %2875 = vmatprep.subr.mxu0 0.0
    %2876 = vmatpush1.msra.mxu0 0.0
    %2877 = vmatprep.subr.mxu0 0.0
    %2878 = vmatpush1.msra.mxu0 0.0
    %2879 = vmatprep.subr.mxu0 0.0
    %2880 = vmatpush1.msra.mxu0 0.0
    %2881 = vmatprep.subr.mxu0 0.0
    %2882 = vmatpush1.msra.mxu0 0.0
    %2883 = vmatprep.subr.mxu0 0.0
    %2884 = vmatpush1.msra.mxu0 0.0
    %2885 = vmatprep.subr.mxu0 0.0
    %2886 = vmatpush1.msra.mxu0 0.0
    %2887 = vmatprep.subr.mxu0 0.0
    %2888 = vmatpush1.msra.mxu0 0.0
    %2889 = vmatprep.subr.mxu0 0.0
    %2890 = vmatpush1.msra.mxu0 0.0
    %2891 = vmatprep.mubr.f32.mxu0 0.0
    %2892 = vmatmul.mubr.f32.gmra.mrb[0].mxu0 %v2825
    %v2893 = vpop.f32.mrb[0].mxu0
    %v2894 = vadd.f32 0.0, %v2893
    %v2895 = vpop.f32.mrb[0].mxu0
    %2896 = vdwg.mxu0
    %2897 = vset.pattern.permute.xlu0 12
    %2898 = vperm.xlu0 %2897, %v171
    %v2899 = vpop.permute.xlu0 %2898
    %v2901 = vmul.f32 %v2899, %v2821
    %v2902 = vadd.f32 %v2695, %v2901
    %v2904 = vrot.slane %v2794, 6
    %v2906 = vadd.f32 %v168, %v2904
    %v2907 = vmul.f32 %v2906, 0.5
    %v2908 = vtanh.pop %v2907
    %v2909 = vadd.f32 %v2908, 1.0
    %v2910 = vmul.f32 %v2909, 0.5
    %v2911 = vtanh.pop %v2906
    %v2913 = vrot.slane %v2715, 6
    %v2915 = vmul.f32 %v2910, %v2913
    %2917 = vrot.lane.b32.xlu0 %v2911, 64
    %v2918 = vpop.permute.xlu0 %2917
    %v2920 = vmul.f32 %v2910, %v2918
    %2922 = vrot.lane.b32.xlu0 %v2920, 32
    %v2923 = vpop.permute.xlu0 %2922
    %v2925 = vadd.f32 %v2915, %v2923
    %v2926 = vtanh.pop %v2925
    %2928 = vrot.lane.b32.xlu0 %v2926, 64
    %v2929 = vpop.permute.xlu0 %2928
    %v2931 = vmul.f32 %v2910, %v2929
    %v2933 = vrot.slane %v2931, 2
    %2934 = vrot.lane.b32.xlu0 %v2933, 32
    %v2935 = vpop.permute.xlu0 %2934
    %v2936 = vsel %vm73, %v2935, 0
    %2938 = vmatprep.subr.mxu0 %v50
    %2939 = vmatpush1.msra.mxu0 %v49
    %2940 = vmatprep.subr.mxu0 %v52
    %2941 = vmatpush1.msra.mxu0 %v51
    %2942 = vmatprep.subr.mxu0 %v54
    %2943 = vmatpush1.msra.mxu0 %v53
    %2944 = vmatprep.subr.mxu0 %v56
    %2945 = vmatpush1.msra.mxu0 %v55
    %2946 = vmatprep.subr.mxu0 0.0
    %2947 = vmatpush1.msra.mxu0 0.0
    %2948 = vmatprep.subr.mxu0 0.0
    %2949 = vmatpush1.msra.mxu0 0.0
    %2950 = vmatprep.subr.mxu0 0.0
    %2951 = vmatpush1.msra.mxu0 0.0
    %2952 = vmatprep.subr.mxu0 0.0
    %2953 = vmatpush1.msra.mxu0 0.0
    %2954 = vmatprep.subr.mxu0 0.0
    %2955 = vmatpush1.msra.mxu0 0.0
    %2956 = vmatprep.subr.mxu0 0.0
    %2957 = vmatpush1.msra.mxu0 0.0
    %2958 = vmatprep.subr.mxu0 0.0
    %2959 = vmatpush1.msra.mxu0 0.0
    %2960 = vmatprep.subr.mxu0 0.0
    %2961 = vmatpush1.msra.mxu0 0.0
    %2962 = vmatprep.subr.mxu0 0.0
    %2963 = vmatpush1.msra.mxu0 0.0
    %2964 = vmatprep.subr.mxu0 0.0
    %2965 = vmatpush1.msra.mxu0 0.0
    %2966 = vmatprep.subr.mxu0 0.0
    %2967 = vmatpush1.msra.mxu0 0.0
    %2968 = vmatprep.subr.mxu0 0.0
    %2969 = vmatpush1.msra.mxu0 0.0
    %2970 = vmatprep.subr.mxu0 0.0
    %2971 = vmatpush1.msra.mxu0 0.0
    %2972 = vmatprep.subr.mxu0 0.0
    %2973 = vmatpush1.msra.mxu0 0.0
    %2974 = vmatprep.subr.mxu0 0.0
    %2975 = vmatpush1.msra.mxu0 0.0
    %2976 = vmatprep.subr.mxu0 0.0
    %2977 = vmatpush1.msra.mxu0 0.0
    %2978 = vmatprep.subr.mxu0 0.0
    %2979 = vmatpush1.msra.mxu0 0.0
    %2980 = vmatprep.subr.mxu0 0.0
    %2981 = vmatpush1.msra.mxu0 0.0
    %2982 = vmatprep.subr.mxu0 0.0
    %2983 = vmatpush1.msra.mxu0 0.0
    %2984 = vmatprep.subr.mxu0 0.0
    %2985 = vmatpush1.msra.mxu0 0.0
    %2986 = vmatprep.subr.mxu0 0.0
    %2987 = vmatpush1.msra.mxu0 0.0
    %2988 = vmatprep.subr.mxu0 0.0
    %2989 = vmatpush1.msra.mxu0 0.0
    %2990 = vmatprep.subr.mxu0 0.0
    %2991 = vmatpush1.msra.mxu0 0.0
    %2992 = vmatprep.subr.mxu0 0.0
    %2993 = vmatpush1.msra.mxu0 0.0
    %2994 = vmatprep.subr.mxu0 0.0
    %2995 = vmatpush1.msra.mxu0 0.0
    %2996 = vmatprep.subr.mxu0 0.0
    %2997 = vmatpush1.msra.mxu0 0.0
    %2998 = vmatprep.subr.mxu0 0.0
    %2999 = vmatpush1.msra.mxu0 0.0
    %3000 = vmatprep.subr.mxu0 0.0
    %3001 = vmatpush1.msra.mxu0 0.0
    %3002 = vmatprep.mubr.f32.mxu0 0.0
    %3003 = vmatmul.mubr.f32.gmra.mrb[0].mxu0 %v2936
    %v3004 = vpop.f32.mrb[0].mxu0
    %v3005 = vadd.f32 0.0, %v3004
    %v3006 = vpop.f32.mrb[0].mxu0
    %v3007 = vadd.f32 0.0, %v3006
    %3008 = vdwg.mxu0
    %v3009 = vadd.f32 %v3007, %v2894
    %v3010 = vadd.f32 %v3009, %v276
    %v3011 = vmul.f32 %v3010, 0.5
    %v3012 = vtanh.pop %v3011
    %v3013 = vadd.f32 %v3012, 1.0
    %v3014 = vmul.f32 %v3013, 0.5
    %v3015 = vtanh.pop %v3010
    %v3016 = vmul.f32 %v3014, %v2815
    %3018 = vrot.lane.b32.xlu0 %v3015, 64
    %v3019 = vpop.permute.xlu0 %3018
    %v3021 = vmul.f32 %v3014, %v3019
    %3023 = vrot.lane.b32.xlu0 %v3021, 32
    %v3024 = vpop.permute.xlu0 %3023
    %v3026 = vadd.f32 %v3016, %v3024
    %v3027 = vtanh.pop %v3026
    %3029 = vrot.lane.b32.xlu0 %v3027, 64
    %v3030 = vpop.permute.xlu0 %3029
    %v3032 = vmul.f32 %v3014, %v3030
    %3034 = vrot.lane.b32.xlu0 %v3032, 32
    %v3035 = vpop.permute.xlu0 %3034
    %v3036 = vsel %vm73, %v3035, 0
    %3038 = vmatprep.subr.mxu0 0.0
    %3039 = vmatpush1.msra.mxu0 %v59
    %3040 = vmatprep.subr.mxu0 0.0
    %3041 = vmatpush1.msra.mxu0 %v60
    %3042 = vmatprep.subr.mxu0 0.0
    %3043 = vmatpush1.msra.mxu0 %v61
    %3044 = vmatprep.subr.mxu0 0.0
    %3045 = vmatpush1.msra.mxu0 %v62
    %3046 = vmatprep.subr.mxu0 0.0
    %3047 = vmatpush1.msra.mxu0 0.0
    %3048 = vmatprep.subr.mxu0 0.0
    %3049 = vmatpush1.msra.mxu0 0.0
    %3050 = vmatprep.subr.mxu0 0.0
    %3051 = vmatpush1.msra.mxu0 0.0
    %3052 = vmatprep.subr.mxu0 0.0
    %3053 = vmatpush1.msra.mxu0 0.0
    %3054 = vmatprep.subr.mxu0 0.0
    %3055 = vmatpush1.msra.mxu0 0.0
    %3056 = vmatprep.subr.mxu0 0.0
    %3057 = vmatpush1.msra.mxu0 0.0
    %3058 = vmatprep.subr.mxu0 0.0
    %3059 = vmatpush1.msra.mxu0 0.0
    %3060 = vmatprep.subr.mxu0 0.0
    %3061 = vmatpush1.msra.mxu0 0.0
    %3062 = vmatprep.subr.mxu0 0.0
    %3063 = vmatpush1.msra.mxu0 0.0
    %3064 = vmatprep.subr.mxu0 0.0
    %3065 = vmatpush1.msra.mxu0 0.0
    %3066 = vmatprep.subr.mxu0 0.0
    %3067 = vmatpush1.msra.mxu0 0.0
    %3068 = vmatprep.subr.mxu0 0.0
    %3069 = vmatpush1.msra.mxu0 0.0
    %3070 = vmatprep.subr.mxu0 0.0
    %3071 = vmatpush1.msra.mxu0 0.0
    %3072 = vmatprep.subr.mxu0 0.0
    %3073 = vmatpush1.msra.mxu0 0.0
    %3074 = vmatprep.subr.mxu0 0.0
    %3075 = vmatpush1.msra.mxu0 0.0
    %3076 = vmatprep.subr.mxu0 0.0
    %3077 = vmatpush1.msra.mxu0 0.0
    %3078 = vmatprep.subr.mxu0 0.0
    %3079 = vmatpush1.msra.mxu0 0.0
    %3080 = vmatprep.subr.mxu0 0.0
    %3081 = vmatpush1.msra.mxu0 0.0
    %3082 = vmatprep.subr.mxu0 0.0
    %3083 = vmatpush1.msra.mxu0 0.0
    %3084 = vmatprep.subr.mxu0 0.0
    %3085 = vmatpush1.msra.mxu0 0.0
    %3086 = vmatprep.subr.mxu0 0.0
    %3087 = vmatpush1.msra.mxu0 0.0
    %3088 = vmatprep.subr.mxu0 0.0
    %3089 = vmatpush1.msra.mxu0 0.0
    %3090 = vmatprep.subr.mxu0 0.0
    %3091 = vmatpush1.msra.mxu0 0.0
    %3092 = vmatprep.subr.mxu0 0.0
    %3093 = vmatpush1.msra.mxu0 0.0
    %3094 = vmatprep.subr.mxu0 0.0
    %3095 = vmatpush1.msra.mxu0 0.0
    %3096 = vmatprep.subr.mxu0 0.0
    %3097 = vmatpush1.msra.mxu0 0.0
    %3098 = vmatprep.subr.mxu0 0.0
    %3099 = vmatpush1.msra.mxu0 0.0
    %3100 = vmatprep.subr.mxu0 0.0
    %3101 = vmatpush1.msra.mxu0 0.0
    %3102 = vmatprep.mubr.f32.mxu0 0.0
    %3103 = vmatmul.mubr.f32.gmra.mrb[0].mxu0 %v3036
    %v3104 = vpop.f32.mrb[0].mxu0
    %v3105 = vadd.f32 0.0, %v3104
    %v3106 = vpop.f32.mrb[0].mxu0
    %3107 = vdwg.mxu0
    %3108 = vset.pattern.permute.xlu0 13
    %3109 = vperm.xlu0 %3108, %v171
    %v3110 = vpop.permute.xlu0 %3109
    %v3112 = vmul.f32 %v3110, %v3032
    %v3113 = vadd.f32 %v2902, %v3112
    %v3115 = vrot.slane %v3005, 4
    %v3117 = vadd.f32 %v168, %v3115
    %v3118 = vmul.f32 %v3117, 0.5
    %v3119 = vtanh.pop %v3118
    %v3120 = vadd.f32 %v3119, 1.0
    %v3121 = vmul.f32 %v3120, 0.5
    %v3122 = vtanh.pop %v3117
    %v3124 = vrot.slane %v2925, 6
    %v3126 = vmul.f32 %v3121, %v3124
    %3128 = vrot.lane.b32.xlu0 %v3122, 64
    %v3129 = vpop.permute.xlu0 %3128
    %v3131 = vmul.f32 %v3121, %v3129
    %3133 = vrot.lane.b32.xlu0 %v3131, 32
    %v3134 = vpop.permute.xlu0 %3133
    %v3136 = vadd.f32 %v3126, %v3134
    %v3137 = vtanh.pop %v3136
    %3139 = vrot.lane.b32.xlu0 %v3137, 64
    %v3140 = vpop.permute.xlu0 %3139
    %v3142 = vmul.f32 %v3121, %v3140
    %v3144 = vrot.slane %v3142, 4
    %3145 = vrot.lane.b32.xlu0 %v3144, 32
    %v3146 = vpop.permute.xlu0 %3145
    %v3147 = vsel %vm73, %v3146, 0
    %3149 = vmatprep.subr.mxu0 %v50
    %3150 = vmatpush1.msra.mxu0 %v49
    %3151 = vmatprep.subr.mxu0 %v52
    %3152 = vmatpush1.msra.mxu0 %v51
    %3153 = vmatprep.subr.mxu0 %v54
    %3154 = vmatpush1.msra.mxu0 %v53
    %3155 = vmatprep.subr.mxu0 %v56
    %3156 = vmatpush1.msra.mxu0 %v55
    %3157 = vmatprep.subr.mxu0 0.0
    %3158 = vmatpush1.msra.mxu0 0.0
    %3159 = vmatprep.subr.mxu0 0.0
    %3160 = vmatpush1.msra.mxu0 0.0
    %3161 = vmatprep.subr.mxu0 0.0
    %3162 = vmatpush1.msra.mxu0 0.0
    %3163 = vmatprep.subr.mxu0 0.0
    %3164 = vmatpush1.msra.mxu0 0.0
    %3165 = vmatprep.subr.mxu0 0.0
    %3166 = vmatpush1.msra.mxu0 0.0
    %3167 = vmatprep.subr.mxu0 0.0
    %3168 = vmatpush1.msra.mxu0 0.0
    %3169 = vmatprep.subr.mxu0 0.0
    %3170 = vmatpush1.msra.mxu0 0.0
    %3171 = vmatprep.subr.mxu0 0.0
    %3172 = vmatpush1.msra.mxu0 0.0
    %3173 = vmatprep.subr.mxu0 0.0
    %3174 = vmatpush1.msra.mxu0 0.0
    %3175 = vmatprep.subr.mxu0 0.0
    %3176 = vmatpush1.msra.mxu0 0.0
    %3177 = vmatprep.subr.mxu0 0.0
    %3178 = vmatpush1.msra.mxu0 0.0
    %3179 = vmatprep.subr.mxu0 0.0
    %3180 = vmatpush1.msra.mxu0 0.0
    %3181 = vmatprep.subr.mxu0 0.0
    %3182 = vmatpush1.msra.mxu0 0.0
    %3183 = vmatprep.subr.mxu0 0.0
    %3184 = vmatpush1.msra.mxu0 0.0
    %3185 = vmatprep.subr.mxu0 0.0
    %3186 = vmatpush1.msra.mxu0 0.0
    %3187 = vmatprep.subr.mxu0 0.0
    %3188 = vmatpush1.msra.mxu0 0.0
    %3189 = vmatprep.subr.mxu0 0.0
    %3190 = vmatpush1.msra.mxu0 0.0
    %3191 = vmatprep.subr.mxu0 0.0
    %3192 = vmatpush1.msra.mxu0 0.0
    %3193 = vmatprep.subr.mxu0 0.0
    %3194 = vmatpush1.msra.mxu0 0.0
    %3195 = vmatprep.subr.mxu0 0.0
    %3196 = vmatpush1.msra.mxu0 0.0
    %3197 = vmatprep.subr.mxu0 0.0
    %3198 = vmatpush1.msra.mxu0 0.0
    %3199 = vmatprep.subr.mxu0 0.0
    %3200 = vmatpush1.msra.mxu0 0.0
    %3201 = vmatprep.subr.mxu0 0.0
    %3202 = vmatpush1.msra.mxu0 0.0
    %3203 = vmatprep.subr.mxu0 0.0
    %3204 = vmatpush1.msra.mxu0 0.0
    %3205 = vmatprep.subr.mxu0 0.0
    %3206 = vmatpush1.msra.mxu0 0.0
    %3207 = vmatprep.subr.mxu0 0.0
    %3208 = vmatpush1.msra.mxu0 0.0
    %3209 = vmatprep.subr.mxu0 0.0
    %3210 = vmatpush1.msra.mxu0 0.0
    %3211 = vmatprep.subr.mxu0 0.0
    %3212 = vmatpush1.msra.mxu0 0.0
    %3213 = vmatprep.mubr.f32.mxu0 0.0
    %3214 = vmatmul.mubr.f32.gmra.mrb[0].mxu0 %v3147
    %v3215 = vpop.f32.mrb[0].mxu0
    %v3216 = vadd.f32 0.0, %v3215
    %v3217 = vpop.f32.mrb[0].mxu0
    %v3218 = vadd.f32 0.0, %v3217
    %3219 = vdwg.mxu0
    %v3220 = vadd.f32 %v3218, %v3105
    %v3221 = vadd.f32 %v3220, %v276
    %v3222 = vmul.f32 %v3221, 0.5
    %v3223 = vtanh.pop %v3222
    %v3224 = vadd.f32 %v3223, 1.0
    %v3225 = vmul.f32 %v3224, 0.5
    %v3226 = vtanh.pop %v3221
    %v3227 = vmul.f32 %v3225, %v3026
    %3229 = vrot.lane.b32.xlu0 %v3226, 64
    %v3230 = vpop.permute.xlu0 %3229
    %v3232 = vmul.f32 %v3225, %v3230
    %3234 = vrot.lane.b32.xlu0 %v3232, 32
    %v3235 = vpop.permute.xlu0 %3234
    %v3237 = vadd.f32 %v3227, %v3235
    %v3238 = vtanh.pop %v3237
    %3240 = vrot.lane.b32.xlu0 %v3238, 64
    %v3241 = vpop.permute.xlu0 %3240
    %v3243 = vmul.f32 %v3225, %v3241
    %3245 = vrot.lane.b32.xlu0 %v3243, 32
    %v3246 = vpop.permute.xlu0 %3245
    %v3247 = vsel %vm73, %v3246, 0
    %3249 = vmatprep.subr.mxu0 0.0
    %3250 = vmatpush1.msra.mxu0 %v59
    %3251 = vmatprep.subr.mxu0 0.0
    %3252 = vmatpush1.msra.mxu0 %v60
    %3253 = vmatprep.subr.mxu0 0.0
    %3254 = vmatpush1.msra.mxu0 %v61
    %3255 = vmatprep.subr.mxu0 0.0
    %3256 = vmatpush1.msra.mxu0 %v62
    %3257 = vmatprep.subr.mxu0 0.0
    %3258 = vmatpush1.msra.mxu0 0.0
    %3259 = vmatprep.subr.mxu0 0.0
    %3260 = vmatpush1.msra.mxu0 0.0
    %3261 = vmatprep.subr.mxu0 0.0
    %3262 = vmatpush1.msra.mxu0 0.0
    %3263 = vmatprep.subr.mxu0 0.0
    %3264 = vmatpush1.msra.mxu0 0.0
    %3265 = vmatprep.subr.mxu0 0.0
    %3266 = vmatpush1.msra.mxu0 0.0
    %3267 = vmatprep.subr.mxu0 0.0
    %3268 = vmatpush1.msra.mxu0 0.0
    %3269 = vmatprep.subr.mxu0 0.0
    %3270 = vmatpush1.msra.mxu0 0.0
    %3271 = vmatprep.subr.mxu0 0.0
    %3272 = vmatpush1.msra.mxu0 0.0
    %3273 = vmatprep.subr.mxu0 0.0
    %3274 = vmatpush1.msra.mxu0 0.0
    %3275 = vmatprep.subr.mxu0 0.0
    %3276 = vmatpush1.msra.mxu0 0.0
    %3277 = vmatprep.subr.mxu0 0.0
    %3278 = vmatpush1.msra.mxu0 0.0
    %3279 = vmatprep.subr.mxu0 0.0
    %3280 = vmatpush1.msra.mxu0 0.0
    %3281 = vmatprep.subr.mxu0 0.0
    %3282 = vmatpush1.msra.mxu0 0.0
    %3283 = vmatprep.subr.mxu0 0.0
    %3284 = vmatpush1.msra.mxu0 0.0
    %3285 = vmatprep.subr.mxu0 0.0
    %3286 = vmatpush1.msra.mxu0 0.0
    %3287 = vmatprep.subr.mxu0 0.0
    %3288 = vmatpush1.msra.mxu0 0.0
    %3289 = vmatprep.subr.mxu0 0.0
    %3290 = vmatpush1.msra.mxu0 0.0
    %3291 = vmatprep.subr.mxu0 0.0
    %3292 = vmatpush1.msra.mxu0 0.0
    %3293 = vmatprep.subr.mxu0 0.0
    %3294 = vmatpush1.msra.mxu0 0.0
    %3295 = vmatprep.subr.mxu0 0.0
    %3296 = vmatpush1.msra.mxu0 0.0
    %3297 = vmatprep.subr.mxu0 0.0
    %3298 = vmatpush1.msra.mxu0 0.0
    %3299 = vmatprep.subr.mxu0 0.0
    %3300 = vmatpush1.msra.mxu0 0.0
    %3301 = vmatprep.subr.mxu0 0.0
    %3302 = vmatpush1.msra.mxu0 0.0
    %3303 = vmatprep.subr.mxu0 0.0
    %3304 = vmatpush1.msra.mxu0 0.0
    %3305 = vmatprep.subr.mxu0 0.0
    %3306 = vmatpush1.msra.mxu0 0.0
    %3307 = vmatprep.subr.mxu0 0.0
    %3308 = vmatpush1.msra.mxu0 0.0
    %3309 = vmatprep.subr.mxu0 0.0
    %3310 = vmatpush1.msra.mxu0 0.0
    %3311 = vmatprep.subr.mxu0 0.0
    %3312 = vmatpush1.msra.mxu0 0.0
    %3313 = vmatprep.mubr.f32.mxu0 0.0
    %3314 = vmatmul.mubr.f32.gmra.mrb[0].mxu0 %v3247
    %v3315 = vpop.f32.mrb[0].mxu0
    %v3316 = vadd.f32 0.0, %v3315
    %v3317 = vpop.f32.mrb[0].mxu0
    %3318 = vdwg.mxu0
    %3319 = vset.pattern.permute.xlu0 14
    %3320 = vperm.xlu0 %3319, %v171
    %v3321 = vpop.permute.xlu0 %3320
    %v3323 = vmul.f32 %v3321, %v3243
    %v3324 = vadd.f32 %v3113, %v3323
    %v3326 = vrot.slane %v3216, 2
    %v3328 = vadd.f32 %v168, %v3326
    %v3329 = vmul.f32 %v3328, 0.5
    %v3330 = vtanh.pop %v3329
    %v3331 = vadd.f32 %v3330, 1.0
    %v3332 = vmul.f32 %v3331, 0.5
    %v3333 = vtanh.pop %v3328
    %v3335 = vrot.slane %v3136, 6
    %v3337 = vmul.f32 %v3332, %v3335
    %3339 = vrot.lane.b32.xlu0 %v3333, 64
    %v3340 = vpop.permute.xlu0 %3339
    %v3342 = vmul.f32 %v3332, %v3340
    %3344 = vrot.lane.b32.xlu0 %v3342, 32
    %v3345 = vpop.permute.xlu0 %3344
    %v3347 = vadd.f32 %v3337, %v3345
    %v3348 = vtanh.pop %v3347
    %3350 = vrot.lane.b32.xlu0 %v3348, 64
    %v3351 = vpop.permute.xlu0 %3350
    %v3353 = vmul.f32 %v3332, %v3351
    %v3355 = vrot.slane %v3353, 6
    %3356 = vrot.lane.b32.xlu0 %v3355, 32
    %v3357 = vpop.permute.xlu0 %3356
    %v3358 = vsel %vm73, %v3357, 0
    %3360 = vmatprep.subr.mxu0 %v50
    %3361 = vmatpush1.msra.mxu0 %v49
    %3362 = vmatprep.subr.mxu0 %v52
    %3363 = vmatpush1.msra.mxu0 %v51
    %3364 = vmatprep.subr.mxu0 %v54
    %3365 = vmatpush1.msra.mxu0 %v53
    %3366 = vmatprep.subr.mxu0 %v56
    %3367 = vmatpush1.msra.mxu0 %v55
    %3368 = vmatprep.subr.mxu0 0.0
    %3369 = vmatpush1.msra.mxu0 0.0
    %3370 = vmatprep.subr.mxu0 0.0
    %3371 = vmatpush1.msra.mxu0 0.0
    %3372 = vmatprep.subr.mxu0 0.0
    %3373 = vmatpush1.msra.mxu0 0.0
    %3374 = vmatprep.subr.mxu0 0.0
    %3375 = vmatpush1.msra.mxu0 0.0
    %3376 = vmatprep.subr.mxu0 0.0
    %3377 = vmatpush1.msra.mxu0 0.0
    %3378 = vmatprep.subr.mxu0 0.0
    %3379 = vmatpush1.msra.mxu0 0.0
    %3380 = vmatprep.subr.mxu0 0.0
    %3381 = vmatpush1.msra.mxu0 0.0
    %3382 = vmatprep.subr.mxu0 0.0
    %3383 = vmatpush1.msra.mxu0 0.0
    %3384 = vmatprep.subr.mxu0 0.0
    %3385 = vmatpush1.msra.mxu0 0.0
    %3386 = vmatprep.subr.mxu0 0.0
    %3387 = vmatpush1.msra.mxu0 0.0
    %3388 = vmatprep.subr.mxu0 0.0
    %3389 = vmatpush1.msra.mxu0 0.0
    %3390 = vmatprep.subr.mxu0 0.0
    %3391 = vmatpush1.msra.mxu0 0.0
    %3392 = vmatprep.subr.mxu0 0.0
    %3393 = vmatpush1.msra.mxu0 0.0
    %3394 = vmatprep.subr.mxu0 0.0
    %3395 = vmatpush1.msra.mxu0 0.0
    %3396 = vmatprep.subr.mxu0 0.0
    %3397 = vmatpush1.msra.mxu0 0.0
    %3398 = vmatprep.subr.mxu0 0.0
    %3399 = vmatpush1.msra.mxu0 0.0
    %3400 = vmatprep.subr.mxu0 0.0
    %3401 = vmatpush1.msra.mxu0 0.0
    %3402 = vmatprep.subr.mxu0 0.0
    %3403 = vmatpush1.msra.mxu0 0.0
    %3404 = vmatprep.subr.mxu0 0.0
    %3405 = vmatpush1.msra.mxu0 0.0
    %3406 = vmatprep.subr.mxu0 0.0
    %3407 = vmatpush1.msra.mxu0 0.0
    %3408 = vmatprep.subr.mxu0 0.0
    %3409 = vmatpush1.msra.mxu0 0.0
    %3410 = vmatprep.subr.mxu0 0.0
    %3411 = vmatpush1.msra.mxu0 0.0
    %3412 = vmatprep.subr.mxu0 0.0
    %3413 = vmatpush1.msra.mxu0 0.0
    %3414 = vmatprep.subr.mxu0 0.0
    %3415 = vmatpush1.msra.mxu0 0.0
    %3416 = vmatprep.subr.mxu0 0.0
    %3417 = vmatpush1.msra.mxu0 0.0
    %3418 = vmatprep.subr.mxu0 0.0
    %3419 = vmatpush1.msra.mxu0 0.0
    %3420 = vmatprep.subr.mxu0 0.0
    %3421 = vmatpush1.msra.mxu0 0.0
    %3422 = vmatprep.subr.mxu0 0.0
    %3423 = vmatpush1.msra.mxu0 0.0
    %3424 = vmatprep.mubr.f32.mxu0 0.0
    %3425 = vmatmul.mubr.f32.gmra.mrb[0].mxu0 %v3358
    %v3426 = vpop.f32.mrb[0].mxu0
    %v3427 = vpop.f32.mrb[0].mxu0
    %v3428 = vadd.f32 0.0, %v3427
    %3429 = vdwg.mxu0
    %v3430 = vadd.f32 %v3428, %v3316
    %v3431 = vadd.f32 %v3430, %v276
    %v3432 = vmul.f32 %v3431, 0.5
    %v3433 = vtanh.pop %v3432
    %v3434 = vadd.f32 %v3433, 1.0
    %v3435 = vmul.f32 %v3434, 0.5
    %v3436 = vtanh.pop %v3431
    %v3437 = vmul.f32 %v3435, %v3237
    %3439 = vrot.lane.b32.xlu0 %v3436, 64
    %v3440 = vpop.permute.xlu0 %3439
    %v3442 = vmul.f32 %v3435, %v3440
    %3444 = vrot.lane.b32.xlu0 %v3442, 32
    %v3445 = vpop.permute.xlu0 %3444
    %v3447 = vadd.f32 %v3437, %v3445
    %v3448 = vtanh.pop %v3447
    %3450 = vrot.lane.b32.xlu0 %v3448, 64
    %v3451 = vpop.permute.xlu0 %3450
    %v3453 = vmul.f32 %v3435, %v3451
    %3454 = vset.pattern.permute.xlu0 15
    %3455 = vperm.xlu0 %3454, %v171
    %v3456 = vpop.permute.xlu0 %3455
    %v3458 = vmul.f32 %v3456, %v3453
    %v3459 = vadd.f32 %v3324, %v3458
    %v3460 = vld [vmem:[#allocation5 + $0xe0] sm:$0xff]
    %v3461 = vld [vmem:[#allocation5 + $0xf0] sm:$0xff]
    %v3462 = vld [vmem:[#allocation5 + $0x100] sm:$0xff]
    %v3463 = vld [vmem:[#allocation5 + $0x110] sm:$0xff]
    %s3464 = scalar_lea.vmem [#allocation5], 288
    %v3465 = vld [vmem:[%s3464] ss:$8 sm:$0x3]
    %v3467 = vlaneseq
    %v3468 = vshrl.u32 %v3467, 7
    %v3469 = vsub.s32 0, %v3468
    %v3470 = vrot.slane %v3465, %v3469
    %3473 = vrot.lane.b32.xlu0 %v3459, 32
    %v3474 = vpop.permute.xlu0 %3473
    %v3475 = vsel %vm73, %v3474, 0
    %3477 = vmatprep.subr.mxu0 0.0
    %3478 = vmatpush1.msra.mxu0 %v3460
    %3479 = vmatprep.subr.mxu0 0.0
    %3480 = vmatpush1.msra.mxu0 %v3461
    %3481 = vmatprep.subr.mxu0 0.0
    %3482 = vmatpush1.msra.mxu0 %v3462
    %3483 = vmatprep.subr.mxu0 0.0
    %3484 = vmatpush1.msra.mxu0 %v3463
    %3485 = vmatprep.subr.mxu0 0.0
    %3486 = vmatpush1.msra.mxu0 0.0
    %3487 = vmatprep.subr.mxu0 0.0
    %3488 = vmatpush1.msra.mxu0 0.0
    %3489 = vmatprep.subr.mxu0 0.0
    %3490 = vmatpush1.msra.mxu0 0.0
    %3491 = vmatprep.subr.mxu0 0.0
    %3492 = vmatpush1.msra.mxu0 0.0
    %3493 = vmatprep.subr.mxu0 0.0
    %3494 = vmatpush1.msra.mxu0 0.0
    %3495 = vmatprep.subr.mxu0 0.0
    %3496 = vmatpush1.msra.mxu0 0.0
    %3497 = vmatprep.subr.mxu0 0.0
    %3498 = vmatpush1.msra.mxu0 0.0
    %3499 = vmatprep.subr.mxu0 0.0
    %3500 = vmatpush1.msra.mxu0 0.0
    %3501 = vmatprep.subr.mxu0 0.0
    %3502 = vmatpush1.msra.mxu0 0.0
    %3503 = vmatprep.subr.mxu0 0.0
    %3504 = vmatpush1.msra.mxu0 0.0
    %3505 = vmatprep.subr.mxu0 0.0
    %3506 = vmatpush1.msra.mxu0 0.0
    %3507 = vmatprep.subr.mxu0 0.0
    %3508 = vmatpush1.msra.mxu0 0.0
    %3509 = vmatprep.subr.mxu0 0.0
    %3510 = vmatpush1.msra.mxu0 0.0
    %3511 = vmatprep.subr.mxu0 0.0
    %3512 = vmatpush1.msra.mxu0 0.0
    %3513 = vmatprep.subr.mxu0 0.0
    %3514 = vmatpush1.msra.mxu0 0.0
    %3515 = vmatprep.subr.mxu0 0.0
    %3516 = vmatpush1.msra.mxu0 0.0
    %3517 = vmatprep.subr.mxu0 0.0
    %3518 = vmatpush1.msra.mxu0 0.0
    %3519 = vmatprep.subr.mxu0 0.0
    %3520 = vmatpush1.msra.mxu0 0.0
    %3521 = vmatprep.subr.mxu0 0.0
    %3522 = vmatpush1.msra.mxu0 0.0
    %3523 = vmatprep.subr.mxu0 0.0
    %3524 = vmatpush1.msra.mxu0 0.0
    %3525 = vmatprep.subr.mxu0 0.0
    %3526 = vmatpush1.msra.mxu0 0.0
    %3527 = vmatprep.subr.mxu0 0.0
    %3528 = vmatpush1.msra.mxu0 0.0
    %3529 = vmatprep.subr.mxu0 0.0
    %3530 = vmatpush1.msra.mxu0 0.0
    %3531 = vmatprep.subr.mxu0 0.0
    %3532 = vmatpush1.msra.mxu0 0.0
    %3533 = vmatprep.subr.mxu0 0.0
    %3534 = vmatpush1.msra.mxu0 0.0
    %3535 = vmatprep.subr.mxu0 0.0
    %3536 = vmatpush1.msra.mxu0 0.0
    %3537 = vmatprep.subr.mxu0 0.0
    %3538 = vmatpush1.msra.mxu0 0.0
    %3539 = vmatprep.subr.mxu0 0.0
    %3540 = vmatpush1.msra.mxu0 0.0
    %3541 = vmatprep.mubr.f32.mxu0 0.0
    %3542 = vmatmul.mubr.f32.gmra.mrb[0].mxu0 %v3475
    %v3543 = vpop.f32.mrb[0].mxu0
    %v3544 = vadd.f32 %v3470, %v3543
    %v3545 = vpop.f32.mrb[0].mxu0
    %3546 = vdwg.mxu0
    %3547 = vst [vmem:[#allocation7] sm:$0x3] %v3544
    // Predicated region
    $region22: #{tpu_custom_call.1} parent=1 // pred_check
      _
    $region23: #{tpu_custom_call.1} parent=1 // pred_check_branch
      %3549 = sbr.rel (0) target = $region25
    $region24: #{tpu_custom_call.1} parent=1 // pred_region
      %s3551 = ssub.s32 32, 32
      %3552 = vsyncadd [#allocation4], %s3551
      %s3554 = sshll.u32 [#allocation7], 4
      %s3555 = int_to_ptr.vmem [resolvable:$true] %s3554
      %3557 = dma.vmem_to_hbm [thread:$0]  %s3555, 32, %s3, [#allocation4]
    $region25: #{tpu_custom_call.1} parent=1 // pred_fallthru
      _
    // Predicated region
    $region26: #{tpu_custom_call.1} parent=1 // pred_check
      _
    $region27: #{tpu_custom_call.1} parent=1 // pred_check_branch
      %3559 = sbr.rel (0) target = $region29
    $region28: #{tpu_custom_call.1} parent=1 // pred_region
      %3560 = dma.done [#allocation4], 32
    $region29: #{tpu_custom_call.1} parent=1 // pred_fallthru
      _
    %3561 = vsyncpa [#allocation3], 1
    %3562 = vsyncpa [#allocation6], 1
    %3563 = vsyncpa [#allocation4], 1

</llo_original>
